<compile_context>
chip_gen: v7x
topology: tpu7x:2x2x1
jax: 0.10.0
libtpu: 0.0.40
codegen_flags: <defaults>
</compile_context>

<pallas_src>
import functools
import math

import jax
import jax.numpy as jnp
from jax.experimental import pallas as pl
from jax.experimental.pallas import tpu as pltpu

LN_EPS = 1e-5


def _mhsa_kernel(x_ref, gamma_ref, beta_ref, wqkv_ref, bqkv_ref, wo_ref, bo_ref,
                 out_ref, o_scratch, *, num_heads, head_dim, block_b, seq_len):
    """One block of `block_b` batch elements per grid step.

    x_ref     : (block_b, S, E)  f32
    gamma/beta: (1, E)           f32
    wqkv_ref  : (E, 3E)          bf16 (transposed; Q rows pre-scaled by 1/sqrt(Dh))
    bqkv_ref  : (1, 3E)          f32  (Q part pre-scaled)
    wo_ref    : (E, E)           bf16 (transposed)
    bo_ref    : (1, E)           f32
    out_ref   : (block_b, S, E)
    o_scratch : (block_b*S, E)   f32 VMEM scratch for per-head attention outputs
    """
    E = x_ref.shape[-1]
    N = block_b * seq_len

    x = x_ref[...].reshape(N, E).astype(jnp.float32)

    # ---- LayerNorm (biased variance, eps=1e-5, affine), f32 ----
    mean = jnp.mean(x, axis=-1, keepdims=True)
    xc = x - mean
    var = jnp.mean(xc * xc, axis=-1, keepdims=True)
    ln = xc * jax.lax.rsqrt(var + LN_EPS)
    ln = ln * gamma_ref[...] + beta_ref[...]                     # (N, E)

    # ---- packed QKV projection: bf16 operands, f32 accumulate ----
    qkv = jnp.dot(ln.astype(jnp.bfloat16), wqkv_ref[...],
                  preferred_element_type=jnp.float32) + bqkv_ref[...]   # (N, 3E) f32

    # ---- per (batch-in-block, head) attention; Q already pre-scaled ----
    for b in range(block_b):
        r0 = b * seq_len
        for h in range(num_heads):
            c0 = h * head_dim
            qh = qkv[r0:r0 + seq_len, c0:c0 + head_dim].astype(jnp.bfloat16)
            kh = qkv[r0:r0 + seq_len, E + c0:E + c0 + head_dim].astype(jnp.bfloat16)
            vh = qkv[r0:r0 + seq_len, 2 * E + c0:2 * E + c0 + head_dim].astype(jnp.bfloat16)

            # scores (S, S): contract head_dim without materializing kh.T
            s = jax.lax.dot_general(qh, kh, (((1,), (1,)), ((), ())),
                                    preferred_element_type=jnp.float32)
            m = jnp.max(s, axis=-1, keepdims=True)
            p = jnp.exp(s - m)                                   # f32 softmax
            p = p * pl.reciprocal(jnp.sum(p, axis=-1, keepdims=True), approx=True)
            oh = jnp.dot(p.astype(jnp.bfloat16), vh,
                         preferred_element_type=jnp.float32)     # (S, Dh) f32
            o_scratch[r0:r0 + seq_len, c0:c0 + head_dim] = oh

    # ---- output projection ----
    out = jnp.dot(o_scratch[...].astype(jnp.bfloat16), wo_ref[...],
                  preferred_element_type=jnp.float32) + bo_ref[...]
    out_ref[...] = out.reshape(block_b, seq_len, E).astype(out_ref.dtype)


def prepare_params(params, num_heads):
    """One-time prep: fold Q scale, transpose, cast matmul weights to bf16."""
    E = params["ln_gamma"].shape[-1]
    assert E % num_heads == 0
    head_dim = E // num_heads
    scale = 1.0 / math.sqrt(head_dim)

    w_in = params["in_proj_weight"]                 # (3E, E), rows = out features
    b_in = params["in_proj_bias"]                   # (3E,)
    w_in = w_in.at[:E].multiply(scale)              # fold 1/sqrt(Dh) into Q rows
    b_in = b_in.at[:E].multiply(scale)

    return {
        "gamma": params["ln_gamma"].reshape(1, E).astype(jnp.float32),
        "beta": params["ln_beta"].reshape(1, E).astype(jnp.float32),
        "wqkv_t": w_in.T.astype(jnp.bfloat16),                       # (E, 3E)
        "bqkv": b_in.reshape(1, 3 * E).astype(jnp.float32),
        "wo_t": params["out_proj_weight"].T.astype(jnp.bfloat16),    # (E, E)
        "bo": params["out_proj_bias"].reshape(1, E).astype(jnp.float32),
    }


def _pick_block_b(batch, seq_len, target_rows=256):
    """Largest divisor of `batch` whose flattened row count stays near target."""
    bt = 1
    for c in range(1, batch + 1):
        if batch % c == 0 and c * seq_len <= max(target_rows, seq_len):
            bt = c
    return bt


def mhsa_block(x, prepared, num_heads, block_b=None):
    B, S, E = x.shape
    assert E % num_heads == 0
    head_dim = E // num_heads
    if block_b is None:
        block_b = _pick_block_b(B, S)
    assert B % block_b == 0

    kernel = functools.partial(_mhsa_kernel, num_heads=num_heads,
                               head_dim=head_dim, block_b=block_b, seq_len=S)

    # Rough per-step VMEM footprint -> explicit scoped-VMEM limit with headroom.
    f32, bf16 = 4, 2
    est = (E * 3 * E * bf16 + E * E * bf16              # wqkv, wo (bf16)
           + 16 * E * f32                               # gamma/beta/biases (padded)
           + 2 * 2 * block_b * S * E * f32              # x/out blocks, double-buffered
           + block_b * S * (3 * E + 2 * E) * f32        # qkv, ln, scratch
           + 2 * S * S * f32)                           # one head's scores/probs
    vmem_limit = int(min(2 * est + (8 << 20), 56 << 20))

    full = lambda i: (0, 0)
    return pl.pallas_call(
        kernel,
        out_shape=jax.ShapeDtypeStruct((B, S, E), x.dtype),
        grid_spec=pltpu.PrefetchScalarGridSpec(
            num_scalar_prefetch=0,
            grid=(B // block_b,),
            in_specs=[
                pl.BlockSpec((block_b, S, E), lambda i: (i, 0, 0)),   # x
                pl.BlockSpec((1, E), full),                           # gamma
                pl.BlockSpec((1, E), full),                           # beta
                pl.BlockSpec((E, 3 * E), full),                       # Wqkv^T (bf16)
                pl.BlockSpec((1, 3 * E), full),                       # bqkv
                pl.BlockSpec((E, E), full),                           # Wo^T (bf16)
                pl.BlockSpec((1, E), full),                           # bo
            ],
            out_specs=pl.BlockSpec((block_b, S, E), lambda i: (i, 0, 0)),
            scratch_shapes=[pltpu.VMEM((block_b * S, E), jnp.float32)],
        ),
        compiler_params=pltpu.CompilerParams(
            dimension_semantics=("parallel",),
            vmem_limit_bytes=vmem_limit),
    )(x, prepared["gamma"], prepared["beta"], prepared["wqkv_t"],
      prepared["bqkv"], prepared["wo_t"], prepared["bo"])


def mhsa_reference(x, params, num_heads):
    """Pure-JAX f32 reference matching PyTorch LayerNorm + MultiheadAttention."""
    B, S, E = x.shape
    Dh = E // num_heads
    mean = jnp.mean(x, axis=-1, keepdims=True)
    var = jnp.mean((x - mean) ** 2, axis=-1, keepdims=True)
    ln = (x - mean) / jnp.sqrt(var + LN_EPS)
    ln = ln * params["ln_gamma"] + params["ln_beta"]

    qkv = jnp.einsum("bse,fe->bsf", ln, params["in_proj_weight"]) + params["in_proj_bias"]
    q, k, v = jnp.split(qkv, 3, axis=-1)

    def split_heads(t):
        return t.reshape(B, S, num_heads, Dh).transpose(0, 2, 1, 3)

    q, k, v = split_heads(q), split_heads(k), split_heads(v)
    s = jnp.einsum("bhqd,bhkd->bhqk", q / jnp.sqrt(Dh), k)
    p = jax.nn.softmax(s, axis=-1)
    o = jnp.einsum("bhqk,bhkd->bhqd", p, v)
    o = o.transpose(0, 2, 1, 3).reshape(B, S, E)
    return jnp.einsum("bse,fe->bsf", o, params["out_proj_weight"]) + params["out_proj_bias"]


def init_params(key, embed_dim):
    ks = jax.random.split(key, 4)
    scale = 1.0 / (embed_dim ** 0.5)
    return {
        "ln_gamma": jnp.ones((embed_dim,), jnp.float32),
        "ln_beta": jnp.zeros((embed_dim,), jnp.float32),
        "in_proj_weight": scale * jax.random.normal(ks[0], (3 * embed_dim, embed_dim), jnp.float32),
        "in_proj_bias": 0.01 * jax.random.normal(ks[1], (3 * embed_dim,), jnp.float32),
        "out_proj_weight": scale * jax.random.normal(ks[2], (embed_dim, embed_dim), jnp.float32),
        "out_proj_bias": 0.01 * jax.random.normal(ks[3], (embed_dim,), jnp.float32),
    }


if __name__ == "__main__":
    # Small ViT-like shapes, lane-dense embedding (E multiple of 128), Dh = 32.
    B, S, E, H = 8, 16, 128, 4
    key = jax.random.PRNGKey(0)
    kx, kp = jax.random.split(key)
    x = jax.random.normal(kx, (B, S, E), jnp.float32)
    params = init_params(kp, E)
    prepared = prepare_params(params, H)

    # block_b=4 -> grid=(2,), 64 rows per projection matmul.
    out = mhsa_block(x, prepared, H, block_b=4)
    out = jax.block_until_ready(out)

    ref = mhsa_reference(x, params, H)
    assert out.shape == (B, S, E)
    # bf16 MXU operands vs. f32 reference -> loosened tolerance.
    max_err = float(jnp.max(jnp.abs(out - ref)))
    assert jnp.allclose(out, ref, atol=5e-2, rtol=5e-2), f"mismatch vs reference (max abs err {max_err})"

    print("KERNEL_OK")
</pallas_src>

<mosaic_0001>
module attributes {stable_mosaic.version = 11 : i64} {
  func.func @_mhsa_kernel(%arg0: i32, %arg1: memref<4x16x128xf32, #tpu.memory_space<vmem>>, %arg2: memref<1x128xf32, #tpu.memory_space<vmem>>, %arg3: memref<1x128xf32, #tpu.memory_space<vmem>>, %arg4: memref<128x384xbf16, #tpu.memory_space<vmem>>, %arg5: memref<1x384xf32, #tpu.memory_space<vmem>>, %arg6: memref<128x128xbf16, #tpu.memory_space<vmem>>, %arg7: memref<1x128xf32, #tpu.memory_space<vmem>>, %arg8: memref<4x16x128xf32, #tpu.memory_space<vmem>>, %arg9: memref<64x128xf32, #tpu.memory_space<vmem>>) attributes {dimension_semantics = [#tpu.dimension_semantics<parallel>], iteration_bounds = array<i64: 2>, scalar_prefetch = 0 : i64, scratch_operands = 1 : i64, tpu.core_type = #tpu.core_type<tc>, window_params = [{transform_indices = @transform_0, window_bounds = array<i64: 4, 16, 128>}, {pipeline_mode = #tpu.pipeline_mode<synchronous>, transform_indices = @transform_1, window_bounds = array<i64: 1, 128>}, {pipeline_mode = #tpu.pipeline_mode<synchronous>, transform_indices = @transform_2, window_bounds = array<i64: 1, 128>}, {pipeline_mode = #tpu.pipeline_mode<synchronous>, transform_indices = @transform_3, window_bounds = array<i64: 128, 384>}, {pipeline_mode = #tpu.pipeline_mode<synchronous>, transform_indices = @transform_4, window_bounds = array<i64: 1, 384>}, {pipeline_mode = #tpu.pipeline_mode<synchronous>, transform_indices = @transform_5, window_bounds = array<i64: 128, 128>}, {pipeline_mode = #tpu.pipeline_mode<synchronous>, transform_indices = @transform_6, window_bounds = array<i64: 1, 128>}, {transform_indices = @transform_7, window_bounds = array<i64: 4, 16, 128>}]} {
    %c0 = arith.constant 0 : index
    %c0_0 = arith.constant 0 : index
    %c0_1 = arith.constant 0 : index
    %0 = vector.load %arg1[%c0, %c0_0, %c0_1] : memref<4x16x128xf32, #tpu.memory_space<vmem>>, vector<4x16x128xf32>
    %1 = vector.shape_cast %0 : vector<4x16x128xf32> to vector<64x128xf32>
    %cst = arith.constant dense<0.000000e+00> : vector<64xf32>
    %2 = vector.multi_reduction <add>, %1, %cst [1] : vector<64x128xf32> to vector<64xf32>
    %3 = vector.shape_cast %2 : vector<64xf32> to vector<64x1xf32>
    %cst_2 = arith.constant 1.280000e+02 : f32
    %4 = vector.broadcast %cst_2 : f32 to vector<64x1xf32>
    %5 = arith.divf %3, %4 : vector<64x1xf32>
    %6 = vector.broadcast %5 : vector<64x1xf32> to vector<64x128xf32>
    %7 = arith.subf %1, %6 : vector<64x128xf32>
    %8 = arith.mulf %7, %7 : vector<64x128xf32>
    %cst_3 = arith.constant dense<0.000000e+00> : vector<64xf32>
    %9 = vector.multi_reduction <add>, %8, %cst_3 [1] : vector<64x128xf32> to vector<64xf32>
    %10 = vector.shape_cast %9 : vector<64xf32> to vector<64x1xf32>
    %cst_4 = arith.constant 1.280000e+02 : f32
    %11 = vector.broadcast %cst_4 : f32 to vector<64x1xf32>
    %12 = arith.divf %10, %11 : vector<64x1xf32>
    %cst_5 = arith.constant 9.99999974E-6 : f32
    %13 = vector.broadcast %cst_5 : f32 to vector<64x1xf32>
    %14 = arith.addf %12, %13 : vector<64x1xf32>
    %15 = math.rsqrt %14 : vector<64x1xf32>
    %16 = vector.broadcast %15 : vector<64x1xf32> to vector<64x128xf32>
    %17 = arith.mulf %7, %16 : vector<64x128xf32>
    %c0_6 = arith.constant 0 : index
    %c0_7 = arith.constant 0 : index
    %18 = vector.load %arg2[%c0_6, %c0_7] : memref<1x128xf32, #tpu.memory_space<vmem>>, vector<1x128xf32>
    %19 = vector.broadcast %18 : vector<1x128xf32> to vector<64x128xf32>
    %20 = arith.mulf %17, %19 : vector<64x128xf32>
    %c0_8 = arith.constant 0 : index
    %c0_9 = arith.constant 0 : index
    %21 = vector.load %arg3[%c0_8, %c0_9] : memref<1x128xf32, #tpu.memory_space<vmem>>, vector<1x128xf32>
    %22 = vector.broadcast %21 : vector<1x128xf32> to vector<64x128xf32>
    %23 = arith.addf %20, %22 : vector<64x128xf32>
    %24 = arith.truncf %23 : vector<64x128xf32> to vector<64x128xbf16>
    %c0_10 = arith.constant 0 : index
    %c0_11 = arith.constant 0 : index
    %25 = vector.load %arg4[%c0_10, %c0_11] : memref<128x384xbf16, #tpu.memory_space<vmem>>, vector<128x384xbf16>
    %cst_12 = arith.constant dense<0.000000e+00> : vector<64x384xf32>
    %26 = tpu.matmul %24, %25, %cst_12 {dimension_numbers = #tpu.dot_dimension_numbers<[1], [0], [0], [1], [0, 0, 1, 1], [], []>} : vector<64x128xbf16>, vector<128x384xbf16>, vector<64x384xf32> -> vector<64x384xf32>
    %c0_13 = arith.constant 0 : index
    %c0_14 = arith.constant 0 : index
    %27 = vector.load %arg5[%c0_13, %c0_14] : memref<1x384xf32, #tpu.memory_space<vmem>>, vector<1x384xf32>
    %28 = vector.broadcast %27 : vector<1x384xf32> to vector<64x384xf32>
    %29 = arith.addf %26, %28 : vector<64x384xf32>
    %30 = vector.extract_strided_slice %29 {offsets = [0, 0], sizes = [16, 32], strides = [1, 1]} : vector<64x384xf32> to vector<16x32xf32>
    %31 = arith.truncf %30 : vector<16x32xf32> to vector<16x32xbf16>
    %32 = vector.extract_strided_slice %29 {offsets = [0, 128], sizes = [16, 32], strides = [1, 1]} : vector<64x384xf32> to vector<16x32xf32>
    %33 = arith.truncf %32 : vector<16x32xf32> to vector<16x32xbf16>
    %34 = vector.extract_strided_slice %29 {offsets = [0, 256], sizes = [16, 32], strides = [1, 1]} : vector<64x384xf32> to vector<16x32xf32>
    %35 = arith.truncf %34 : vector<16x32xf32> to vector<16x32xbf16>
    %cst_15 = arith.constant dense<0.000000e+00> : vector<16x16xf32>
    %36 = tpu.matmul %31, %33, %cst_15 {dimension_numbers = #tpu.dot_dimension_numbers<[1], [1], [0], [0], [0, 0, 1, 0], [], []>} : vector<16x32xbf16>, vector<16x32xbf16>, vector<16x16xf32> -> vector<16x16xf32>
    %cst_16 = arith.constant dense<0xFF800000> : vector<16xf32>
    %37 = vector.multi_reduction <maximumf>, %36, %cst_16 [1] : vector<16x16xf32> to vector<16xf32>
    %38 = vector.shape_cast %37 : vector<16xf32> to vector<16x1xf32>
    %39 = vector.broadcast %38 : vector<16x1xf32> to vector<16x16xf32>
    %40 = arith.subf %36, %39 : vector<16x16xf32>
    %41 = math.exp %40 : vector<16x16xf32>
    %cst_17 = arith.constant dense<0.000000e+00> : vector<16xf32>
    %42 = vector.multi_reduction <add>, %41, %cst_17 [1] : vector<16x16xf32> to vector<16xf32>
    %43 = vector.shape_cast %42 : vector<16xf32> to vector<16x1xf32>
    %44 = tpu.reciprocal %43 {approx = true} : vector<16x1xf32> -> vector<16x1xf32>
    %45 = vector.broadcast %44 : vector<16x1xf32> to vector<16x16xf32>
    %46 = arith.mulf %41, %45 : vector<16x16xf32>
    %47 = arith.truncf %46 : vector<16x16xf32> to vector<16x16xbf16>
    %cst_18 = arith.constant dense<0.000000e+00> : vector<16x32xf32>
    %48 = tpu.matmul %47, %35, %cst_18 {dimension_numbers = #tpu.dot_dimension_numbers<[1], [0], [0], [1], [0, 0, 1, 1], [], []>} : vector<16x16xbf16>, vector<16x32xbf16>, vector<16x32xf32> -> vector<16x32xf32>
    %c0_19 = arith.constant 0 : index
    %c0_20 = arith.constant 0 : index
    %49 = vector.load %arg9[%c0_19, %c0_20] : memref<64x128xf32, #tpu.memory_space<vmem>>, vector<16x32xf32>
    tpu.vector_store %arg9[%c0_19, %c0_20], %48 {strides = array<i32>} : memref<64x128xf32, #tpu.memory_space<vmem>>, vector<16x32xf32>,
    %50 = vector.extract_strided_slice %29 {offsets = [0, 32], sizes = [16, 32], strides = [1, 1]} : vector<64x384xf32> to vector<16x32xf32>
    %51 = arith.truncf %50 : vector<16x32xf32> to vector<16x32xbf16>
    %52 = vector.extract_strided_slice %29 {offsets = [0, 160], sizes = [16, 32], strides = [1, 1]} : vector<64x384xf32> to vector<16x32xf32>
    %53 = arith.truncf %52 : vector<16x32xf32> to vector<16x32xbf16>
    %54 = vector.extract_strided_slice %29 {offsets = [0, 288], sizes = [16, 32], strides = [1, 1]} : vector<64x384xf32> to vector<16x32xf32>
    %55 = arith.truncf %54 : vector<16x32xf32> to vector<16x32xbf16>
    %cst_21 = arith.constant dense<0.000000e+00> : vector<16x16xf32>
    %56 = tpu.matmul %51, %53, %cst_21 {dimension_numbers = #tpu.dot_dimension_numbers<[1], [1], [0], [0], [0, 0, 1, 0], [], []>} : vector<16x32xbf16>, vector<16x32xbf16>, vector<16x16xf32> -> vector<16x16xf32>
    %cst_22 = arith.constant dense<0xFF800000> : vector<16xf32>
    %57 = vector.multi_reduction <maximumf>, %56, %cst_22 [1] : vector<16x16xf32> to vector<16xf32>
    %58 = vector.shape_cast %57 : vector<16xf32> to vector<16x1xf32>
    %59 = vector.broadcast %58 : vector<16x1xf32> to vector<16x16xf32>
    %60 = arith.subf %56, %59 : vector<16x16xf32>
    %61 = math.exp %60 : vector<16x16xf32>
    %cst_23 = arith.constant dense<0.000000e+00> : vector<16xf32>
    %62 = vector.multi_reduction <add>, %61, %cst_23 [1] : vector<16x16xf32> to vector<16xf32>
    %63 = vector.shape_cast %62 : vector<16xf32> to vector<16x1xf32>
    %64 = tpu.reciprocal %63 {approx = true} : vector<16x1xf32> -> vector<16x1xf32>
    %65 = vector.broadcast %64 : vector<16x1xf32> to vector<16x16xf32>
    %66 = arith.mulf %61, %65 : vector<16x16xf32>
    %67 = arith.truncf %66 : vector<16x16xf32> to vector<16x16xbf16>
    %cst_24 = arith.constant dense<0.000000e+00> : vector<16x32xf32>
    %68 = tpu.matmul %67, %55, %cst_24 {dimension_numbers = #tpu.dot_dimension_numbers<[1], [0], [0], [1], [0, 0, 1, 1], [], []>} : vector<16x16xbf16>, vector<16x32xbf16>, vector<16x32xf32> -> vector<16x32xf32>
    %c0_25 = arith.constant 0 : index
    %c32 = arith.constant 32 : index
    %69 = vector.load %arg9[%c0_25, %c32] : memref<64x128xf32, #tpu.memory_space<vmem>>, vector<16x32xf32>
    tpu.vector_store %arg9[%c0_25, %c32], %68 {strides = array<i32>} : memref<64x128xf32, #tpu.memory_space<vmem>>, vector<16x32xf32>,
    %70 = vector.extract_strided_slice %29 {offsets = [0, 64], sizes = [16, 32], strides = [1, 1]} : vector<64x384xf32> to vector<16x32xf32>
    %71 = arith.truncf %70 : vector<16x32xf32> to vector<16x32xbf16>
    %72 = vector.extract_strided_slice %29 {offsets = [0, 192], sizes = [16, 32], strides = [1, 1]} : vector<64x384xf32> to vector<16x32xf32>
    %73 = arith.truncf %72 : vector<16x32xf32> to vector<16x32xbf16>
    %74 = vector.extract_strided_slice %29 {offsets = [0, 320], sizes = [16, 32], strides = [1, 1]} : vector<64x384xf32> to vector<16x32xf32>
    %75 = arith.truncf %74 : vector<16x32xf32> to vector<16x32xbf16>
    %cst_26 = arith.constant dense<0.000000e+00> : vector<16x16xf32>
    %76 = tpu.matmul %71, %73, %cst_26 {dimension_numbers = #tpu.dot_dimension_numbers<[1], [1], [0], [0], [0, 0, 1, 0], [], []>} : vector<16x32xbf16>, vector<16x32xbf16>, vector<16x16xf32> -> vector<16x16xf32>
    %cst_27 = arith.constant dense<0xFF800000> : vector<16xf32>
    %77 = vector.multi_reduction <maximumf>, %76, %cst_27 [1] : vector<16x16xf32> to vector<16xf32>
    %78 = vector.shape_cast %77 : vector<16xf32> to vector<16x1xf32>
    %79 = vector.broadcast %78 : vector<16x1xf32> to vector<16x16xf32>
    %80 = arith.subf %76, %79 : vector<16x16xf32>
    %81 = math.exp %80 : vector<16x16xf32>
    %cst_28 = arith.constant dense<0.000000e+00> : vector<16xf32>
    %82 = vector.multi_reduction <add>, %81, %cst_28 [1] : vector<16x16xf32> to vector<16xf32>
    %83 = vector.shape_cast %82 : vector<16xf32> to vector<16x1xf32>
    %84 = tpu.reciprocal %83 {approx = true} : vector<16x1xf32> -> vector<16x1xf32>
    %85 = vector.broadcast %84 : vector<16x1xf32> to vector<16x16xf32>
    %86 = arith.mulf %81, %85 : vector<16x16xf32>
    %87 = arith.truncf %86 : vector<16x16xf32> to vector<16x16xbf16>
    %cst_29 = arith.constant dense<0.000000e+00> : vector<16x32xf32>
    %88 = tpu.matmul %87, %75, %cst_29 {dimension_numbers = #tpu.dot_dimension_numbers<[1], [0], [0], [1], [0, 0, 1, 1], [], []>} : vector<16x16xbf16>, vector<16x32xbf16>, vector<16x32xf32> -> vector<16x32xf32>
    %c0_30 = arith.constant 0 : index
    %c64 = arith.constant 64 : index
    %89 = vector.load %arg9[%c0_30, %c64] : memref<64x128xf32, #tpu.memory_space<vmem>>, vector<16x32xf32>
    tpu.vector_store %arg9[%c0_30, %c64], %88 {strides = array<i32>} : memref<64x128xf32, #tpu.memory_space<vmem>>, vector<16x32xf32>,
    %90 = vector.extract_strided_slice %29 {offsets = [0, 96], sizes = [16, 32], strides = [1, 1]} : vector<64x384xf32> to vector<16x32xf32>
    %91 = arith.truncf %90 : vector<16x32xf32> to vector<16x32xbf16>
    %92 = vector.extract_strided_slice %29 {offsets = [0, 224], sizes = [16, 32], strides = [1, 1]} : vector<64x384xf32> to vector<16x32xf32>
    %93 = arith.truncf %92 : vector<16x32xf32> to vector<16x32xbf16>
    %94 = vector.extract_strided_slice %29 {offsets = [0, 352], sizes = [16, 32], strides = [1, 1]} : vector<64x384xf32> to vector<16x32xf32>
    %95 = arith.truncf %94 : vector<16x32xf32> to vector<16x32xbf16>
    %cst_31 = arith.constant dense<0.000000e+00> : vector<16x16xf32>
    %96 = tpu.matmul %91, %93, %cst_31 {dimension_numbers = #tpu.dot_dimension_numbers<[1], [1], [0], [0], [0, 0, 1, 0], [], []>} : vector<16x32xbf16>, vector<16x32xbf16>, vector<16x16xf32> -> vector<16x16xf32>
    %cst_32 = arith.constant dense<0xFF800000> : vector<16xf32>
    %97 = vector.multi_reduction <maximumf>, %96, %cst_32 [1] : vector<16x16xf32> to vector<16xf32>
    %98 = vector.shape_cast %97 : vector<16xf32> to vector<16x1xf32>
    %99 = vector.broadcast %98 : vector<16x1xf32> to vector<16x16xf32>
    %100 = arith.subf %96, %99 : vector<16x16xf32>
    %101 = math.exp %100 : vector<16x16xf32>
    %cst_33 = arith.constant dense<0.000000e+00> : vector<16xf32>
    %102 = vector.multi_reduction <add>, %101, %cst_33 [1] : vector<16x16xf32> to vector<16xf32>
    %103 = vector.shape_cast %102 : vector<16xf32> to vector<16x1xf32>
    %104 = tpu.reciprocal %103 {approx = true} : vector<16x1xf32> -> vector<16x1xf32>
    %105 = vector.broadcast %104 : vector<16x1xf32> to vector<16x16xf32>
    %106 = arith.mulf %101, %105 : vector<16x16xf32>
    %107 = arith.truncf %106 : vector<16x16xf32> to vector<16x16xbf16>
    %cst_34 = arith.constant dense<0.000000e+00> : vector<16x32xf32>
    %108 = tpu.matmul %107, %95, %cst_34 {dimension_numbers = #tpu.dot_dimension_numbers<[1], [0], [0], [1], [0, 0, 1, 1], [], []>} : vector<16x16xbf16>, vector<16x32xbf16>, vector<16x32xf32> -> vector<16x32xf32>
    %c0_35 = arith.constant 0 : index
    %c96 = arith.constant 96 : index
    %109 = vector.load %arg9[%c0_35, %c96] : memref<64x128xf32, #tpu.memory_space<vmem>>, vector<16x32xf32>
    tpu.vector_store %arg9[%c0_35, %c96], %108 {strides = array<i32>} : memref<64x128xf32, #tpu.memory_space<vmem>>, vector<16x32xf32>,
    %110 = vector.extract_strided_slice %29 {offsets = [16, 0], sizes = [16, 32], strides = [1, 1]} : vector<64x384xf32> to vector<16x32xf32>
    %111 = arith.truncf %110 : vector<16x32xf32> to vector<16x32xbf16>
    %112 = vector.extract_strided_slice %29 {offsets = [16, 128], sizes = [16, 32], strides = [1, 1]} : vector<64x384xf32> to vector<16x32xf32>
    %113 = arith.truncf %112 : vector<16x32xf32> to vector<16x32xbf16>
    %114 = vector.extract_strided_slice %29 {offsets = [16, 256], sizes = [16, 32], strides = [1, 1]} : vector<64x384xf32> to vector<16x32xf32>
    %115 = arith.truncf %114 : vector<16x32xf32> to vector<16x32xbf16>
    %cst_36 = arith.constant dense<0.000000e+00> : vector<16x16xf32>
    %116 = tpu.matmul %111, %113, %cst_36 {dimension_numbers = #tpu.dot_dimension_numbers<[1], [1], [0], [0], [0, 0, 1, 0], [], []>} : vector<16x32xbf16>, vector<16x32xbf16>, vector<16x16xf32> -> vector<16x16xf32>
    %cst_37 = arith.constant dense<0xFF800000> : vector<16xf32>
    %117 = vector.multi_reduction <maximumf>, %116, %cst_37 [1] : vector<16x16xf32> to vector<16xf32>
    %118 = vector.shape_cast %117 : vector<16xf32> to vector<16x1xf32>
    %119 = vector.broadcast %118 : vector<16x1xf32> to vector<16x16xf32>
    %120 = arith.subf %116, %119 : vector<16x16xf32>
    %121 = math.exp %120 : vector<16x16xf32>
    %cst_38 = arith.constant dense<0.000000e+00> : vector<16xf32>
    %122 = vector.multi_reduction <add>, %121, %cst_38 [1] : vector<16x16xf32> to vector<16xf32>
    %123 = vector.shape_cast %122 : vector<16xf32> to vector<16x1xf32>
    %124 = tpu.reciprocal %123 {approx = true} : vector<16x1xf32> -> vector<16x1xf32>
    %125 = vector.broadcast %124 : vector<16x1xf32> to vector<16x16xf32>
    %126 = arith.mulf %121, %125 : vector<16x16xf32>
    %127 = arith.truncf %126 : vector<16x16xf32> to vector<16x16xbf16>
    %cst_39 = arith.constant dense<0.000000e+00> : vector<16x32xf32>
    %128 = tpu.matmul %127, %115, %cst_39 {dimension_numbers = #tpu.dot_dimension_numbers<[1], [0], [0], [1], [0, 0, 1, 1], [], []>} : vector<16x16xbf16>, vector<16x32xbf16>, vector<16x32xf32> -> vector<16x32xf32>
    %c16 = arith.constant 16 : index
    %c0_40 = arith.constant 0 : index
    %129 = vector.load %arg9[%c16, %c0_40] : memref<64x128xf32, #tpu.memory_space<vmem>>, vector<16x32xf32>
    tpu.vector_store %arg9[%c16, %c0_40], %128 {strides = array<i32>} : memref<64x128xf32, #tpu.memory_space<vmem>>, vector<16x32xf32>,
    %130 = vector.extract_strided_slice %29 {offsets = [16, 32], sizes = [16, 32], strides = [1, 1]} : vector<64x384xf32> to vector<16x32xf32>
    %131 = arith.truncf %130 : vector<16x32xf32> to vector<16x32xbf16>
    %132 = vector.extract_strided_slice %29 {offsets = [16, 160], sizes = [16, 32], strides = [1, 1]} : vector<64x384xf32> to vector<16x32xf32>
    %133 = arith.truncf %132 : vector<16x32xf32> to vector<16x32xbf16>
    %134 = vector.extract_strided_slice %29 {offsets = [16, 288], sizes = [16, 32], strides = [1, 1]} : vector<64x384xf32> to vector<16x32xf32>
    %135 = arith.truncf %134 : vector<16x32xf32> to vector<16x32xbf16>
    %cst_41 = arith.constant dense<0.000000e+00> : vector<16x16xf32>
    %136 = tpu.matmul %131, %133, %cst_41 {dimension_numbers = #tpu.dot_dimension_numbers<[1], [1], [0], [0], [0, 0, 1, 0], [], []>} : vector<16x32xbf16>, vector<16x32xbf16>, vector<16x16xf32> -> vector<16x16xf32>
    %cst_42 = arith.constant dense<0xFF800000> : vector<16xf32>
    %137 = vector.multi_reduction <maximumf>, %136, %cst_42 [1] : vector<16x16xf32> to vector<16xf32>
    %138 = vector.shape_cast %137 : vector<16xf32> to vector<16x1xf32>
    %139 = vector.broadcast %138 : vector<16x1xf32> to vector<16x16xf32>
    %140 = arith.subf %136, %139 : vector<16x16xf32>
    %141 = math.exp %140 : vector<16x16xf32>
    %cst_43 = arith.constant dense<0.000000e+00> : vector<16xf32>
    %142 = vector.multi_reduction <add>, %141, %cst_43 [1] : vector<16x16xf32> to vector<16xf32>
    %143 = vector.shape_cast %142 : vector<16xf32> to vector<16x1xf32>
    %144 = tpu.reciprocal %143 {approx = true} : vector<16x1xf32> -> vector<16x1xf32>
    %145 = vector.broadcast %144 : vector<16x1xf32> to vector<16x16xf32>
    %146 = arith.mulf %141, %145 : vector<16x16xf32>
    %147 = arith.truncf %146 : vector<16x16xf32> to vector<16x16xbf16>
    %cst_44 = arith.constant dense<0.000000e+00> : vector<16x32xf32>
    %148 = tpu.matmul %147, %135, %cst_44 {dimension_numbers = #tpu.dot_dimension_numbers<[1], [0], [0], [1], [0, 0, 1, 1], [], []>} : vector<16x16xbf16>, vector<16x32xbf16>, vector<16x32xf32> -> vector<16x32xf32>
    %c16_45 = arith.constant 16 : index
    %c32_46 = arith.constant 32 : index
    %149 = vector.load %arg9[%c16_45, %c32_46] : memref<64x128xf32, #tpu.memory_space<vmem>>, vector<16x32xf32>
    tpu.vector_store %arg9[%c16_45, %c32_46], %148 {strides = array<i32>} : memref<64x128xf32, #tpu.memory_space<vmem>>, vector<16x32xf32>,
    %150 = vector.extract_strided_slice %29 {offsets = [16, 64], sizes = [16, 32], strides = [1, 1]} : vector<64x384xf32> to vector<16x32xf32>
    %151 = arith.truncf %150 : vector<16x32xf32> to vector<16x32xbf16>
    %152 = vector.extract_strided_slice %29 {offsets = [16, 192], sizes = [16, 32], strides = [1, 1]} : vector<64x384xf32> to vector<16x32xf32>
    %153 = arith.truncf %152 : vector<16x32xf32> to vector<16x32xbf16>
    %154 = vector.extract_strided_slice %29 {offsets = [16, 320], sizes = [16, 32], strides = [1, 1]} : vector<64x384xf32> to vector<16x32xf32>
    %155 = arith.truncf %154 : vector<16x32xf32> to vector<16x32xbf16>
    %cst_47 = arith.constant dense<0.000000e+00> : vector<16x16xf32>
    %156 = tpu.matmul %151, %153, %cst_47 {dimension_numbers = #tpu.dot_dimension_numbers<[1], [1], [0], [0], [0, 0, 1, 0], [], []>} : vector<16x32xbf16>, vector<16x32xbf16>, vector<16x16xf32> -> vector<16x16xf32>
    %cst_48 = arith.constant dense<0xFF800000> : vector<16xf32>
    %157 = vector.multi_reduction <maximumf>, %156, %cst_48 [1] : vector<16x16xf32> to vector<16xf32>
    %158 = vector.shape_cast %157 : vector<16xf32> to vector<16x1xf32>
    %159 = vector.broadcast %158 : vector<16x1xf32> to vector<16x16xf32>
    %160 = arith.subf %156, %159 : vector<16x16xf32>
    %161 = math.exp %160 : vector<16x16xf32>
    %cst_49 = arith.constant dense<0.000000e+00> : vector<16xf32>
    %162 = vector.multi_reduction <add>, %161, %cst_49 [1] : vector<16x16xf32> to vector<16xf32>
    %163 = vector.shape_cast %162 : vector<16xf32> to vector<16x1xf32>
    %164 = tpu.reciprocal %163 {approx = true} : vector<16x1xf32> -> vector<16x1xf32>
    %165 = vector.broadcast %164 : vector<16x1xf32> to vector<16x16xf32>
    %166 = arith.mulf %161, %165 : vector<16x16xf32>
    %167 = arith.truncf %166 : vector<16x16xf32> to vector<16x16xbf16>
    %cst_50 = arith.constant dense<0.000000e+00> : vector<16x32xf32>
    %168 = tpu.matmul %167, %155, %cst_50 {dimension_numbers = #tpu.dot_dimension_numbers<[1], [0], [0], [1], [0, 0, 1, 1], [], []>} : vector<16x16xbf16>, vector<16x32xbf16>, vector<16x32xf32> -> vector<16x32xf32>
    %c16_51 = arith.constant 16 : index
    %c64_52 = arith.constant 64 : index
    %169 = vector.load %arg9[%c16_51, %c64_52] : memref<64x128xf32, #tpu.memory_space<vmem>>, vector<16x32xf32>
    tpu.vector_store %arg9[%c16_51, %c64_52], %168 {strides = array<i32>} : memref<64x128xf32, #tpu.memory_space<vmem>>, vector<16x32xf32>,
    %170 = vector.extract_strided_slice %29 {offsets = [16, 96], sizes = [16, 32], strides = [1, 1]} : vector<64x384xf32> to vector<16x32xf32>
    %171 = arith.truncf %170 : vector<16x32xf32> to vector<16x32xbf16>
    %172 = vector.extract_strided_slice %29 {offsets = [16, 224], sizes = [16, 32], strides = [1, 1]} : vector<64x384xf32> to vector<16x32xf32>
    %173 = arith.truncf %172 : vector<16x32xf32> to vector<16x32xbf16>
    %174 = vector.extract_strided_slice %29 {offsets = [16, 352], sizes = [16, 32], strides = [1, 1]} : vector<64x384xf32> to vector<16x32xf32>
    %175 = arith.truncf %174 : vector<16x32xf32> to vector<16x32xbf16>
    %cst_53 = arith.constant dense<0.000000e+00> : vector<16x16xf32>
    %176 = tpu.matmul %171, %173, %cst_53 {dimension_numbers = #tpu.dot_dimension_numbers<[1], [1], [0], [0], [0, 0, 1, 0], [], []>} : vector<16x32xbf16>, vector<16x32xbf16>, vector<16x16xf32> -> vector<16x16xf32>
    %cst_54 = arith.constant dense<0xFF800000> : vector<16xf32>
    %177 = vector.multi_reduction <maximumf>, %176, %cst_54 [1] : vector<16x16xf32> to vector<16xf32>
    %178 = vector.shape_cast %177 : vector<16xf32> to vector<16x1xf32>
    %179 = vector.broadcast %178 : vector<16x1xf32> to vector<16x16xf32>
    %180 = arith.subf %176, %179 : vector<16x16xf32>
    %181 = math.exp %180 : vector<16x16xf32>
    %cst_55 = arith.constant dense<0.000000e+00> : vector<16xf32>
    %182 = vector.multi_reduction <add>, %181, %cst_55 [1] : vector<16x16xf32> to vector<16xf32>
    %183 = vector.shape_cast %182 : vector<16xf32> to vector<16x1xf32>
    %184 = tpu.reciprocal %183 {approx = true} : vector<16x1xf32> -> vector<16x1xf32>
    %185 = vector.broadcast %184 : vector<16x1xf32> to vector<16x16xf32>
    %186 = arith.mulf %181, %185 : vector<16x16xf32>
    %187 = arith.truncf %186 : vector<16x16xf32> to vector<16x16xbf16>
    %cst_56 = arith.constant dense<0.000000e+00> : vector<16x32xf32>
    %188 = tpu.matmul %187, %175, %cst_56 {dimension_numbers = #tpu.dot_dimension_numbers<[1], [0], [0], [1], [0, 0, 1, 1], [], []>} : vector<16x16xbf16>, vector<16x32xbf16>, vector<16x32xf32> -> vector<16x32xf32>
    %c16_57 = arith.constant 16 : index
    %c96_58 = arith.constant 96 : index
    %189 = vector.load %arg9[%c16_57, %c96_58] : memref<64x128xf32, #tpu.memory_space<vmem>>, vector<16x32xf32>
    tpu.vector_store %arg9[%c16_57, %c96_58], %188 {strides = array<i32>} : memref<64x128xf32, #tpu.memory_space<vmem>>, vector<16x32xf32>,
    %190 = vector.extract_strided_slice %29 {offsets = [32, 0], sizes = [16, 32], strides = [1, 1]} : vector<64x384xf32> to vector<16x32xf32>
    %191 = arith.truncf %190 : vector<16x32xf32> to vector<16x32xbf16>
    %192 = vector.extract_strided_slice %29 {offsets = [32, 128], sizes = [16, 32], strides = [1, 1]} : vector<64x384xf32> to vector<16x32xf32>
    %193 = arith.truncf %192 : vector<16x32xf32> to vector<16x32xbf16>
    %194 = vector.extract_strided_slice %29 {offsets = [32, 256], sizes = [16, 32], strides = [1, 1]} : vector<64x384xf32> to vector<16x32xf32>
    %195 = arith.truncf %194 : vector<16x32xf32> to vector<16x32xbf16>
    %cst_59 = arith.constant dense<0.000000e+00> : vector<16x16xf32>
    %196 = tpu.matmul %191, %193, %cst_59 {dimension_numbers = #tpu.dot_dimension_numbers<[1], [1], [0], [0], [0, 0, 1, 0], [], []>} : vector<16x32xbf16>, vector<16x32xbf16>, vector<16x16xf32> -> vector<16x16xf32>
    %cst_60 = arith.constant dense<0xFF800000> : vector<16xf32>
    %197 = vector.multi_reduction <maximumf>, %196, %cst_60 [1] : vector<16x16xf32> to vector<16xf32>
    %198 = vector.shape_cast %197 : vector<16xf32> to vector<16x1xf32>
    %199 = vector.broadcast %198 : vector<16x1xf32> to vector<16x16xf32>
    %200 = arith.subf %196, %199 : vector<16x16xf32>
    %201 = math.exp %200 : vector<16x16xf32>
    %cst_61 = arith.constant dense<0.000000e+00> : vector<16xf32>
    %202 = vector.multi_reduction <add>, %201, %cst_61 [1] : vector<16x16xf32> to vector<16xf32>
    %203 = vector.shape_cast %202 : vector<16xf32> to vector<16x1xf32>
    %204 = tpu.reciprocal %203 {approx = true} : vector<16x1xf32> -> vector<16x1xf32>
    %205 = vector.broadcast %204 : vector<16x1xf32> to vector<16x16xf32>
    %206 = arith.mulf %201, %205 : vector<16x16xf32>
    %207 = arith.truncf %206 : vector<16x16xf32> to vector<16x16xbf16>
    %cst_62 = arith.constant dense<0.000000e+00> : vector<16x32xf32>
    %208 = tpu.matmul %207, %195, %cst_62 {dimension_numbers = #tpu.dot_dimension_numbers<[1], [0], [0], [1], [0, 0, 1, 1], [], []>} : vector<16x16xbf16>, vector<16x32xbf16>, vector<16x32xf32> -> vector<16x32xf32>
    %c32_63 = arith.constant 32 : index
    %c0_64 = arith.constant 0 : index
    %209 = vector.load %arg9[%c32_63, %c0_64] : memref<64x128xf32, #tpu.memory_space<vmem>>, vector<16x32xf32>
    tpu.vector_store %arg9[%c32_63, %c0_64], %208 {strides = array<i32>} : memref<64x128xf32, #tpu.memory_space<vmem>>, vector<16x32xf32>,
    %210 = vector.extract_strided_slice %29 {offsets = [32, 32], sizes = [16, 32], strides = [1, 1]} : vector<64x384xf32> to vector<16x32xf32>
    %211 = arith.truncf %210 : vector<16x32xf32> to vector<16x32xbf16>
    %212 = vector.extract_strided_slice %29 {offsets = [32, 160], sizes = [16, 32], strides = [1, 1]} : vector<64x384xf32> to vector<16x32xf32>
    %213 = arith.truncf %212 : vector<16x32xf32> to vector<16x32xbf16>
    %214 = vector.extract_strided_slice %29 {offsets = [32, 288], sizes = [16, 32], strides = [1, 1]} : vector<64x384xf32> to vector<16x32xf32>
    %215 = arith.truncf %214 : vector<16x32xf32> to vector<16x32xbf16>
    %cst_65 = arith.constant dense<0.000000e+00> : vector<16x16xf32>
    %216 = tpu.matmul %211, %213, %cst_65 {dimension_numbers = #tpu.dot_dimension_numbers<[1], [1], [0], [0], [0, 0, 1, 0], [], []>} : vector<16x32xbf16>, vector<16x32xbf16>, vector<16x16xf32> -> vector<16x16xf32>
    %cst_66 = arith.constant dense<0xFF800000> : vector<16xf32>
    %217 = vector.multi_reduction <maximumf>, %216, %cst_66 [1] : vector<16x16xf32> to vector<16xf32>
    %218 = vector.shape_cast %217 : vector<16xf32> to vector<16x1xf32>
    %219 = vector.broadcast %218 : vector<16x1xf32> to vector<16x16xf32>
    %220 = arith.subf %216, %219 : vector<16x16xf32>
    %221 = math.exp %220 : vector<16x16xf32>
    %cst_67 = arith.constant dense<0.000000e+00> : vector<16xf32>
    %222 = vector.multi_reduction <add>, %221, %cst_67 [1] : vector<16x16xf32> to vector<16xf32>
    %223 = vector.shape_cast %222 : vector<16xf32> to vector<16x1xf32>
    %224 = tpu.reciprocal %223 {approx = true} : vector<16x1xf32> -> vector<16x1xf32>
    %225 = vector.broadcast %224 : vector<16x1xf32> to vector<16x16xf32>
    %226 = arith.mulf %221, %225 : vector<16x16xf32>
    %227 = arith.truncf %226 : vector<16x16xf32> to vector<16x16xbf16>
    %cst_68 = arith.constant dense<0.000000e+00> : vector<16x32xf32>
    %228 = tpu.matmul %227, %215, %cst_68 {dimension_numbers = #tpu.dot_dimension_numbers<[1], [0], [0], [1], [0, 0, 1, 1], [], []>} : vector<16x16xbf16>, vector<16x32xbf16>, vector<16x32xf32> -> vector<16x32xf32>
    %c32_69 = arith.constant 32 : index
    %c32_70 = arith.constant 32 : index
    %229 = vector.load %arg9[%c32_69, %c32_70] : memref<64x128xf32, #tpu.memory_space<vmem>>, vector<16x32xf32>
    tpu.vector_store %arg9[%c32_69, %c32_70], %228 {strides = array<i32>} : memref<64x128xf32, #tpu.memory_space<vmem>>, vector<16x32xf32>,
    %230 = vector.extract_strided_slice %29 {offsets = [32, 64], sizes = [16, 32], strides = [1, 1]} : vector<64x384xf32> to vector<16x32xf32>
    %231 = arith.truncf %230 : vector<16x32xf32> to vector<16x32xbf16>
    %232 = vector.extract_strided_slice %29 {offsets = [32, 192], sizes = [16, 32], strides = [1, 1]} : vector<64x384xf32> to vector<16x32xf32>
    %233 = arith.truncf %232 : vector<16x32xf32> to vector<16x32xbf16>
    %234 = vector.extract_strided_slice %29 {offsets = [32, 320], sizes = [16, 32], strides = [1, 1]} : vector<64x384xf32> to vector<16x32xf32>
    %235 = arith.truncf %234 : vector<16x32xf32> to vector<16x32xbf16>
    %cst_71 = arith.constant dense<0.000000e+00> : vector<16x16xf32>
    %236 = tpu.matmul %231, %233, %cst_71 {dimension_numbers = #tpu.dot_dimension_numbers<[1], [1], [0], [0], [0, 0, 1, 0], [], []>} : vector<16x32xbf16>, vector<16x32xbf16>, vector<16x16xf32> -> vector<16x16xf32>
    %cst_72 = arith.constant dense<0xFF800000> : vector<16xf32>
    %237 = vector.multi_reduction <maximumf>, %236, %cst_72 [1] : vector<16x16xf32> to vector<16xf32>
    %238 = vector.shape_cast %237 : vector<16xf32> to vector<16x1xf32>
    %239 = vector.broadcast %238 : vector<16x1xf32> to vector<16x16xf32>
    %240 = arith.subf %236, %239 : vector<16x16xf32>
    %241 = math.exp %240 : vector<16x16xf32>
    %cst_73 = arith.constant dense<0.000000e+00> : vector<16xf32>
    %242 = vector.multi_reduction <add>, %241, %cst_73 [1] : vector<16x16xf32> to vector<16xf32>
    %243 = vector.shape_cast %242 : vector<16xf32> to vector<16x1xf32>
    %244 = tpu.reciprocal %243 {approx = true} : vector<16x1xf32> -> vector<16x1xf32>
    %245 = vector.broadcast %244 : vector<16x1xf32> to vector<16x16xf32>
    %246 = arith.mulf %241, %245 : vector<16x16xf32>
    %247 = arith.truncf %246 : vector<16x16xf32> to vector<16x16xbf16>
    %cst_74 = arith.constant dense<0.000000e+00> : vector<16x32xf32>
    %248 = tpu.matmul %247, %235, %cst_74 {dimension_numbers = #tpu.dot_dimension_numbers<[1], [0], [0], [1], [0, 0, 1, 1], [], []>} : vector<16x16xbf16>, vector<16x32xbf16>, vector<16x32xf32> -> vector<16x32xf32>
    %c32_75 = arith.constant 32 : index
    %c64_76 = arith.constant 64 : index
    %249 = vector.load %arg9[%c32_75, %c64_76] : memref<64x128xf32, #tpu.memory_space<vmem>>, vector<16x32xf32>
    tpu.vector_store %arg9[%c32_75, %c64_76], %248 {strides = array<i32>} : memref<64x128xf32, #tpu.memory_space<vmem>>, vector<16x32xf32>,
    %250 = vector.extract_strided_slice %29 {offsets = [32, 96], sizes = [16, 32], strides = [1, 1]} : vector<64x384xf32> to vector<16x32xf32>
    %251 = arith.truncf %250 : vector<16x32xf32> to vector<16x32xbf16>
    %252 = vector.extract_strided_slice %29 {offsets = [32, 224], sizes = [16, 32], strides = [1, 1]} : vector<64x384xf32> to vector<16x32xf32>
    %253 = arith.truncf %252 : vector<16x32xf32> to vector<16x32xbf16>
    %254 = vector.extract_strided_slice %29 {offsets = [32, 352], sizes = [16, 32], strides = [1, 1]} : vector<64x384xf32> to vector<16x32xf32>
    %255 = arith.truncf %254 : vector<16x32xf32> to vector<16x32xbf16>
    %cst_77 = arith.constant dense<0.000000e+00> : vector<16x16xf32>
    %256 = tpu.matmul %251, %253, %cst_77 {dimension_numbers = #tpu.dot_dimension_numbers<[1], [1], [0], [0], [0, 0, 1, 0], [], []>} : vector<16x32xbf16>, vector<16x32xbf16>, vector<16x16xf32> -> vector<16x16xf32>
    %cst_78 = arith.constant dense<0xFF800000> : vector<16xf32>
    %257 = vector.multi_reduction <maximumf>, %256, %cst_78 [1] : vector<16x16xf32> to vector<16xf32>
    %258 = vector.shape_cast %257 : vector<16xf32> to vector<16x1xf32>
    %259 = vector.broadcast %258 : vector<16x1xf32> to vector<16x16xf32>
    %260 = arith.subf %256, %259 : vector<16x16xf32>
    %261 = math.exp %260 : vector<16x16xf32>
    %cst_79 = arith.constant dense<0.000000e+00> : vector<16xf32>
    %262 = vector.multi_reduction <add>, %261, %cst_79 [1] : vector<16x16xf32> to vector<16xf32>
    %263 = vector.shape_cast %262 : vector<16xf32> to vector<16x1xf32>
    %264 = tpu.reciprocal %263 {approx = true} : vector<16x1xf32> -> vector<16x1xf32>
    %265 = vector.broadcast %264 : vector<16x1xf32> to vector<16x16xf32>
    %266 = arith.mulf %261, %265 : vector<16x16xf32>
    %267 = arith.truncf %266 : vector<16x16xf32> to vector<16x16xbf16>
    %cst_80 = arith.constant dense<0.000000e+00> : vector<16x32xf32>
    %268 = tpu.matmul %267, %255, %cst_80 {dimension_numbers = #tpu.dot_dimension_numbers<[1], [0], [0], [1], [0, 0, 1, 1], [], []>} : vector<16x16xbf16>, vector<16x32xbf16>, vector<16x32xf32> -> vector<16x32xf32>
    %c32_81 = arith.constant 32 : index
    %c96_82 = arith.constant 96 : index
    %269 = vector.load %arg9[%c32_81, %c96_82] : memref<64x128xf32, #tpu.memory_space<vmem>>, vector<16x32xf32>
    tpu.vector_store %arg9[%c32_81, %c96_82], %268 {strides = array<i32>} : memref<64x128xf32, #tpu.memory_space<vmem>>, vector<16x32xf32>,
    %270 = vector.extract_strided_slice %29 {offsets = [48, 0], sizes = [16, 32], strides = [1, 1]} : vector<64x384xf32> to vector<16x32xf32>
    %271 = arith.truncf %270 : vector<16x32xf32> to vector<16x32xbf16>
    %272 = vector.extract_strided_slice %29 {offsets = [48, 128], sizes = [16, 32], strides = [1, 1]} : vector<64x384xf32> to vector<16x32xf32>
    %273 = arith.truncf %272 : vector<16x32xf32> to vector<16x32xbf16>
    %274 = vector.extract_strided_slice %29 {offsets = [48, 256], sizes = [16, 32], strides = [1, 1]} : vector<64x384xf32> to vector<16x32xf32>
    %275 = arith.truncf %274 : vector<16x32xf32> to vector<16x32xbf16>
    %cst_83 = arith.constant dense<0.000000e+00> : vector<16x16xf32>
    %276 = tpu.matmul %271, %273, %cst_83 {dimension_numbers = #tpu.dot_dimension_numbers<[1], [1], [0], [0], [0, 0, 1, 0], [], []>} : vector<16x32xbf16>, vector<16x32xbf16>, vector<16x16xf32> -> vector<16x16xf32>
    %cst_84 = arith.constant dense<0xFF800000> : vector<16xf32>
    %277 = vector.multi_reduction <maximumf>, %276, %cst_84 [1] : vector<16x16xf32> to vector<16xf32>
    %278 = vector.shape_cast %277 : vector<16xf32> to vector<16x1xf32>
    %279 = vector.broadcast %278 : vector<16x1xf32> to vector<16x16xf32>
    %280 = arith.subf %276, %279 : vector<16x16xf32>
    %281 = math.exp %280 : vector<16x16xf32>
    %cst_85 = arith.constant dense<0.000000e+00> : vector<16xf32>
    %282 = vector.multi_reduction <add>, %281, %cst_85 [1] : vector<16x16xf32> to vector<16xf32>
    %283 = vector.shape_cast %282 : vector<16xf32> to vector<16x1xf32>
    %284 = tpu.reciprocal %283 {approx = true} : vector<16x1xf32> -> vector<16x1xf32>
    %285 = vector.broadcast %284 : vector<16x1xf32> to vector<16x16xf32>
    %286 = arith.mulf %281, %285 : vector<16x16xf32>
    %287 = arith.truncf %286 : vector<16x16xf32> to vector<16x16xbf16>
    %cst_86 = arith.constant dense<0.000000e+00> : vector<16x32xf32>
    %288 = tpu.matmul %287, %275, %cst_86 {dimension_numbers = #tpu.dot_dimension_numbers<[1], [0], [0], [1], [0, 0, 1, 1], [], []>} : vector<16x16xbf16>, vector<16x32xbf16>, vector<16x32xf32> -> vector<16x32xf32>
    %c48 = arith.constant 48 : index
    %c0_87 = arith.constant 0 : index
    %289 = vector.load %arg9[%c48, %c0_87] : memref<64x128xf32, #tpu.memory_space<vmem>>, vector<16x32xf32>
    tpu.vector_store %arg9[%c48, %c0_87], %288 {strides = array<i32>} : memref<64x128xf32, #tpu.memory_space<vmem>>, vector<16x32xf32>,
    %290 = vector.extract_strided_slice %29 {offsets = [48, 32], sizes = [16, 32], strides = [1, 1]} : vector<64x384xf32> to vector<16x32xf32>
    %291 = arith.truncf %290 : vector<16x32xf32> to vector<16x32xbf16>
    %292 = vector.extract_strided_slice %29 {offsets = [48, 160], sizes = [16, 32], strides = [1, 1]} : vector<64x384xf32> to vector<16x32xf32>
    %293 = arith.truncf %292 : vector<16x32xf32> to vector<16x32xbf16>
    %294 = vector.extract_strided_slice %29 {offsets = [48, 288], sizes = [16, 32], strides = [1, 1]} : vector<64x384xf32> to vector<16x32xf32>
    %295 = arith.truncf %294 : vector<16x32xf32> to vector<16x32xbf16>
    %cst_88 = arith.constant dense<0.000000e+00> : vector<16x16xf32>
    %296 = tpu.matmul %291, %293, %cst_88 {dimension_numbers = #tpu.dot_dimension_numbers<[1], [1], [0], [0], [0, 0, 1, 0], [], []>} : vector<16x32xbf16>, vector<16x32xbf16>, vector<16x16xf32> -> vector<16x16xf32>
    %cst_89 = arith.constant dense<0xFF800000> : vector<16xf32>
    %297 = vector.multi_reduction <maximumf>, %296, %cst_89 [1] : vector<16x16xf32> to vector<16xf32>
    %298 = vector.shape_cast %297 : vector<16xf32> to vector<16x1xf32>
    %299 = vector.broadcast %298 : vector<16x1xf32> to vector<16x16xf32>
    %300 = arith.subf %296, %299 : vector<16x16xf32>
    %301 = math.exp %300 : vector<16x16xf32>
    %cst_90 = arith.constant dense<0.000000e+00> : vector<16xf32>
    %302 = vector.multi_reduction <add>, %301, %cst_90 [1] : vector<16x16xf32> to vector<16xf32>
    %303 = vector.shape_cast %302 : vector<16xf32> to vector<16x1xf32>
    %304 = tpu.reciprocal %303 {approx = true} : vector<16x1xf32> -> vector<16x1xf32>
    %305 = vector.broadcast %304 : vector<16x1xf32> to vector<16x16xf32>
    %306 = arith.mulf %301, %305 : vector<16x16xf32>
    %307 = arith.truncf %306 : vector<16x16xf32> to vector<16x16xbf16>
    %cst_91 = arith.constant dense<0.000000e+00> : vector<16x32xf32>
    %308 = tpu.matmul %307, %295, %cst_91 {dimension_numbers = #tpu.dot_dimension_numbers<[1], [0], [0], [1], [0, 0, 1, 1], [], []>} : vector<16x16xbf16>, vector<16x32xbf16>, vector<16x32xf32> -> vector<16x32xf32>
    %c48_92 = arith.constant 48 : index
    %c32_93 = arith.constant 32 : index
    %309 = vector.load %arg9[%c48_92, %c32_93] : memref<64x128xf32, #tpu.memory_space<vmem>>, vector<16x32xf32>
    tpu.vector_store %arg9[%c48_92, %c32_93], %308 {strides = array<i32>} : memref<64x128xf32, #tpu.memory_space<vmem>>, vector<16x32xf32>,
    %310 = vector.extract_strided_slice %29 {offsets = [48, 64], sizes = [16, 32], strides = [1, 1]} : vector<64x384xf32> to vector<16x32xf32>
    %311 = arith.truncf %310 : vector<16x32xf32> to vector<16x32xbf16>
    %312 = vector.extract_strided_slice %29 {offsets = [48, 192], sizes = [16, 32], strides = [1, 1]} : vector<64x384xf32> to vector<16x32xf32>
    %313 = arith.truncf %312 : vector<16x32xf32> to vector<16x32xbf16>
    %314 = vector.extract_strided_slice %29 {offsets = [48, 320], sizes = [16, 32], strides = [1, 1]} : vector<64x384xf32> to vector<16x32xf32>
    %315 = arith.truncf %314 : vector<16x32xf32> to vector<16x32xbf16>
    %cst_94 = arith.constant dense<0.000000e+00> : vector<16x16xf32>
    %316 = tpu.matmul %311, %313, %cst_94 {dimension_numbers = #tpu.dot_dimension_numbers<[1], [1], [0], [0], [0, 0, 1, 0], [], []>} : vector<16x32xbf16>, vector<16x32xbf16>, vector<16x16xf32> -> vector<16x16xf32>
    %cst_95 = arith.constant dense<0xFF800000> : vector<16xf32>
    %317 = vector.multi_reduction <maximumf>, %316, %cst_95 [1] : vector<16x16xf32> to vector<16xf32>
    %318 = vector.shape_cast %317 : vector<16xf32> to vector<16x1xf32>
    %319 = vector.broadcast %318 : vector<16x1xf32> to vector<16x16xf32>
    %320 = arith.subf %316, %319 : vector<16x16xf32>
    %321 = math.exp %320 : vector<16x16xf32>
    %cst_96 = arith.constant dense<0.000000e+00> : vector<16xf32>
    %322 = vector.multi_reduction <add>, %321, %cst_96 [1] : vector<16x16xf32> to vector<16xf32>
    %323 = vector.shape_cast %322 : vector<16xf32> to vector<16x1xf32>
    %324 = tpu.reciprocal %323 {approx = true} : vector<16x1xf32> -> vector<16x1xf32>
    %325 = vector.broadcast %324 : vector<16x1xf32> to vector<16x16xf32>
    %326 = arith.mulf %321, %325 : vector<16x16xf32>
    %327 = arith.truncf %326 : vector<16x16xf32> to vector<16x16xbf16>
    %cst_97 = arith.constant dense<0.000000e+00> : vector<16x32xf32>
    %328 = tpu.matmul %327, %315, %cst_97 {dimension_numbers = #tpu.dot_dimension_numbers<[1], [0], [0], [1], [0, 0, 1, 1], [], []>} : vector<16x16xbf16>, vector<16x32xbf16>, vector<16x32xf32> -> vector<16x32xf32>
    %c48_98 = arith.constant 48 : index
    %c64_99 = arith.constant 64 : index
    %329 = vector.load %arg9[%c48_98, %c64_99] : memref<64x128xf32, #tpu.memory_space<vmem>>, vector<16x32xf32>
    tpu.vector_store %arg9[%c48_98, %c64_99], %328 {strides = array<i32>} : memref<64x128xf32, #tpu.memory_space<vmem>>, vector<16x32xf32>,
    %330 = vector.extract_strided_slice %29 {offsets = [48, 96], sizes = [16, 32], strides = [1, 1]} : vector<64x384xf32> to vector<16x32xf32>
    %331 = arith.truncf %330 : vector<16x32xf32> to vector<16x32xbf16>
    %332 = vector.extract_strided_slice %29 {offsets = [48, 224], sizes = [16, 32], strides = [1, 1]} : vector<64x384xf32> to vector<16x32xf32>
    %333 = arith.truncf %332 : vector<16x32xf32> to vector<16x32xbf16>
    %334 = vector.extract_strided_slice %29 {offsets = [48, 352], sizes = [16, 32], strides = [1, 1]} : vector<64x384xf32> to vector<16x32xf32>
    %335 = arith.truncf %334 : vector<16x32xf32> to vector<16x32xbf16>
    %cst_100 = arith.constant dense<0.000000e+00> : vector<16x16xf32>
    %336 = tpu.matmul %331, %333, %cst_100 {dimension_numbers = #tpu.dot_dimension_numbers<[1], [1], [0], [0], [0, 0, 1, 0], [], []>} : vector<16x32xbf16>, vector<16x32xbf16>, vector<16x16xf32> -> vector<16x16xf32>
    %cst_101 = arith.constant dense<0xFF800000> : vector<16xf32>
    %337 = vector.multi_reduction <maximumf>, %336, %cst_101 [1] : vector<16x16xf32> to vector<16xf32>
    %338 = vector.shape_cast %337 : vector<16xf32> to vector<16x1xf32>
    %339 = vector.broadcast %338 : vector<16x1xf32> to vector<16x16xf32>
    %340 = arith.subf %336, %339 : vector<16x16xf32>
    %341 = math.exp %340 : vector<16x16xf32>
    %cst_102 = arith.constant dense<0.000000e+00> : vector<16xf32>
    %342 = vector.multi_reduction <add>, %341, %cst_102 [1] : vector<16x16xf32> to vector<16xf32>
    %343 = vector.shape_cast %342 : vector<16xf32> to vector<16x1xf32>
    %344 = tpu.reciprocal %343 {approx = true} : vector<16x1xf32> -> vector<16x1xf32>
    %345 = vector.broadcast %344 : vector<16x1xf32> to vector<16x16xf32>
    %346 = arith.mulf %341, %345 : vector<16x16xf32>
    %347 = arith.truncf %346 : vector<16x16xf32> to vector<16x16xbf16>
    %cst_103 = arith.constant dense<0.000000e+00> : vector<16x32xf32>
    %348 = tpu.matmul %347, %335, %cst_103 {dimension_numbers = #tpu.dot_dimension_numbers<[1], [0], [0], [1], [0, 0, 1, 1], [], []>} : vector<16x16xbf16>, vector<16x32xbf16>, vector<16x32xf32> -> vector<16x32xf32>
    %c48_104 = arith.constant 48 : index
    %c96_105 = arith.constant 96 : index
    %349 = vector.load %arg9[%c48_104, %c96_105] : memref<64x128xf32, #tpu.memory_space<vmem>>, vector<16x32xf32>
    tpu.vector_store %arg9[%c48_104, %c96_105], %348 {strides = array<i32>} : memref<64x128xf32, #tpu.memory_space<vmem>>, vector<16x32xf32>,
    %c0_106 = arith.constant 0 : index
    %c0_107 = arith.constant 0 : index
    %350 = vector.load %arg9[%c0_106, %c0_107] : memref<64x128xf32, #tpu.memory_space<vmem>>, vector<64x128xf32>
    %351 = arith.truncf %350 : vector<64x128xf32> to vector<64x128xbf16>
    %c0_108 = arith.constant 0 : index
    %c0_109 = arith.constant 0 : index
    %352 = vector.load %arg6[%c0_108, %c0_109] : memref<128x128xbf16, #tpu.memory_space<vmem>>, vector<128x128xbf16>
    %cst_110 = arith.constant dense<0.000000e+00> : vector<64x128xf32>
    %353 = tpu.matmul %351, %352, %cst_110 {dimension_numbers = #tpu.dot_dimension_numbers<[1], [0], [0], [1], [0, 0, 1, 1], [], []>} : vector<64x128xbf16>, vector<128x128xbf16>, vector<64x128xf32> -> vector<64x128xf32>
    %c0_111 = arith.constant 0 : index
    %c0_112 = arith.constant 0 : index
    %354 = vector.load %arg7[%c0_111, %c0_112] : memref<1x128xf32, #tpu.memory_space<vmem>>, vector<1x128xf32>
    %355 = vector.broadcast %354 : vector<1x128xf32> to vector<64x128xf32>
    %356 = arith.addf %353, %355 : vector<64x128xf32>
    %357 = vector.shape_cast %356 : vector<64x128xf32> to vector<4x16x128xf32>
    %c0_113 = arith.constant 0 : index
    %c0_114 = arith.constant 0 : index
    %c0_115 = arith.constant 0 : index
    %358 = vector.load %arg8[%c0_113, %c0_114, %c0_115] : memref<4x16x128xf32, #tpu.memory_space<vmem>>, vector<4x16x128xf32>
    tpu.vector_store %arg8[%c0_113, %c0_114, %c0_115], %357 {strides = array<i32>} : memref<4x16x128xf32, #tpu.memory_space<vmem>>, vector<4x16x128xf32>,
    return
  }
  func.func @transform_0(%arg0: i32) -> (i32, i32, i32) {
    %c0_i32 = arith.constant 0 : i32
    %c0_i32_0 = arith.constant 0 : i32
    %c0_i32_1 = arith.constant 0 : i32
    return %arg0, %c0_i32, %c0_i32_0 : i32, i32, i32
  }
  func.func @transform_1(%arg0: i32) -> (i32, i32) {
    %c0_i32 = arith.constant 0 : i32
    %c0_i32_0 = arith.constant 0 : i32
    %c0_i32_1 = arith.constant 0 : i32
    return %c0_i32, %c0_i32_0 : i32, i32
  }
  func.func @transform_2(%arg0: i32) -> (i32, i32) {
    %c0_i32 = arith.constant 0 : i32
    %c0_i32_0 = arith.constant 0 : i32
    %c0_i32_1 = arith.constant 0 : i32
    return %c0_i32, %c0_i32_0 : i32, i32
  }
  func.func @transform_3(%arg0: i32) -> (i32, i32) {
    %c0_i32 = arith.constant 0 : i32
    %c0_i32_0 = arith.constant 0 : i32
    %c0_i32_1 = arith.constant 0 : i32
    return %c0_i32, %c0_i32_0 : i32, i32
  }
  func.func @transform_4(%arg0: i32) -> (i32, i32) {
    %c0_i32 = arith.constant 0 : i32
    %c0_i32_0 = arith.constant 0 : i32
    %c0_i32_1 = arith.constant 0 : i32
    return %c0_i32, %c0_i32_0 : i32, i32
  }
  func.func @transform_5(%arg0: i32) -> (i32, i32) {
    %c0_i32 = arith.constant 0 : i32
    %c0_i32_0 = arith.constant 0 : i32
    %c0_i32_1 = arith.constant 0 : i32
    return %c0_i32, %c0_i32_0 : i32, i32
  }
  func.func @transform_6(%arg0: i32) -> (i32, i32) {
    %c0_i32 = arith.constant 0 : i32
    %c0_i32_0 = arith.constant 0 : i32
    %c0_i32_1 = arith.constant 0 : i32
    return %c0_i32, %c0_i32_0 : i32, i32
  }
  func.func @transform_7(%arg0: i32) -> (i32, i32, i32) {
    %c0_i32 = arith.constant 0 : i32
    %c0_i32_0 = arith.constant 0 : i32
    %c0_i32_1 = arith.constant 0 : i32
    return %arg0, %c0_i32, %c0_i32_0 : i32, i32, i32
  }
}

</mosaic_0001>

<llo_original>
// kernel: tpu_custom_call.1
$region0: #{tpu_custom_call.1}
  #allocation0 [shape = 'u32[]', space=smem, size = 0x4, offset = 0x4, fixed_abs, tag = 'smem constant byte address 0x4 - core index']
  #allocation1 [shape = 'u32[144,128]{1,0:T(1,128)}', space=vmem, size = 0x12000, scoped, tag = 'internal scratch']
  #allocation2 [shape = 'f32[64,128]{1,0:T(8,128)}', space=vmem, size = 0x8000, scoped, tag = 'scratch operand']
  %s0 = inlined_call_operand.hbm [shape: f32[8,16,128], index: 0, kind: input, shape index: {}]
  %s1 = inlined_call_operand.vmem [shape: f32[1,128], index: 1, kind: input, shape index: {}]
  %s2 = inlined_call_operand.vmem [shape: f32[1,128], index: 2, kind: input, shape index: {}]
  %s3 = inlined_call_operand.hbm [shape: bf16[128,384], index: 3, kind: input, shape index: {}]
  %s4 = inlined_call_operand.vmem [shape: f32[1,384], index: 4, kind: input, shape index: {}]
  %s5 = inlined_call_operand.hbm [shape: bf16[128,128], index: 5, kind: input, shape index: {}]
  %s6 = inlined_call_operand.vmem [shape: f32[1,128], index: 6, kind: input, shape index: {}]
  %s7 = inlined_call_operand.hbm [shape: f32[8,16,128], index: 7, kind: output, shape index: {}]
  %s8 = sld [smem:[#allocation0]]
  $region73: #{tpu_custom_call.1} parent=0
    _
  %s10 = ssub.s32 1, %s8
  %s11 = scalar_select 0, %s10, %s8
  $region1: #{tpu_custom_call.1} parent=0
    #allocation3 [shape = 'u8[65536]{0}', space=vmem, size = 0x10000, scoped, tag = 'input window, operand 0']
    #allocation4 [shape = 's32[2]{0}', space=sflag, size = 0x8, scoped, tag = 'scoped memory for tpu_custom_call.1']
    #allocation5 [shape = 's32[2]{0}', space=sflag, size = 0x8, scoped, tag = 'scoped memory for tpu_custom_call.1']
    #allocation6 [shape = 'u8[98304]{0}', space=vmem, size = 0x18000, scoped, tag = 'input window, operand 3, single buffered']
    #allocation7 [shape = 's32[1]{0}', space=sflag, size = 0x4, scoped, tag = 'scoped memory for tpu_custom_call.1']
    #allocation8 [shape = 'u8[32768]{0}', space=vmem, size = 0x8000, scoped, tag = 'input window, operand 5, single buffered']
    #allocation9 [shape = 'u8[65536]{0}', space=vmem, size = 0x10000, scoped, tag = 'output window, operand 0']
    %12 = vsyncpa [#allocation4], 0
    %s13 = scalar_lea.sflag [#allocation4], 1
    %14 = vsyncpa %s13, 0
    %15 = vsyncpa [#allocation7], 0
    %16 = vsyncpa [#allocation5], 0
    %s17 = scalar_lea.sflag [#allocation5], 1
    %18 = vsyncpa %s17, 0
    loop: start=0, step=1, limit=4
    $region2: #{tpu_custom_call.1} parent=1 // loop_pre_header
      _
    $region3: #{tpu_custom_call.1} parent=1 // loop_header
      %s20 = sphi 0, %s24
      %p21 = scmp.ge.s32.totalorder %s20, 4
      %s30 = sphi 0, %s32
      %s33 = sphi 0, %s30
      %s34 = sphi 0, %s33
      %s50 = sphi 0, %s34
      %s54 = sphi 0, %s54
      %s56 = sphi 0, %s54
      %s57 = sphi 0, %s56
      %s71 = sphi 0, %s57
      %s75 = sphi 0, %s75
      %s77 = sphi 0, %s75
      %s78 = sphi 0, %s77
      %s92 = sphi 0, %s78
      %s96 = sphi 0, %s96
      %s98 = sphi 0, %s96
      %s99 = sphi 0, %s98
      %s113 = sphi 0, %s99
      %s117 = sphi 0, %s117
      %s119 = sphi 0, %s117
      %s120 = sphi 0, %s119
      %s134 = sphi 0, %s120
      %s138 = sphi 0, %s138
      %s140 = sphi 0, %s138
      %s141 = sphi 0, %s140
      %s155 = sphi 0, %s141
      %s159 = sphi 0, %s159
      %s161 = sphi 0, %s159
      %s162 = sphi 0, %s161
      %s176 = sphi 0, %s162
      %s182 = sphi 0, %s184
      %s185 = sphi 0, %s182
      %s186 = sphi 0, %s185
      %s202 = sphi 0, %s186
    $region4: #{tpu_custom_call.1} parent=1 // loop_header_branch
      %23 = sbr.rel (%p21) target = $region8
    $region5: #{tpu_custom_call.1} parent=1 // loop_body
      %s25 = ssub.s32 %s20, 1
      %s26 = ssub.s32 %s20, 2
      %s27 = sadd.s32 %s20, 1
      %s28 = ssub.s32 %s20, %s27
      %p29 = scmp.eq.s32.totalorder %s28, 0
      %s31 = sadd.s32 %s30, 1
      %s32 = scalar_select %p29, %s30, %s31
      %p35 = pneg %p29
      %p36 = scmp.eq.s32.totalorder %s20, 1
      %p37 = por %p35, %p36
      %p38 = scmp.ne.s32.totalorder %s30, %s33
      %p39 = scmp.eq.s32.totalorder %s20, 0
      %p40 = por %p38, %p39
      %p41 = scmp.ne.s32.totalorder %s30, %s33
      %p42 = scmp.eq.s32.totalorder %s25, 1
      %p43 = por %p41, %p42
      %p44 = scmp.ne.s32.totalorder %s33, %s34
      %p45 = scmp.eq.s32.totalorder %s25, 0
      %p46 = por %p44, %p45
      %p47 = scmp.ne.s32.totalorder %s33, %s34
      %p48 = scmp.eq.s32.totalorder %s26, 1
      %p49 = por %p47, %p48
      %p51 = scmp.ne.s32.totalorder %s34, %s50
      %p52 = scmp.eq.s32.totalorder %s26, 0
      %p53 = por %p51, %p52
      %s55 = sadd.s32 %s54, 1
      %p58 = scmp.eq.s32.totalorder %s20, 1
      %p59 = scmp.ne.s32.totalorder %s54, %s56
      %p60 = scmp.eq.s32.totalorder %s20, 0
      %p61 = por %p59, %p60
      %p62 = scmp.ne.s32.totalorder %s54, %s56
      %p63 = scmp.eq.s32.totalorder %s25, 1
      %p64 = por %p62, %p63
      %p65 = scmp.ne.s32.totalorder %s56, %s57
      %p66 = scmp.eq.s32.totalorder %s25, 0
      %p67 = por %p65, %p66
      %p68 = scmp.ne.s32.totalorder %s56, %s57
      %p69 = scmp.eq.s32.totalorder %s26, 1
      %p70 = por %p68, %p69
      %p72 = scmp.ne.s32.totalorder %s57, %s71
      %p73 = scmp.eq.s32.totalorder %s26, 0
      %p74 = por %p72, %p73
      %s76 = sadd.s32 %s75, 1
      %p79 = scmp.eq.s32.totalorder %s20, 1
      %p80 = scmp.ne.s32.totalorder %s75, %s77
      %p81 = scmp.eq.s32.totalorder %s20, 0
      %p82 = por %p80, %p81
      %p83 = scmp.ne.s32.totalorder %s75, %s77
      %p84 = scmp.eq.s32.totalorder %s25, 1
      %p85 = por %p83, %p84
      %p86 = scmp.ne.s32.totalorder %s77, %s78
      %p87 = scmp.eq.s32.totalorder %s25, 0
      %p88 = por %p86, %p87
      %p89 = scmp.ne.s32.totalorder %s77, %s78
      %p90 = scmp.eq.s32.totalorder %s26, 1
      %p91 = por %p89, %p90
      %p93 = scmp.ne.s32.totalorder %s78, %s92
      %p94 = scmp.eq.s32.totalorder %s26, 0
      %p95 = por %p93, %p94
      %s97 = sadd.s32 %s96, 1
      %p100 = scmp.eq.s32.totalorder %s20, 1
      %p101 = scmp.ne.s32.totalorder %s96, %s98
      %p102 = scmp.eq.s32.totalorder %s20, 0
      %p103 = por %p101, %p102
      %p104 = scmp.ne.s32.totalorder %s96, %s98
      %p105 = scmp.eq.s32.totalorder %s25, 1
      %p106 = por %p104, %p105
      %p107 = scmp.ne.s32.totalorder %s98, %s99
      %p108 = scmp.eq.s32.totalorder %s25, 0
      %p109 = por %p107, %p108
      %p110 = scmp.ne.s32.totalorder %s98, %s99
      %p111 = scmp.eq.s32.totalorder %s26, 1
      %p112 = por %p110, %p111
      %p114 = scmp.ne.s32.totalorder %s99, %s113
      %p115 = scmp.eq.s32.totalorder %s26, 0
      %p116 = por %p114, %p115
      %s118 = sadd.s32 %s117, 1
      %p121 = scmp.eq.s32.totalorder %s20, 1
      %p122 = scmp.ne.s32.totalorder %s117, %s119
      %p123 = scmp.eq.s32.totalorder %s20, 0
      %p124 = por %p122, %p123
      %p125 = scmp.ne.s32.totalorder %s117, %s119
      %p126 = scmp.eq.s32.totalorder %s25, 1
      %p127 = por %p125, %p126
      %p128 = scmp.ne.s32.totalorder %s119, %s120
      %p129 = scmp.eq.s32.totalorder %s25, 0
      %p130 = por %p128, %p129
      %p131 = scmp.ne.s32.totalorder %s119, %s120
      %p132 = scmp.eq.s32.totalorder %s26, 1
      %p133 = por %p131, %p132
      %p135 = scmp.ne.s32.totalorder %s120, %s134
      %p136 = scmp.eq.s32.totalorder %s26, 0
      %p137 = por %p135, %p136
      %s139 = sadd.s32 %s138, 1
      %p142 = scmp.eq.s32.totalorder %s20, 1
      %p143 = scmp.ne.s32.totalorder %s138, %s140
      %p144 = scmp.eq.s32.totalorder %s20, 0
      %p145 = por %p143, %p144
      %p146 = scmp.ne.s32.totalorder %s138, %s140
      %p147 = scmp.eq.s32.totalorder %s25, 1
      %p148 = por %p146, %p147
      %p149 = scmp.ne.s32.totalorder %s140, %s141
      %p150 = scmp.eq.s32.totalorder %s25, 0
      %p151 = por %p149, %p150
      %p152 = scmp.ne.s32.totalorder %s140, %s141
      %p153 = scmp.eq.s32.totalorder %s26, 1
      %p154 = por %p152, %p153
      %p156 = scmp.ne.s32.totalorder %s141, %s155
      %p157 = scmp.eq.s32.totalorder %s26, 0
      %p158 = por %p156, %p157
      %s160 = sadd.s32 %s159, 1
      %p163 = scmp.eq.s32.totalorder %s20, 1
      %p164 = scmp.ne.s32.totalorder %s159, %s161
      %p165 = scmp.eq.s32.totalorder %s20, 0
      %p166 = por %p164, %p165
      %p167 = scmp.ne.s32.totalorder %s159, %s161
      %p168 = scmp.eq.s32.totalorder %s25, 1
      %p169 = por %p167, %p168
      %p170 = scmp.ne.s32.totalorder %s161, %s162
      %p171 = scmp.eq.s32.totalorder %s25, 0
      %p172 = por %p170, %p171
      %p173 = scmp.ne.s32.totalorder %s161, %s162
      %p174 = scmp.eq.s32.totalorder %s26, 1
      %p175 = por %p173, %p174
      %p177 = scmp.ne.s32.totalorder %s162, %s176
      %p178 = scmp.eq.s32.totalorder %s26, 0
      %p179 = por %p177, %p178
      %s180 = ssub.s32 %s20, %s27
      %p181 = scmp.eq.s32.totalorder %s180, 0
      %s183 = sadd.s32 %s182, 1
      %s184 = scalar_select %p181, %s182, %s183
      %p187 = pneg %p181
      %p188 = scmp.eq.s32.totalorder %s20, 1
      %p189 = por %p187, %p188
      %p190 = scmp.ne.s32.totalorder %s182, %s185
      %p191 = scmp.eq.s32.totalorder %s20, 0
      %p192 = por %p190, %p191
      %p193 = scmp.ne.s32.totalorder %s182, %s185
      %p194 = scmp.eq.s32.totalorder %s25, 1
      %p195 = por %p193, %p194
      %p196 = scmp.ne.s32.totalorder %s185, %s186
      %p197 = scmp.eq.s32.totalorder %s25, 0
      %p198 = por %p196, %p197
      %p199 = scmp.ne.s32.totalorder %s185, %s186
      %p200 = scmp.eq.s32.totalorder %s26, 1
      %p201 = por %p199, %p200
      %p203 = scmp.ne.s32.totalorder %s186, %s202
      %p204 = scmp.eq.s32.totalorder %s26, 0
      %p205 = por %p203, %p204
      %p206 = scmp.le.s32.totalorder 1, %s20
      %p207 = scmp.lt.s32.totalorder %s20, 3
      %p208 = pnand %p206, %p207
      %p209 = pneg %p208
      // Predicated region
      $region9: #{tpu_custom_call.1} parent=5 // pred_check
        _
      $region10: #{tpu_custom_call.1} parent=5 // pred_check_branch
        %211 = sbr.rel (%p208) target = $region12
      $region11: #{tpu_custom_call.1} parent=5 // pred_region
        %s212 = ssub.s32 %s20, 1
        // Predicated region
        $region13: #{tpu_custom_call.1} parent=11 // pred_check
          %p213 = pneg %p67
        $region14: #{tpu_custom_call.1} parent=11 // pred_check_branch
          %215 = sbr.rel (%p213) target = $region16
        $region15: #{tpu_custom_call.1} parent=11 // pred_region
          _
        $region16: #{tpu_custom_call.1} parent=11 // pred_fallthru
          _
        // Predicated region
        $region17: #{tpu_custom_call.1} parent=11 // pred_check
          %p216 = pneg %p88
        $region18: #{tpu_custom_call.1} parent=11 // pred_check_branch
          %218 = sbr.rel (%p216) target = $region20
        $region19: #{tpu_custom_call.1} parent=11 // pred_region
          _
        $region20: #{tpu_custom_call.1} parent=11 // pred_fallthru
          _
        // Predicated region
        $region21: #{tpu_custom_call.1} parent=11 // pred_check
          %p219 = pneg %p109
        $region22: #{tpu_custom_call.1} parent=11 // pred_check_branch
          %221 = sbr.rel (%p219) target = $region24
        $region23: #{tpu_custom_call.1} parent=11 // pred_region
          %s223 = ssub.s32 3072, 3072
          %224 = vsyncadd [#allocation7], %s223
          %s225 = sshll.u32 [#allocation6], 4
          %s226 = int_to_ptr.vmem [resolvable:$true] %s225
          %231 = dma.hbm_to_vmem [thread:$0]  %s3, 3072, %s226, [#allocation7], 192, 192, 12
        $region24: #{tpu_custom_call.1} parent=11 // pred_fallthru
          _
        // Predicated region
        $region25: #{tpu_custom_call.1} parent=11 // pred_check
          %p232 = pneg %p130
        $region26: #{tpu_custom_call.1} parent=11 // pred_check_branch
          %234 = sbr.rel (%p232) target = $region28
        $region27: #{tpu_custom_call.1} parent=11 // pred_region
          _
        $region28: #{tpu_custom_call.1} parent=11 // pred_fallthru
          _
        // Predicated region
        $region29: #{tpu_custom_call.1} parent=11 // pred_check
          %p235 = pneg %p151
        $region30: #{tpu_custom_call.1} parent=11 // pred_check_branch
          %237 = sbr.rel (%p235) target = $region32
        $region31: #{tpu_custom_call.1} parent=11 // pred_region
          %s239 = ssub.s32 1024, 1024
          %240 = vsyncadd [#allocation7], %s239
          %s241 = sshll.u32 [#allocation8], 4
          %s242 = int_to_ptr.vmem [resolvable:$true] %s241
          %247 = dma.hbm_to_vmem [thread:$0]  %s5, 1024, %s242, [#allocation7], 64, 64, 4
        $region32: #{tpu_custom_call.1} parent=11 // pred_fallthru
          _
        // Predicated region
        $region33: #{tpu_custom_call.1} parent=11 // pred_check
          %p248 = pneg %p172
        $region34: #{tpu_custom_call.1} parent=11 // pred_check_branch
          %250 = sbr.rel (%p248) target = $region36
        $region35: #{tpu_custom_call.1} parent=11 // pred_region
          _
        $region36: #{tpu_custom_call.1} parent=11 // pred_fallthru
          _
      $region12: #{tpu_custom_call.1} parent=5 // pred_fallthru
        _
      %p251 = scmp.lt.s32.totalorder %s20, 2
      // Predicated region
      $region37: #{tpu_custom_call.1} parent=5 // pred_check
        %p252 = pneg %p251
      $region38: #{tpu_custom_call.1} parent=5 // pred_check_branch
        %254 = sbr.rel (%p252) target = $region40
      $region39: #{tpu_custom_call.1} parent=5 // pred_region
        // Predicated region
        $region41: #{tpu_custom_call.1} parent=39 // pred_check
          %p255 = pneg %p40
        $region42: #{tpu_custom_call.1} parent=39 // pred_check_branch
          %257 = sbr.rel (%p255) target = $region44
        $region43: #{tpu_custom_call.1} parent=39 // pred_region
          %s258 = sand.u32 %s30, 1
          %s259 = scalar_lea.sflag [#allocation4], %s258
          %s260 = sand.u32 %s30, 1
          %s261 = smul.addr %s260, 64
          %s262 = scalar_lea.vmem [#allocation3], %s261
          %s263 = smul.u32 4, %s20
          %s265 = ssub.s32 1024, 1024
          %266 = vsyncadd %s259, %s265
          %s267 = smul.addr %s263, 2
          %s268 = smul.addr %s267, 128
          %s269 = scalar_lea.hbm %s0, %s268
          %s270 = sshll.u32 %s262, 4
          %s271 = int_to_ptr.vmem [resolvable:$true] %s270
          %276 = dma.hbm_to_vmem [thread:$0]  %s269, 1024, %s271, %s259, 128, 128, 8
        $region44: #{tpu_custom_call.1} parent=39 // pred_fallthru
          _
      $region40: #{tpu_custom_call.1} parent=5 // pred_fallthru
        _
      %p277 = scmp.le.s32.totalorder 1, %s20
      %p278 = scmp.lt.s32.totalorder %s20, 3
      %p279 = pnand %p277, %p278
      %p280 = pneg %p279
      // Predicated region
      $region45: #{tpu_custom_call.1} parent=5 // pred_check
        _
      $region46: #{tpu_custom_call.1} parent=5 // pred_check_branch
        %282 = sbr.rel (%p279) target = $region48
      $region47: #{tpu_custom_call.1} parent=5 // pred_region
        %s283 = ssub.s32 %s20, 1
        %s284 = sand.u32 %s33, 1
        %s285 = scalar_lea.sflag [#allocation4], %s284
        %s286 = sand.u32 %s33, 1
        %s287 = smul.addr %s286, 64
        %s288 = scalar_lea.vmem [#allocation3], %s287
        // Predicated region
        $region49: #{tpu_custom_call.1} parent=47 // pred_check
          %p289 = pneg %p46
        $region50: #{tpu_custom_call.1} parent=47 // pred_check_branch
          %291 = sbr.rel (%p289) target = $region52
        $region51: #{tpu_custom_call.1} parent=47 // pred_region
          %292 = dma.done %s285, 1024
        $region52: #{tpu_custom_call.1} parent=47 // pred_fallthru
          _
        // Predicated region
        $region53: #{tpu_custom_call.1} parent=47 // pred_check
          %p293 = pneg %p109
        $region54: #{tpu_custom_call.1} parent=47 // pred_check_branch
          %295 = sbr.rel (%p293) target = $region56
        $region55: #{tpu_custom_call.1} parent=47 // pred_region
          %296 = dma.done [#allocation7], 3072
        $region56: #{tpu_custom_call.1} parent=47 // pred_fallthru
          _
        // Predicated region
        $region57: #{tpu_custom_call.1} parent=47 // pred_check
          %p297 = pneg %p151
        $region58: #{tpu_custom_call.1} parent=47 // pred_check_branch
          %299 = sbr.rel (%p297) target = $region60
        $region59: #{tpu_custom_call.1} parent=47 // pred_region
          %300 = dma.done [#allocation7], 1024
        $region60: #{tpu_custom_call.1} parent=47 // pred_fallthru
          _
        %s301 = sand.u32 %s33, 1
        %s302 = scalar_lea.sflag [#allocation4], %s301
        %s303 = sand.u32 %s33, 1
        %s304 = smul.addr %s303, 64
        %s305 = scalar_lea.vmem [#allocation3], %s304
        %p306 = pneg %p46
        %p307 = pneg %p43
        %p308 = pneg %p67
        %p309 = pneg %p64
        %p310 = pneg %p88
        %p311 = pneg %p85
        %p312 = pneg %p109
        %p313 = pneg %p106
        %p314 = pneg %p130
        %p315 = pneg %p127
        %p316 = pneg %p151
        %p317 = pneg %p148
        %p318 = pneg %p172
        %p319 = pneg %p169
        %p320 = pneg %p198
        %p321 = pneg %p195
        %s322 = sand.u32 %s185, 1
        %s323 = scalar_lea.sflag [#allocation5], %s322
        %s324 = sand.u32 %s185, 1
        %s325 = smul.addr %s324, 64
        %s326 = scalar_lea.vmem [#allocation9], %s325
        %s327 = smul.u32 4, %s25
        %s328 = smul.u32 4, %s25
        %v330 = vld [vmem:[%s288] sm:$0xff]
        %v331 = vld [vmem:[%s288 + $0x8] sm:$0xff]
        %v332 = vld [vmem:[%s288 + $0x10] sm:$0xff]
        %v333 = vld [vmem:[%s288 + $0x18] sm:$0xff]
        %v334 = vld [vmem:[%s288 + $0x20] sm:$0xff]
        %v335 = vld [vmem:[%s288 + $0x28] sm:$0xff]
        %v336 = vld [vmem:[%s288 + $0x30] sm:$0xff]
        %v337 = vld [vmem:[%s288 + $0x38] sm:$0xff]
        %338 = vadd.xlane.f32.xlu0 %v330
        %v339 = vpop.xlane.xlu0 %338
        %340 = vadd.xlane.f32.xlu0 %v331
        %v341 = vpop.xlane.xlu0 %340
        %342 = vadd.xlane.f32.xlu0 %v332
        %v343 = vpop.xlane.xlu0 %342
        %344 = vadd.xlane.f32.xlu0 %v333
        %v345 = vpop.xlane.xlu0 %344
        %346 = vadd.xlane.f32.xlu0 %v334
        %v347 = vpop.xlane.xlu0 %346
        %348 = vadd.xlane.f32.xlu0 %v335
        %v349 = vpop.xlane.xlu0 %348
        %350 = vadd.xlane.f32.xlu0 %v336
        %v351 = vpop.xlane.xlu0 %350
        %352 = vadd.xlane.f32.xlu0 %v337
        %v353 = vpop.xlane.xlu0 %352
        %v354 = vrcp.pop 128.0
        %v355 = vmul.f32 %v339, %v354
        %v356 = vmul.f32 %v341, %v354
        %v357 = vmul.f32 %v343, %v354
        %v358 = vmul.f32 %v345, %v354
        %v359 = vmul.f32 %v347, %v354
        %v360 = vmul.f32 %v349, %v354
        %v361 = vmul.f32 %v351, %v354
        %v362 = vmul.f32 %v353, %v354
        %v363 = vsub.f32 %v330, %v355
        %v364 = vsub.f32 %v331, %v356
        %v365 = vsub.f32 %v332, %v357
        %v366 = vsub.f32 %v333, %v358
        %v367 = vsub.f32 %v334, %v359
        %v368 = vsub.f32 %v335, %v360
        %v369 = vsub.f32 %v336, %v361
        %v370 = vsub.f32 %v337, %v362
        %v371 = vmul.f32 %v363, %v363
        %v372 = vmul.f32 %v364, %v364
        %v373 = vmul.f32 %v365, %v365
        %v374 = vmul.f32 %v366, %v366
        %v375 = vmul.f32 %v367, %v367
        %v376 = vmul.f32 %v368, %v368
        %v377 = vmul.f32 %v369, %v369
        %v378 = vmul.f32 %v370, %v370
        %379 = vadd.xlane.f32.xlu0 %v371
        %v380 = vpop.xlane.xlu0 %379
        %381 = vadd.xlane.f32.xlu0 %v372
        %v382 = vpop.xlane.xlu0 %381
        %383 = vadd.xlane.f32.xlu0 %v373
        %v384 = vpop.xlane.xlu0 %383
        %385 = vadd.xlane.f32.xlu0 %v374
        %v386 = vpop.xlane.xlu0 %385
        %387 = vadd.xlane.f32.xlu0 %v375
        %v388 = vpop.xlane.xlu0 %387
        %389 = vadd.xlane.f32.xlu0 %v376
        %v390 = vpop.xlane.xlu0 %389
        %391 = vadd.xlane.f32.xlu0 %v377
        %v392 = vpop.xlane.xlu0 %391
        %393 = vadd.xlane.f32.xlu0 %v378
        %v394 = vpop.xlane.xlu0 %393
        %v395 = vmul.f32 %v380, %v354
        %v396 = vmul.f32 %v382, %v354
        %v397 = vmul.f32 %v384, %v354
        %v398 = vmul.f32 %v386, %v354
        %v399 = vmul.f32 %v388, %v354
        %v400 = vmul.f32 %v390, %v354
        %v401 = vmul.f32 %v392, %v354
        %v402 = vmul.f32 %v394, %v354
        %v403 = vadd.f32 %v395, 1e-05
        %v404 = vadd.f32 %v396, 1e-05
        %v405 = vadd.f32 %v397, 1e-05
        %v406 = vadd.f32 %v398, 1e-05
        %v407 = vadd.f32 %v399, 1e-05
        %v408 = vadd.f32 %v400, 1e-05
        %v409 = vadd.f32 %v401, 1e-05
        %v410 = vadd.f32 %v402, 1e-05
        %v411 = vrsqrt.pop %v403
        %v412 = vrsqrt.pop %v404
        %v413 = vrsqrt.pop %v405
        %v414 = vrsqrt.pop %v406
        %v415 = vrsqrt.pop %v407
        %v416 = vrsqrt.pop %v408
        %v417 = vrsqrt.pop %v409
        %v418 = vrsqrt.pop %v410
        %v419 = vmul.f32 %v363, %v411
        %v420 = vmul.f32 %v364, %v412
        %v421 = vmul.f32 %v365, %v413
        %v422 = vmul.f32 %v366, %v414
        %v423 = vmul.f32 %v367, %v415
        %v424 = vmul.f32 %v368, %v416
        %v425 = vmul.f32 %v369, %v417
        %v426 = vmul.f32 %v370, %v418
        %v427 = vld [vmem:[%s1] sm:$0x1]
        %v429 = vlaneseq
        %v430 = vshrl.u32 %v429, 7
        %v431 = vsub.s32 0, %v430
        %v432 = vrot.slane %v427, %v431
        %v434 = vmul.f32 %v419, %v432
        %v435 = vmul.f32 %v420, %v432
        %v436 = vmul.f32 %v421, %v432
        %v437 = vmul.f32 %v422, %v432
        %v438 = vmul.f32 %v423, %v432
        %v439 = vmul.f32 %v424, %v432
        %v440 = vmul.f32 %v425, %v432
        %v441 = vmul.f32 %v426, %v432
        %v442 = vld [vmem:[%s2] sm:$0x1]
        %v444 = vlaneseq
        %v445 = vshrl.u32 %v444, 7
        %v446 = vsub.s32 0, %v445
        %v447 = vrot.slane %v442, %v446
        %v449 = vadd.f32 %v434, %v447
        %v450 = vadd.f32 %v435, %v447
        %v451 = vadd.f32 %v436, %v447
        %v452 = vadd.f32 %v437, %v447
        %v453 = vadd.f32 %v438, %v447
        %v454 = vadd.f32 %v439, %v447
        %v455 = vadd.f32 %v440, %v447
        %v456 = vadd.f32 %v441, %v447
        %v457 = vpack.c.bf16 %v450, %v449
        %v458 = vpack.c.bf16 %v452, %v451
        %v459 = vpack.c.bf16 %v454, %v453
        %v460 = vpack.c.bf16 %v456, %v455
        %v461 = vld [vmem:[#allocation6] sm:$0xff]
        %v462 = vld [vmem:[#allocation6 + $0x8] sm:$0xf]
        %v463 = vld [vmem:[#allocation6 + $0xc] sm:$0xff]
        %v464 = vld [vmem:[#allocation6 + $0x14] sm:$0xf]
        %v465 = vld [vmem:[#allocation6 + $0x18] sm:$0xff]
        %v466 = vld [vmem:[#allocation6 + $0x20] sm:$0xf]
        %v467 = vld [vmem:[#allocation6 + $0x24] sm:$0xff]
        %v468 = vld [vmem:[#allocation6 + $0x2c] sm:$0xf]
        %v469 = vld [vmem:[#allocation6 + $0x30] sm:$0xff]
        %v470 = vld [vmem:[#allocation6 + $0x38] sm:$0xf]
        %v471 = vld [vmem:[#allocation6 + $0x3c] sm:$0xff]
        %v472 = vld [vmem:[#allocation6 + $0x44] sm:$0xf]
        %v473 = vld [vmem:[#allocation6 + $0x48] sm:$0xff]
        %v474 = vld [vmem:[#allocation6 + $0x50] sm:$0xf]
        %v475 = vld [vmem:[#allocation6 + $0x54] sm:$0xff]
        %v476 = vld [vmem:[#allocation6 + $0x5c] sm:$0xf]
        %v477 = vld [vmem:[#allocation6 + $0x60] sm:$0xff]
        %v478 = vld [vmem:[#allocation6 + $0x68] sm:$0xf]
        %v479 = vld [vmem:[#allocation6 + $0x6c] sm:$0xff]
        %v480 = vld [vmem:[#allocation6 + $0x74] sm:$0xf]
        %v481 = vld [vmem:[#allocation6 + $0x78] sm:$0xff]
        %v482 = vld [vmem:[#allocation6 + $0x80] sm:$0xf]
        %v483 = vld [vmem:[#allocation6 + $0x84] sm:$0xff]
        %v484 = vld [vmem:[#allocation6 + $0x8c] sm:$0xf]
        %v485 = vld [vmem:[#allocation6 + $0x90] sm:$0xff]
        %v486 = vld [vmem:[#allocation6 + $0x98] sm:$0xf]
        %v487 = vld [vmem:[#allocation6 + $0x9c] sm:$0xff]
        %v488 = vld [vmem:[#allocation6 + $0xa4] sm:$0xf]
        %v489 = vld [vmem:[#allocation6 + $0xa8] sm:$0xff]
        %v490 = vld [vmem:[#allocation6 + $0xb0] sm:$0xf]
        %v491 = vld [vmem:[#allocation6 + $0xb4] sm:$0xff]
        %v492 = vld [vmem:[#allocation6 + $0xbc] sm:$0xf]
        %v493 = vld [vmem:[%s4] sm:$0x7]
        %v495 = vlaneseq
        %v496 = vshrl.u32 %v495, 7
        %v497 = vsub.s32 0, %v496
        %v498 = vrot.slane %v493, %v497
        %v499 = vlaneseq
        %v500 = vshrl.u32 %v499, 7
        %v501 = vsub.s32 1, %v500
        %v502 = vrot.slane %v493, %v501
        %v503 = vlaneseq
        %v504 = vshrl.u32 %v503, 7
        %v505 = vsub.s32 2, %v504
        %v506 = vrot.slane %v493, %v505
        %v542 = vunpack.c.l.b16 %v461
        %v543 = vunpack.c.h.b16 %v461
        %v544 = vunpack.c.l.b16 %v462
        %v545 = vunpack.c.l.b16 %v463
        %v546 = vunpack.c.h.b16 %v463
        %v547 = vunpack.c.l.b16 %v464
        %v548 = vunpack.c.l.b16 %v465
        %v549 = vunpack.c.h.b16 %v465
        %v550 = vunpack.c.l.b16 %v466
        %v551 = vunpack.c.l.b16 %v467
        %v552 = vunpack.c.h.b16 %v467
        %v553 = vunpack.c.l.b16 %v468
        %v554 = vunpack.c.l.b16 %v469
        %v555 = vunpack.c.h.b16 %v469
        %v556 = vunpack.c.l.b16 %v470
        %v557 = vunpack.c.l.b16 %v471
        %v558 = vunpack.c.h.b16 %v471
        %v559 = vunpack.c.l.b16 %v472
        %v560 = vunpack.c.l.b16 %v473
        %v561 = vunpack.c.h.b16 %v473
        %v562 = vunpack.c.l.b16 %v474
        %v563 = vunpack.c.l.b16 %v475
        %v564 = vunpack.c.h.b16 %v475
        %v565 = vunpack.c.l.b16 %v476
        %v566 = vunpack.c.l.b16 %v477
        %v567 = vunpack.c.h.b16 %v477
        %v568 = vunpack.c.l.b16 %v478
        %v569 = vunpack.c.l.b16 %v479
        %v570 = vunpack.c.h.b16 %v479
        %v571 = vunpack.c.l.b16 %v480
        %v572 = vunpack.c.l.b16 %v481
        %v573 = vunpack.c.h.b16 %v481
        %v574 = vunpack.c.l.b16 %v482
        %v575 = vunpack.c.l.b16 %v483
        %v576 = vunpack.c.h.b16 %v483
        %v577 = vunpack.c.l.b16 %v484
        %v578 = vunpack.c.l.b16 %v485
        %v579 = vunpack.c.h.b16 %v485
        %v580 = vunpack.c.l.b16 %v486
        %v581 = vunpack.c.l.b16 %v487
        %v582 = vunpack.c.h.b16 %v487
        %v583 = vunpack.c.l.b16 %v488
        %v584 = vunpack.c.l.b16 %v489
        %v585 = vunpack.c.h.b16 %v489
        %v586 = vunpack.c.l.b16 %v490
        %v587 = vunpack.c.l.b16 %v491
        %v588 = vunpack.c.h.b16 %v491
        %v589 = vunpack.c.l.b16 %v492
        %v590 = vpack.c.b16 %v545, %v542
        %v591 = vpack.c.b16 %v546, %v543
        %v592 = vpack.c.b16 %v547, %v544
        %v593 = vpack.c.b16 %v551, %v548
        %v594 = vpack.c.b16 %v552, %v549
        %v595 = vpack.c.b16 %v553, %v550
        %v596 = vpack.c.b16 %v557, %v554
        %v597 = vpack.c.b16 %v558, %v555
        %v598 = vpack.c.b16 %v559, %v556
        %v599 = vpack.c.b16 %v563, %v560
        %v600 = vpack.c.b16 %v564, %v561
        %v601 = vpack.c.b16 %v565, %v562
        %v602 = vpack.c.b16 %v569, %v566
        %v603 = vpack.c.b16 %v570, %v567
        %v604 = vpack.c.b16 %v571, %v568
        %v605 = vpack.c.b16 %v575, %v572
        %v606 = vpack.c.b16 %v576, %v573
        %v607 = vpack.c.b16 %v577, %v574
        %v608 = vpack.c.b16 %v581, %v578
        %v609 = vpack.c.b16 %v582, %v579
        %v610 = vpack.c.b16 %v583, %v580
        %v611 = vpack.c.b16 %v587, %v584
        %v612 = vpack.c.b16 %v588, %v585
        %v613 = vpack.c.b16 %v589, %v586
        %638 = vmatprep.subr.bf16.mxu0 %v591
        %639 = vmatpush1.bf16.msra.mxu0 %v590
        %640 = vmatprep.subr.bf16.mxu0 %v594
        %641 = vmatpush1.bf16.msra.mxu0 %v593
        %642 = vmatprep.subr.bf16.mxu0 %v597
        %643 = vmatpush1.bf16.msra.mxu0 %v596
        %644 = vmatprep.subr.bf16.mxu0 %v600
        %645 = vmatpush1.bf16.msra.mxu0 %v599
        %646 = vmatprep.subr.bf16.mxu0 %v603
        %647 = vmatpush1.bf16.msra.mxu0 %v602
        %648 = vmatprep.subr.bf16.mxu0 %v606
        %649 = vmatpush1.bf16.msra.mxu0 %v605
        %650 = vmatprep.subr.bf16.mxu0 %v609
        %651 = vmatpush1.bf16.msra.mxu0 %v608
        %652 = vmatprep.subr.bf16.mxu0 %v612
        %653 = vmatpush1.bf16.msra.mxu0 %v611
        %654 = vmatprep.subr.bf16.mxu0 0
        %655 = vmatpush1.bf16.msra.mxu0 0
        %656 = vmatprep.subr.bf16.mxu0 0
        %657 = vmatpush1.bf16.msra.mxu0 0
        %658 = vmatprep.subr.bf16.mxu0 0
        %659 = vmatpush1.bf16.msra.mxu0 0
        %660 = vmatprep.subr.bf16.mxu0 0
        %661 = vmatpush1.bf16.msra.mxu0 0
        %662 = vmatprep.subr.bf16.mxu0 0
        %663 = vmatpush1.bf16.msra.mxu0 0
        %664 = vmatprep.subr.bf16.mxu0 0
        %665 = vmatpush1.bf16.msra.mxu0 0
        %666 = vmatprep.subr.bf16.mxu0 0
        %667 = vmatpush1.bf16.msra.mxu0 0
        %668 = vmatprep.subr.bf16.mxu0 0
        %669 = vmatpush1.bf16.msra.mxu0 0
        %670 = vmatprep.mubr.bf16.mxu0 0
        %671 = vmatmul.mubr.bf16.gmra.mrb[0].mxu0 %v457
        %v672 = vpop.f32.mrb[0].mxu0
        %v673 = vadd.f32 %v498, %v672
        %v674 = vpop.f32.mrb[0].mxu0
        %v675 = vadd.f32 %v502, %v674
        %v676 = vpop.f32.mrb[0].mxu0
        %v677 = vadd.f32 %v498, %v676
        %v678 = vpop.f32.mrb[0].mxu0
        %v679 = vadd.f32 %v502, %v678
        %680 = vmatprep.mubr.bf16.mxu0 0
        %681 = vmatmul.mubr.bf16.gmra.mrb[0].mxu0 %v458
        %v682 = vpop.f32.mrb[0].mxu0
        %v683 = vadd.f32 %v498, %v682
        %v684 = vpop.f32.mrb[0].mxu0
        %v685 = vadd.f32 %v502, %v684
        %v686 = vpop.f32.mrb[0].mxu0
        %v687 = vadd.f32 %v498, %v686
        %v688 = vpop.f32.mrb[0].mxu0
        %v689 = vadd.f32 %v502, %v688
        %690 = vmatprep.mubr.bf16.mxu0 0
        %691 = vmatmul.mubr.bf16.gmra.mrb[0].mxu0 %v459
        %v692 = vpop.f32.mrb[0].mxu0
        %v693 = vadd.f32 %v498, %v692
        %v694 = vpop.f32.mrb[0].mxu0
        %v695 = vadd.f32 %v502, %v694
        %v696 = vpop.f32.mrb[0].mxu0
        %v697 = vadd.f32 %v498, %v696
        %v698 = vpop.f32.mrb[0].mxu0
        %v699 = vadd.f32 %v502, %v698
        %700 = vmatprep.mubr.bf16.mxu0 0
        %701 = vmatmul.mubr.bf16.gmra.mrb[0].mxu0 %v460
        %v702 = vpop.f32.mrb[0].mxu0
        %v703 = vadd.f32 %v498, %v702
        %v704 = vpop.f32.mrb[0].mxu0
        %v705 = vadd.f32 %v502, %v704
        %v706 = vpop.f32.mrb[0].mxu0
        %v707 = vadd.f32 %v498, %v706
        %v708 = vpop.f32.mrb[0].mxu0
        %v709 = vadd.f32 %v502, %v708
        %710 = vdwg.mxu0
        %711 = vmatprep.subr.bf16.mxu0 0
        %712 = vmatpush1.bf16.msra.mxu0 %v592
        %713 = vmatprep.subr.bf16.mxu0 0
        %714 = vmatpush1.bf16.msra.mxu0 %v595
        %715 = vmatprep.subr.bf16.mxu0 0
        %716 = vmatpush1.bf16.msra.mxu0 %v598
        %717 = vmatprep.subr.bf16.mxu0 0
        %718 = vmatpush1.bf16.msra.mxu0 %v601
        %719 = vmatprep.subr.bf16.mxu0 0
        %720 = vmatpush1.bf16.msra.mxu0 %v604
        %721 = vmatprep.subr.bf16.mxu0 0
        %722 = vmatpush1.bf16.msra.mxu0 %v607
        %723 = vmatprep.subr.bf16.mxu0 0
        %724 = vmatpush1.bf16.msra.mxu0 %v610
        %725 = vmatprep.subr.bf16.mxu0 0
        %726 = vmatpush1.bf16.msra.mxu0 %v613
        %727 = vmatprep.subr.bf16.mxu0 0
        %728 = vmatpush1.bf16.msra.mxu0 0
        %729 = vmatprep.subr.bf16.mxu0 0
        %730 = vmatpush1.bf16.msra.mxu0 0
        %731 = vmatprep.subr.bf16.mxu0 0
        %732 = vmatpush1.bf16.msra.mxu0 0
        %733 = vmatprep.subr.bf16.mxu0 0
        %734 = vmatpush1.bf16.msra.mxu0 0
        %735 = vmatprep.subr.bf16.mxu0 0
        %736 = vmatpush1.bf16.msra.mxu0 0
        %737 = vmatprep.subr.bf16.mxu0 0
        %738 = vmatpush1.bf16.msra.mxu0 0
        %739 = vmatprep.subr.bf16.mxu0 0
        %740 = vmatpush1.bf16.msra.mxu0 0
        %741 = vmatprep.subr.bf16.mxu0 0
        %742 = vmatpush1.bf16.msra.mxu0 0
        %743 = vmatprep.mubr.bf16.mxu0 0
        %744 = vmatmul.mubr.bf16.gmra.mrb[0].mxu0 %v457
        %v745 = vpop.f32.mrb[0].mxu0
        %v746 = vadd.f32 %v506, %v745
        %v747 = vpop.f32.mrb[0].mxu0
        %v748 = vpop.f32.mrb[0].mxu0
        %v749 = vadd.f32 %v506, %v748
        %v750 = vpop.f32.mrb[0].mxu0
        %751 = vmatprep.mubr.bf16.mxu0 0
        %752 = vmatmul.mubr.bf16.gmra.mrb[0].mxu0 %v458
        %v753 = vpop.f32.mrb[0].mxu0
        %v754 = vadd.f32 %v506, %v753
        %v755 = vpop.f32.mrb[0].mxu0
        %v756 = vpop.f32.mrb[0].mxu0
        %v757 = vadd.f32 %v506, %v756
        %v758 = vpop.f32.mrb[0].mxu0
        %759 = vmatprep.mubr.bf16.mxu0 0
        %760 = vmatmul.mubr.bf16.gmra.mrb[0].mxu0 %v459
        %v761 = vpop.f32.mrb[0].mxu0
        %v762 = vadd.f32 %v506, %v761
        %v763 = vpop.f32.mrb[0].mxu0
        %v764 = vpop.f32.mrb[0].mxu0
        %v765 = vadd.f32 %v506, %v764
        %v766 = vpop.f32.mrb[0].mxu0
        %767 = vmatprep.mubr.bf16.mxu0 0
        %768 = vmatmul.mubr.bf16.gmra.mrb[0].mxu0 %v460
        %v769 = vpop.f32.mrb[0].mxu0
        %v770 = vadd.f32 %v506, %v769
        %v771 = vpop.f32.mrb[0].mxu0
        %v772 = vpop.f32.mrb[0].mxu0
        %v773 = vadd.f32 %v506, %v772
        %v774 = vpop.f32.mrb[0].mxu0
        %775 = vdwg.mxu0
        %v776 = vpack.c.bf16 %v677, %v673
        %v777 = vpack.c.bf16 %v679, %v675
        %v778 = vpack.c.bf16 %v749, %v746
        %vm779 = vcmask 261120
        %v781 = vsel %vm779, %v776, 0
        %v784 = vsel %vm779, %v777, 0
        %786 = vmatprep.subr.bf16.mxu0 0
        %787 = vmatpush1.bf16.xpose.msra.mxu0 %v784
        %788 = vmatprep.subr.bf16.mxu0 0
        %789 = vmatpush1.bf16.xpose.msra.mxu0 0
        %790 = vmatprep.subr.bf16.mxu0 0
        %791 = vmatpush1.bf16.xpose.msra.mxu0 0
        %792 = vmatprep.subr.bf16.mxu0 0
        %793 = vmatpush1.bf16.xpose.msra.mxu0 0
        %794 = vmatprep.subr.bf16.mxu0 0
        %795 = vmatpush1.bf16.xpose.msra.mxu0 0
        %796 = vmatprep.subr.bf16.mxu0 0
        %797 = vmatpush1.bf16.xpose.msra.mxu0 0
        %798 = vmatprep.subr.bf16.mxu0 0
        %799 = vmatpush1.bf16.xpose.msra.mxu0 0
        %800 = vmatprep.subr.bf16.mxu0 0
        %801 = vmatpush1.bf16.xpose.msra.mxu0 0
        %802 = vmatprep.subr.bf16.mxu0 0
        %803 = vmatpush1.bf16.xpose.msra.mxu0 0
        %804 = vmatprep.subr.bf16.mxu0 0
        %805 = vmatpush1.bf16.xpose.msra.mxu0 0
        %806 = vmatprep.subr.bf16.mxu0 0
        %807 = vmatpush1.bf16.xpose.msra.mxu0 0
        %808 = vmatprep.subr.bf16.mxu0 0
        %809 = vmatpush1.bf16.xpose.msra.mxu0 0
        %810 = vmatprep.subr.bf16.mxu0 0
        %811 = vmatpush1.bf16.xpose.msra.mxu0 0
        %812 = vmatprep.subr.bf16.mxu0 0
        %813 = vmatpush1.bf16.xpose.msra.mxu0 0
        %814 = vmatprep.subr.bf16.mxu0 0
        %815 = vmatpush1.bf16.xpose.msra.mxu0 0
        %816 = vmatprep.subr.bf16.mxu0 0
        %817 = vmatpush1.bf16.xpose.msra.mxu0 0
        %818 = vmatprep.mubr.bf16.mxu0 0
        %819 = vmatmul.mubr.bf16.gmra.mrb[0].mxu0 %v781
        %v820 = vpop.f32.mrb[0].mxu0
        %v821 = vadd.f32 0.0, %v820
        %v822 = vpop.f32.mrb[0].mxu0
        %v823 = vpop.f32.mrb[0].mxu0
        %v824 = vadd.f32 0.0, %v823
        %v825 = vpop.f32.mrb[0].mxu0
        %826 = vdwg.mxu0
        %vm827 = vcmask 130048
        %v828 = vsel %vm827, %v821, -inf
        %829 = vmax.xlane.f32.xlu0 %v828
        %v830 = vpop.xlane.xlu0 %829
        %v831 = vsel %vm827, %v824, -inf
        %832 = vmax.xlane.f32.xlu0 %v831
        %v833 = vpop.xlane.xlu0 %832
        %v834 = vsub.f32 %v821, %v830
        %v835 = vsub.f32 %v824, %v833
        %v836 = vmul.f32 %v834, 1.442695
        %v837 = vpow.pop %v836
        %v838 = vmul.f32 %v835, 1.442695
        %v839 = vpow.pop %v838
        %v840 = vsel %vm827, %v837, 0.0
        %841 = vadd.xlane.f32.xlu0 %v840
        %v842 = vpop.xlane.xlu0 %841
        %v843 = vsel %vm827, %v839, 0.0
        %844 = vadd.xlane.f32.xlu0 %v843
        %v845 = vpop.xlane.xlu0 %844
        %v846 = vrcp.pop %v842
        %v847 = vrcp.pop %v845
        %v848 = vmul.f32 %v837, %v846
        %v849 = vmul.f32 %v839, %v847
        %v850 = vpack.c.bf16 %v849, %v848
        %v852 = vsel %vm827, %v850, 0
        %854 = vmatprep.subr.bf16.mxu0 0
        %855 = vmatpush1.bf16.msra.mxu0 %v778
        %856 = vmatprep.subr.bf16.mxu0 0
        %857 = vmatpush1.bf16.msra.mxu0 0
        %858 = vmatprep.subr.bf16.mxu0 0
        %859 = vmatpush1.bf16.msra.mxu0 0
        %860 = vmatprep.subr.bf16.mxu0 0
        %861 = vmatpush1.bf16.msra.mxu0 0
        %862 = vmatprep.subr.bf16.mxu0 0
        %863 = vmatpush1.bf16.msra.mxu0 0
        %864 = vmatprep.subr.bf16.mxu0 0
        %865 = vmatpush1.bf16.msra.mxu0 0
        %866 = vmatprep.subr.bf16.mxu0 0
        %867 = vmatpush1.bf16.msra.mxu0 0
        %868 = vmatprep.subr.bf16.mxu0 0
        %869 = vmatpush1.bf16.msra.mxu0 0
        %870 = vmatprep.subr.bf16.mxu0 0
        %871 = vmatpush1.bf16.msra.mxu0 0
        %872 = vmatprep.subr.bf16.mxu0 0
        %873 = vmatpush1.bf16.msra.mxu0 0
        %874 = vmatprep.subr.bf16.mxu0 0
        %875 = vmatpush1.bf16.msra.mxu0 0
        %876 = vmatprep.subr.bf16.mxu0 0
        %877 = vmatpush1.bf16.msra.mxu0 0
        %878 = vmatprep.subr.bf16.mxu0 0
        %879 = vmatpush1.bf16.msra.mxu0 0
        %880 = vmatprep.subr.bf16.mxu0 0
        %881 = vmatpush1.bf16.msra.mxu0 0
        %882 = vmatprep.subr.bf16.mxu0 0
        %883 = vmatpush1.bf16.msra.mxu0 0
        %884 = vmatprep.subr.bf16.mxu0 0
        %885 = vmatpush1.bf16.msra.mxu0 0
        %886 = vmatprep.mubr.bf16.mxu0 0
        %887 = vmatmul.mubr.bf16.gmra.mrb[0].mxu0 %v852
        %v888 = vpop.f32.mrb[0].mxu0
        %v889 = vadd.f32 0.0, %v888
        %v890 = vpop.f32.mrb[0].mxu0
        %v891 = vpop.f32.mrb[0].mxu0
        %v892 = vadd.f32 0.0, %v891
        %v893 = vpop.f32.mrb[0].mxu0
        %894 = vdwg.mxu0
        %895 = vst.msk [vmem:[#allocation2] sm:$0xff] %vm779, %v889
        %896 = vst.msk [vmem:[#allocation2 + $0x8] sm:$0xff] %vm779, %v892
        %898 = vrot.lane.b32.xlu0 %v776, 96
        %v899 = vpop.permute.xlu0 %898
        %901 = vrot.lane.b32.xlu0 %v777, 96
        %v902 = vpop.permute.xlu0 %901
        %v904 = vsel %vm779, %v899, 0
        %v907 = vsel %vm779, %v902, 0
        %909 = vmatprep.subr.bf16.mxu0 0
        %910 = vmatpush1.bf16.xpose.msra.mxu0 %v907
        %911 = vmatprep.subr.bf16.mxu0 0
        %912 = vmatpush1.bf16.xpose.msra.mxu0 0
        %913 = vmatprep.subr.bf16.mxu0 0
        %914 = vmatpush1.bf16.xpose.msra.mxu0 0
        %915 = vmatprep.subr.bf16.mxu0 0
        %916 = vmatpush1.bf16.xpose.msra.mxu0 0
        %917 = vmatprep.subr.bf16.mxu0 0
        %918 = vmatpush1.bf16.xpose.msra.mxu0 0
        %919 = vmatprep.subr.bf16.mxu0 0
        %920 = vmatpush1.bf16.xpose.msra.mxu0 0
        %921 = vmatprep.subr.bf16.mxu0 0
        %922 = vmatpush1.bf16.xpose.msra.mxu0 0
        %923 = vmatprep.subr.bf16.mxu0 0
        %924 = vmatpush1.bf16.xpose.msra.mxu0 0
        %925 = vmatprep.subr.bf16.mxu0 0
        %926 = vmatpush1.bf16.xpose.msra.mxu0 0
        %927 = vmatprep.subr.bf16.mxu0 0
        %928 = vmatpush1.bf16.xpose.msra.mxu0 0
        %929 = vmatprep.subr.bf16.mxu0 0
        %930 = vmatpush1.bf16.xpose.msra.mxu0 0
        %931 = vmatprep.subr.bf16.mxu0 0
        %932 = vmatpush1.bf16.xpose.msra.mxu0 0
        %933 = vmatprep.subr.bf16.mxu0 0
        %934 = vmatpush1.bf16.xpose.msra.mxu0 0
        %935 = vmatprep.subr.bf16.mxu0 0
        %936 = vmatpush1.bf16.xpose.msra.mxu0 0
        %937 = vmatprep.subr.bf16.mxu0 0
        %938 = vmatpush1.bf16.xpose.msra.mxu0 0
        %939 = vmatprep.subr.bf16.mxu0 0
        %940 = vmatpush1.bf16.xpose.msra.mxu0 0
        %941 = vmatprep.mubr.bf16.mxu0 0
        %942 = vmatmul.mubr.bf16.gmra.mrb[0].mxu0 %v904
        %v943 = vpop.f32.mrb[0].mxu0
        %v944 = vadd.f32 0.0, %v943
        %v945 = vpop.f32.mrb[0].mxu0
        %v946 = vpop.f32.mrb[0].mxu0
        %v947 = vadd.f32 0.0, %v946
        %v948 = vpop.f32.mrb[0].mxu0
        %949 = vdwg.mxu0
        %v950 = vsel %vm827, %v944, -inf
        %951 = vmax.xlane.f32.xlu0 %v950
        %v952 = vpop.xlane.xlu0 %951
        %v953 = vsel %vm827, %v947, -inf
        %954 = vmax.xlane.f32.xlu0 %v953
        %v955 = vpop.xlane.xlu0 %954
        %v956 = vsub.f32 %v944, %v952
        %v957 = vsub.f32 %v947, %v955
        %v958 = vmul.f32 %v956, 1.442695
        %v959 = vpow.pop %v958
        %v960 = vmul.f32 %v957, 1.442695
        %v961 = vpow.pop %v960
        %v962 = vsel %vm827, %v959, 0.0
        %963 = vadd.xlane.f32.xlu0 %v962
        %v964 = vpop.xlane.xlu0 %963
        %v965 = vsel %vm827, %v961, 0.0
        %966 = vadd.xlane.f32.xlu0 %v965
        %v967 = vpop.xlane.xlu0 %966
        %v968 = vrcp.pop %v964
        %v969 = vrcp.pop %v967
        %v970 = vmul.f32 %v959, %v968
        %v971 = vmul.f32 %v961, %v969
        %v972 = vpack.c.bf16 %v971, %v970
        %974 = vrot.lane.b32.xlu0 %v778, 96
        %v975 = vpop.permute.xlu0 %974
        %v978 = vsel %vm827, %v972, 0
        %980 = vmatprep.subr.bf16.mxu0 0
        %981 = vmatpush1.bf16.msra.mxu0 %v975
        %982 = vmatprep.subr.bf16.mxu0 0
        %983 = vmatpush1.bf16.msra.mxu0 0
        %984 = vmatprep.subr.bf16.mxu0 0
        %985 = vmatpush1.bf16.msra.mxu0 0
        %986 = vmatprep.subr.bf16.mxu0 0
        %987 = vmatpush1.bf16.msra.mxu0 0
        %988 = vmatprep.subr.bf16.mxu0 0
        %989 = vmatpush1.bf16.msra.mxu0 0
        %990 = vmatprep.subr.bf16.mxu0 0
        %991 = vmatpush1.bf16.msra.mxu0 0
        %992 = vmatprep.subr.bf16.mxu0 0
        %993 = vmatpush1.bf16.msra.mxu0 0
        %994 = vmatprep.subr.bf16.mxu0 0
        %995 = vmatpush1.bf16.msra.mxu0 0
        %996 = vmatprep.subr.bf16.mxu0 0
        %997 = vmatpush1.bf16.msra.mxu0 0
        %998 = vmatprep.subr.bf16.mxu0 0
        %999 = vmatpush1.bf16.msra.mxu0 0
        %1000 = vmatprep.subr.bf16.mxu0 0
        %1001 = vmatpush1.bf16.msra.mxu0 0
        %1002 = vmatprep.subr.bf16.mxu0 0
        %1003 = vmatpush1.bf16.msra.mxu0 0
        %1004 = vmatprep.subr.bf16.mxu0 0
        %1005 = vmatpush1.bf16.msra.mxu0 0
        %1006 = vmatprep.subr.bf16.mxu0 0
        %1007 = vmatpush1.bf16.msra.mxu0 0
        %1008 = vmatprep.subr.bf16.mxu0 0
        %1009 = vmatpush1.bf16.msra.mxu0 0
        %1010 = vmatprep.subr.bf16.mxu0 0
        %1011 = vmatpush1.bf16.msra.mxu0 0
        %1012 = vmatprep.mubr.bf16.mxu0 0
        %1013 = vmatmul.mubr.bf16.gmra.mrb[0].mxu0 %v978
        %v1014 = vpop.f32.mrb[0].mxu0
        %v1015 = vadd.f32 0.0, %v1014
        %v1016 = vpop.f32.mrb[0].mxu0
        %v1017 = vpop.f32.mrb[0].mxu0
        %v1018 = vadd.f32 0.0, %v1017
        %v1019 = vpop.f32.mrb[0].mxu0
        %1020 = vdwg.mxu0
        %1023 = vrot.lane.b32.xlu0 %v1015, 32
        %v1024 = vpop.permute.xlu0 %1023
        %1025 = vrot.lane.b32.xlu0 %v1018, 32
        %v1026 = vpop.permute.xlu0 %1025
        %vm1029 = vcmask 523520
        %1030 = vst.msk [vmem:[#allocation2] sm:$0xff] %vm1029, %v1024
        %1031 = vst.msk [vmem:[#allocation2 + $0x8] sm:$0xff] %vm1029, %v1026
        %1032 = vrot.lane.b32.xlu0 %v776, 64
        %v1033 = vpop.permute.xlu0 %1032
        %1034 = vrot.lane.b32.xlu0 %v777, 64
        %v1035 = vpop.permute.xlu0 %1034
        %v1037 = vsel %vm779, %v1033, 0
        %v1040 = vsel %vm779, %v1035, 0
        %1042 = vmatprep.subr.bf16.mxu0 0
        %1043 = vmatpush1.bf16.xpose.msra.mxu0 %v1040
        %1044 = vmatprep.subr.bf16.mxu0 0
        %1045 = vmatpush1.bf16.xpose.msra.mxu0 0
        %1046 = vmatprep.subr.bf16.mxu0 0
        %1047 = vmatpush1.bf16.xpose.msra.mxu0 0
        %1048 = vmatprep.subr.bf16.mxu0 0
        %1049 = vmatpush1.bf16.xpose.msra.mxu0 0
        %1050 = vmatprep.subr.bf16.mxu0 0
        %1051 = vmatpush1.bf16.xpose.msra.mxu0 0
        %1052 = vmatprep.subr.bf16.mxu0 0
        %1053 = vmatpush1.bf16.xpose.msra.mxu0 0
        %1054 = vmatprep.subr.bf16.mxu0 0
        %1055 = vmatpush1.bf16.xpose.msra.mxu0 0
        %1056 = vmatprep.subr.bf16.mxu0 0
        %1057 = vmatpush1.bf16.xpose.msra.mxu0 0
        %1058 = vmatprep.subr.bf16.mxu0 0
        %1059 = vmatpush1.bf16.xpose.msra.mxu0 0
        %1060 = vmatprep.subr.bf16.mxu0 0
        %1061 = vmatpush1.bf16.xpose.msra.mxu0 0
        %1062 = vmatprep.subr.bf16.mxu0 0
        %1063 = vmatpush1.bf16.xpose.msra.mxu0 0
        %1064 = vmatprep.subr.bf16.mxu0 0
        %1065 = vmatpush1.bf16.xpose.msra.mxu0 0
        %1066 = vmatprep.subr.bf16.mxu0 0
        %1067 = vmatpush1.bf16.xpose.msra.mxu0 0
        %1068 = vmatprep.subr.bf16.mxu0 0
        %1069 = vmatpush1.bf16.xpose.msra.mxu0 0
        %1070 = vmatprep.subr.bf16.mxu0 0
        %1071 = vmatpush1.bf16.xpose.msra.mxu0 0
        %1072 = vmatprep.subr.bf16.mxu0 0
        %1073 = vmatpush1.bf16.xpose.msra.mxu0 0
        %1074 = vmatprep.mubr.bf16.mxu0 0
        %1075 = vmatmul.mubr.bf16.gmra.mrb[0].mxu0 %v1037
        %v1076 = vpop.f32.mrb[0].mxu0
        %v1077 = vadd.f32 0.0, %v1076
        %v1078 = vpop.f32.mrb[0].mxu0
        %v1079 = vpop.f32.mrb[0].mxu0
        %v1080 = vadd.f32 0.0, %v1079
        %v1081 = vpop.f32.mrb[0].mxu0
        %1082 = vdwg.mxu0
        %v1083 = vsel %vm827, %v1077, -inf
        %1084 = vmax.xlane.f32.xlu0 %v1083
        %v1085 = vpop.xlane.xlu0 %1084
        %v1086 = vsel %vm827, %v1080, -inf
        %1087 = vmax.xlane.f32.xlu0 %v1086
        %v1088 = vpop.xlane.xlu0 %1087
        %v1089 = vsub.f32 %v1077, %v1085
        %v1090 = vsub.f32 %v1080, %v1088
        %v1091 = vmul.f32 %v1089, 1.442695
        %v1092 = vpow.pop %v1091
        %v1093 = vmul.f32 %v1090, 1.442695
        %v1094 = vpow.pop %v1093
        %v1095 = vsel %vm827, %v1092, 0.0
        %1096 = vadd.xlane.f32.xlu0 %v1095
        %v1097 = vpop.xlane.xlu0 %1096
        %v1098 = vsel %vm827, %v1094, 0.0
        %1099 = vadd.xlane.f32.xlu0 %v1098
        %v1100 = vpop.xlane.xlu0 %1099
        %v1101 = vrcp.pop %v1097
        %v1102 = vrcp.pop %v1100
        %v1103 = vmul.f32 %v1092, %v1101
        %v1104 = vmul.f32 %v1094, %v1102
        %v1105 = vpack.c.bf16 %v1104, %v1103
        %1106 = vrot.lane.b32.xlu0 %v778, 64
        %v1107 = vpop.permute.xlu0 %1106
        %v1110 = vsel %vm827, %v1105, 0
        %1112 = vmatprep.subr.bf16.mxu0 0
        %1113 = vmatpush1.bf16.msra.mxu0 %v1107
        %1114 = vmatprep.subr.bf16.mxu0 0
        %1115 = vmatpush1.bf16.msra.mxu0 0
        %1116 = vmatprep.subr.bf16.mxu0 0
        %1117 = vmatpush1.bf16.msra.mxu0 0
        %1118 = vmatprep.subr.bf16.mxu0 0
        %1119 = vmatpush1.bf16.msra.mxu0 0
        %1120 = vmatprep.subr.bf16.mxu0 0
        %1121 = vmatpush1.bf16.msra.mxu0 0
        %1122 = vmatprep.subr.bf16.mxu0 0
        %1123 = vmatpush1.bf16.msra.mxu0 0
        %1124 = vmatprep.subr.bf16.mxu0 0
        %1125 = vmatpush1.bf16.msra.mxu0 0
        %1126 = vmatprep.subr.bf16.mxu0 0
        %1127 = vmatpush1.bf16.msra.mxu0 0
        %1128 = vmatprep.subr.bf16.mxu0 0
        %1129 = vmatpush1.bf16.msra.mxu0 0
        %1130 = vmatprep.subr.bf16.mxu0 0
        %1131 = vmatpush1.bf16.msra.mxu0 0
        %1132 = vmatprep.subr.bf16.mxu0 0
        %1133 = vmatpush1.bf16.msra.mxu0 0
        %1134 = vmatprep.subr.bf16.mxu0 0
        %1135 = vmatpush1.bf16.msra.mxu0 0
        %1136 = vmatprep.subr.bf16.mxu0 0
        %1137 = vmatpush1.bf16.msra.mxu0 0
        %1138 = vmatprep.subr.bf16.mxu0 0
        %1139 = vmatpush1.bf16.msra.mxu0 0
        %1140 = vmatprep.subr.bf16.mxu0 0
        %1141 = vmatpush1.bf16.msra.mxu0 0
        %1142 = vmatprep.subr.bf16.mxu0 0
        %1143 = vmatpush1.bf16.msra.mxu0 0
        %1144 = vmatprep.mubr.bf16.mxu0 0
        %1145 = vmatmul.mubr.bf16.gmra.mrb[0].mxu0 %v1110
        %v1146 = vpop.f32.mrb[0].mxu0
        %v1147 = vadd.f32 0.0, %v1146
        %v1148 = vpop.f32.mrb[0].mxu0
        %v1149 = vpop.f32.mrb[0].mxu0
        %v1150 = vadd.f32 0.0, %v1149
        %v1151 = vpop.f32.mrb[0].mxu0
        %1152 = vdwg.mxu0
        %1155 = vrot.lane.b32.xlu0 %v1147, 64
        %v1156 = vpop.permute.xlu0 %1155
        %1157 = vrot.lane.b32.xlu0 %v1150, 64
        %v1158 = vpop.permute.xlu0 %1157
        %vm1161 = vcmask 785920
        %1162 = vst.msk [vmem:[#allocation2] sm:$0xff] %vm1161, %v1156
        %1163 = vst.msk [vmem:[#allocation2 + $0x8] sm:$0xff] %vm1161, %v1158
        %1164 = vrot.lane.b32.xlu0 %v776, 32
        %v1165 = vpop.permute.xlu0 %1164
        %1166 = vrot.lane.b32.xlu0 %v777, 32
        %v1167 = vpop.permute.xlu0 %1166
        %v1169 = vsel %vm779, %v1165, 0
        %v1172 = vsel %vm779, %v1167, 0
        %1174 = vmatprep.subr.bf16.mxu0 0
        %1175 = vmatpush1.bf16.xpose.msra.mxu0 %v1172
        %1176 = vmatprep.subr.bf16.mxu0 0
        %1177 = vmatpush1.bf16.xpose.msra.mxu0 0
        %1178 = vmatprep.subr.bf16.mxu0 0
        %1179 = vmatpush1.bf16.xpose.msra.mxu0 0
        %1180 = vmatprep.subr.bf16.mxu0 0
        %1181 = vmatpush1.bf16.xpose.msra.mxu0 0
        %1182 = vmatprep.subr.bf16.mxu0 0
        %1183 = vmatpush1.bf16.xpose.msra.mxu0 0
        %1184 = vmatprep.subr.bf16.mxu0 0
        %1185 = vmatpush1.bf16.xpose.msra.mxu0 0
        %1186 = vmatprep.subr.bf16.mxu0 0
        %1187 = vmatpush1.bf16.xpose.msra.mxu0 0
        %1188 = vmatprep.subr.bf16.mxu0 0
        %1189 = vmatpush1.bf16.xpose.msra.mxu0 0
        %1190 = vmatprep.subr.bf16.mxu0 0
        %1191 = vmatpush1.bf16.xpose.msra.mxu0 0
        %1192 = vmatprep.subr.bf16.mxu0 0
        %1193 = vmatpush1.bf16.xpose.msra.mxu0 0
        %1194 = vmatprep.subr.bf16.mxu0 0
        %1195 = vmatpush1.bf16.xpose.msra.mxu0 0
        %1196 = vmatprep.subr.bf16.mxu0 0
        %1197 = vmatpush1.bf16.xpose.msra.mxu0 0
        %1198 = vmatprep.subr.bf16.mxu0 0
        %1199 = vmatpush1.bf16.xpose.msra.mxu0 0
        %1200 = vmatprep.subr.bf16.mxu0 0
        %1201 = vmatpush1.bf16.xpose.msra.mxu0 0
        %1202 = vmatprep.subr.bf16.mxu0 0
        %1203 = vmatpush1.bf16.xpose.msra.mxu0 0
        %1204 = vmatprep.subr.bf16.mxu0 0
        %1205 = vmatpush1.bf16.xpose.msra.mxu0 0
        %1206 = vmatprep.mubr.bf16.mxu0 0
        %1207 = vmatmul.mubr.bf16.gmra.mrb[0].mxu0 %v1169
        %v1208 = vpop.f32.mrb[0].mxu0
        %v1209 = vadd.f32 0.0, %v1208
        %v1210 = vpop.f32.mrb[0].mxu0
        %v1211 = vpop.f32.mrb[0].mxu0
        %v1212 = vadd.f32 0.0, %v1211
        %v1213 = vpop.f32.mrb[0].mxu0
        %1214 = vdwg.mxu0
        %v1215 = vsel %vm827, %v1209, -inf
        %1216 = vmax.xlane.f32.xlu0 %v1215
        %v1217 = vpop.xlane.xlu0 %1216
        %v1218 = vsel %vm827, %v1212, -inf
        %1219 = vmax.xlane.f32.xlu0 %v1218
        %v1220 = vpop.xlane.xlu0 %1219
        %v1221 = vsub.f32 %v1209, %v1217
        %v1222 = vsub.f32 %v1212, %v1220
        %v1223 = vmul.f32 %v1221, 1.442695
        %v1224 = vpow.pop %v1223
        %v1225 = vmul.f32 %v1222, 1.442695
        %v1226 = vpow.pop %v1225
        %v1227 = vsel %vm827, %v1224, 0.0
        %1228 = vadd.xlane.f32.xlu0 %v1227
        %v1229 = vpop.xlane.xlu0 %1228
        %v1230 = vsel %vm827, %v1226, 0.0
        %1231 = vadd.xlane.f32.xlu0 %v1230
        %v1232 = vpop.xlane.xlu0 %1231
        %v1233 = vrcp.pop %v1229
        %v1234 = vrcp.pop %v1232
        %v1235 = vmul.f32 %v1224, %v1233
        %v1236 = vmul.f32 %v1226, %v1234
        %v1237 = vpack.c.bf16 %v1236, %v1235
        %1238 = vrot.lane.b32.xlu0 %v778, 32
        %v1239 = vpop.permute.xlu0 %1238
        %v1242 = vsel %vm827, %v1237, 0
        %1244 = vmatprep.subr.bf16.mxu0 0
        %1245 = vmatpush1.bf16.msra.mxu0 %v1239
        %1246 = vmatprep.subr.bf16.mxu0 0
        %1247 = vmatpush1.bf16.msra.mxu0 0
        %1248 = vmatprep.subr.bf16.mxu0 0
        %1249 = vmatpush1.bf16.msra.mxu0 0
        %1250 = vmatprep.subr.bf16.mxu0 0
        %1251 = vmatpush1.bf16.msra.mxu0 0
        %1252 = vmatprep.subr.bf16.mxu0 0
        %1253 = vmatpush1.bf16.msra.mxu0 0
        %1254 = vmatprep.subr.bf16.mxu0 0
        %1255 = vmatpush1.bf16.msra.mxu0 0
        %1256 = vmatprep.subr.bf16.mxu0 0
        %1257 = vmatpush1.bf16.msra.mxu0 0
        %1258 = vmatprep.subr.bf16.mxu0 0
        %1259 = vmatpush1.bf16.msra.mxu0 0
        %1260 = vmatprep.subr.bf16.mxu0 0
        %1261 = vmatpush1.bf16.msra.mxu0 0
        %1262 = vmatprep.subr.bf16.mxu0 0
        %1263 = vmatpush1.bf16.msra.mxu0 0
        %1264 = vmatprep.subr.bf16.mxu0 0
        %1265 = vmatpush1.bf16.msra.mxu0 0
        %1266 = vmatprep.subr.bf16.mxu0 0
        %1267 = vmatpush1.bf16.msra.mxu0 0
        %1268 = vmatprep.subr.bf16.mxu0 0
        %1269 = vmatpush1.bf16.msra.mxu0 0
        %1270 = vmatprep.subr.bf16.mxu0 0
        %1271 = vmatpush1.bf16.msra.mxu0 0
        %1272 = vmatprep.subr.bf16.mxu0 0
        %1273 = vmatpush1.bf16.msra.mxu0 0
        %1274 = vmatprep.subr.bf16.mxu0 0
        %1275 = vmatpush1.bf16.msra.mxu0 0
        %1276 = vmatprep.mubr.bf16.mxu0 0
        %1277 = vmatmul.mubr.bf16.gmra.mrb[0].mxu0 %v1242
        %v1278 = vpop.f32.mrb[0].mxu0
        %v1279 = vadd.f32 0.0, %v1278
        %v1280 = vpop.f32.mrb[0].mxu0
        %v1281 = vpop.f32.mrb[0].mxu0
        %v1282 = vadd.f32 0.0, %v1281
        %v1283 = vpop.f32.mrb[0].mxu0
        %1284 = vdwg.mxu0
        %1287 = vrot.lane.b32.xlu0 %v1279, 96
        %v1288 = vpop.permute.xlu0 %1287
        %1289 = vrot.lane.b32.xlu0 %v1282, 96
        %v1290 = vpop.permute.xlu0 %1289
        %vm1293 = vcmask 1048320
        %1294 = vst.msk [vmem:[#allocation2] sm:$0xff] %vm1293, %v1288
        %1295 = vst.msk [vmem:[#allocation2 + $0x8] sm:$0xff] %vm1293, %v1290
        %v1296 = vpack.c.bf16 %v687, %v683
        %v1297 = vpack.c.bf16 %v689, %v685
        %v1298 = vpack.c.bf16 %v757, %v754
        %v1300 = vsel %vm779, %v1296, 0
        %v1303 = vsel %vm779, %v1297, 0
        %1305 = vmatprep.subr.bf16.mxu0 0
        %1306 = vmatpush1.bf16.xpose.msra.mxu0 %v1303
        %1307 = vmatprep.subr.bf16.mxu0 0
        %1308 = vmatpush1.bf16.xpose.msra.mxu0 0
        %1309 = vmatprep.subr.bf16.mxu0 0
        %1310 = vmatpush1.bf16.xpose.msra.mxu0 0
        %1311 = vmatprep.subr.bf16.mxu0 0
        %1312 = vmatpush1.bf16.xpose.msra.mxu0 0
        %1313 = vmatprep.subr.bf16.mxu0 0
        %1314 = vmatpush1.bf16.xpose.msra.mxu0 0
        %1315 = vmatprep.subr.bf16.mxu0 0
        %1316 = vmatpush1.bf16.xpose.msra.mxu0 0
        %1317 = vmatprep.subr.bf16.mxu0 0
        %1318 = vmatpush1.bf16.xpose.msra.mxu0 0
        %1319 = vmatprep.subr.bf16.mxu0 0
        %1320 = vmatpush1.bf16.xpose.msra.mxu0 0
        %1321 = vmatprep.subr.bf16.mxu0 0
        %1322 = vmatpush1.bf16.xpose.msra.mxu0 0
        %1323 = vmatprep.subr.bf16.mxu0 0
        %1324 = vmatpush1.bf16.xpose.msra.mxu0 0
        %1325 = vmatprep.subr.bf16.mxu0 0
        %1326 = vmatpush1.bf16.xpose.msra.mxu0 0
        %1327 = vmatprep.subr.bf16.mxu0 0
        %1328 = vmatpush1.bf16.xpose.msra.mxu0 0
        %1329 = vmatprep.subr.bf16.mxu0 0
        %1330 = vmatpush1.bf16.xpose.msra.mxu0 0
        %1331 = vmatprep.subr.bf16.mxu0 0
        %1332 = vmatpush1.bf16.xpose.msra.mxu0 0
        %1333 = vmatprep.subr.bf16.mxu0 0
        %1334 = vmatpush1.bf16.xpose.msra.mxu0 0
        %1335 = vmatprep.subr.bf16.mxu0 0
        %1336 = vmatpush1.bf16.xpose.msra.mxu0 0
        %1337 = vmatprep.mubr.bf16.mxu0 0
        %1338 = vmatmul.mubr.bf16.gmra.mrb[0].mxu0 %v1300
        %v1339 = vpop.f32.mrb[0].mxu0
        %v1340 = vadd.f32 0.0, %v1339
        %v1341 = vpop.f32.mrb[0].mxu0
        %v1342 = vpop.f32.mrb[0].mxu0
        %v1343 = vadd.f32 0.0, %v1342
        %v1344 = vpop.f32.mrb[0].mxu0
        %1345 = vdwg.mxu0
        %v1346 = vsel %vm827, %v1340, -inf
        %1347 = vmax.xlane.f32.xlu0 %v1346
        %v1348 = vpop.xlane.xlu0 %1347
        %v1349 = vsel %vm827, %v1343, -inf
        %1350 = vmax.xlane.f32.xlu0 %v1349
        %v1351 = vpop.xlane.xlu0 %1350
        %v1352 = vsub.f32 %v1340, %v1348
        %v1353 = vsub.f32 %v1343, %v1351
        %v1354 = vmul.f32 %v1352, 1.442695
        %v1355 = vpow.pop %v1354
        %v1356 = vmul.f32 %v1353, 1.442695
        %v1357 = vpow.pop %v1356
        %v1358 = vsel %vm827, %v1355, 0.0
        %1359 = vadd.xlane.f32.xlu0 %v1358
        %v1360 = vpop.xlane.xlu0 %1359
        %v1361 = vsel %vm827, %v1357, 0.0
        %1362 = vadd.xlane.f32.xlu0 %v1361
        %v1363 = vpop.xlane.xlu0 %1362
        %v1364 = vrcp.pop %v1360
        %v1365 = vrcp.pop %v1363
        %v1366 = vmul.f32 %v1355, %v1364
        %v1367 = vmul.f32 %v1357, %v1365
        %v1368 = vpack.c.bf16 %v1367, %v1366
        %v1370 = vsel %vm827, %v1368, 0
        %1372 = vmatprep.subr.bf16.mxu0 0
        %1373 = vmatpush1.bf16.msra.mxu0 %v1298
        %1374 = vmatprep.subr.bf16.mxu0 0
        %1375 = vmatpush1.bf16.msra.mxu0 0
        %1376 = vmatprep.subr.bf16.mxu0 0
        %1377 = vmatpush1.bf16.msra.mxu0 0
        %1378 = vmatprep.subr.bf16.mxu0 0
        %1379 = vmatpush1.bf16.msra.mxu0 0
        %1380 = vmatprep.subr.bf16.mxu0 0
        %1381 = vmatpush1.bf16.msra.mxu0 0
        %1382 = vmatprep.subr.bf16.mxu0 0
        %1383 = vmatpush1.bf16.msra.mxu0 0
        %1384 = vmatprep.subr.bf16.mxu0 0
        %1385 = vmatpush1.bf16.msra.mxu0 0
        %1386 = vmatprep.subr.bf16.mxu0 0
        %1387 = vmatpush1.bf16.msra.mxu0 0
        %1388 = vmatprep.subr.bf16.mxu0 0
        %1389 = vmatpush1.bf16.msra.mxu0 0
        %1390 = vmatprep.subr.bf16.mxu0 0
        %1391 = vmatpush1.bf16.msra.mxu0 0
        %1392 = vmatprep.subr.bf16.mxu0 0
        %1393 = vmatpush1.bf16.msra.mxu0 0
        %1394 = vmatprep.subr.bf16.mxu0 0
        %1395 = vmatpush1.bf16.msra.mxu0 0
        %1396 = vmatprep.subr.bf16.mxu0 0
        %1397 = vmatpush1.bf16.msra.mxu0 0
        %1398 = vmatprep.subr.bf16.mxu0 0
        %1399 = vmatpush1.bf16.msra.mxu0 0
        %1400 = vmatprep.subr.bf16.mxu0 0
        %1401 = vmatpush1.bf16.msra.mxu0 0
        %1402 = vmatprep.subr.bf16.mxu0 0
        %1403 = vmatpush1.bf16.msra.mxu0 0
        %1404 = vmatprep.mubr.bf16.mxu0 0
        %1405 = vmatmul.mubr.bf16.gmra.mrb[0].mxu0 %v1370
        %v1406 = vpop.f32.mrb[0].mxu0
        %v1407 = vadd.f32 0.0, %v1406
        %v1408 = vpop.f32.mrb[0].mxu0
        %v1409 = vpop.f32.mrb[0].mxu0
        %v1410 = vadd.f32 0.0, %v1409
        %v1411 = vpop.f32.mrb[0].mxu0
        %1412 = vdwg.mxu0
        %1413 = vst.msk [vmem:[#allocation2 + $0x10] sm:$0xff] %vm779, %v1407
        %1414 = vst.msk [vmem:[#allocation2 + $0x18] sm:$0xff] %vm779, %v1410
        %1416 = vrot.lane.b32.xlu0 %v1296, 96
        %v1417 = vpop.permute.xlu0 %1416
        %1419 = vrot.lane.b32.xlu0 %v1297, 96
        %v1420 = vpop.permute.xlu0 %1419
        %v1422 = vsel %vm779, %v1417, 0
        %v1425 = vsel %vm779, %v1420, 0
        %1427 = vmatprep.subr.bf16.mxu0 0
        %1428 = vmatpush1.bf16.xpose.msra.mxu0 %v1425
        %1429 = vmatprep.subr.bf16.mxu0 0
        %1430 = vmatpush1.bf16.xpose.msra.mxu0 0
        %1431 = vmatprep.subr.bf16.mxu0 0
        %1432 = vmatpush1.bf16.xpose.msra.mxu0 0
        %1433 = vmatprep.subr.bf16.mxu0 0
        %1434 = vmatpush1.bf16.xpose.msra.mxu0 0
        %1435 = vmatprep.subr.bf16.mxu0 0
        %1436 = vmatpush1.bf16.xpose.msra.mxu0 0
        %1437 = vmatprep.subr.bf16.mxu0 0
        %1438 = vmatpush1.bf16.xpose.msra.mxu0 0
        %1439 = vmatprep.subr.bf16.mxu0 0
        %1440 = vmatpush1.bf16.xpose.msra.mxu0 0
        %1441 = vmatprep.subr.bf16.mxu0 0
        %1442 = vmatpush1.bf16.xpose.msra.mxu0 0
        %1443 = vmatprep.subr.bf16.mxu0 0
        %1444 = vmatpush1.bf16.xpose.msra.mxu0 0
        %1445 = vmatprep.subr.bf16.mxu0 0
        %1446 = vmatpush1.bf16.xpose.msra.mxu0 0
        %1447 = vmatprep.subr.bf16.mxu0 0
        %1448 = vmatpush1.bf16.xpose.msra.mxu0 0
        %1449 = vmatprep.subr.bf16.mxu0 0
        %1450 = vmatpush1.bf16.xpose.msra.mxu0 0
        %1451 = vmatprep.subr.bf16.mxu0 0
        %1452 = vmatpush1.bf16.xpose.msra.mxu0 0
        %1453 = vmatprep.subr.bf16.mxu0 0
        %1454 = vmatpush1.bf16.xpose.msra.mxu0 0
        %1455 = vmatprep.subr.bf16.mxu0 0
        %1456 = vmatpush1.bf16.xpose.msra.mxu0 0
        %1457 = vmatprep.subr.bf16.mxu0 0
        %1458 = vmatpush1.bf16.xpose.msra.mxu0 0
        %1459 = vmatprep.mubr.bf16.mxu0 0
        %1460 = vmatmul.mubr.bf16.gmra.mrb[0].mxu0 %v1422
        %v1461 = vpop.f32.mrb[0].mxu0
        %v1462 = vadd.f32 0.0, %v1461
        %v1463 = vpop.f32.mrb[0].mxu0
        %v1464 = vpop.f32.mrb[0].mxu0
        %v1465 = vadd.f32 0.0, %v1464
        %v1466 = vpop.f32.mrb[0].mxu0
        %1467 = vdwg.mxu0
        %v1468 = vsel %vm827, %v1462, -inf
        %1469 = vmax.xlane.f32.xlu0 %v1468
        %v1470 = vpop.xlane.xlu0 %1469
        %v1471 = vsel %vm827, %v1465, -inf
        %1472 = vmax.xlane.f32.xlu0 %v1471
        %v1473 = vpop.xlane.xlu0 %1472
        %v1474 = vsub.f32 %v1462, %v1470
        %v1475 = vsub.f32 %v1465, %v1473
        %v1476 = vmul.f32 %v1474, 1.442695
        %v1477 = vpow.pop %v1476
        %v1478 = vmul.f32 %v1475, 1.442695
        %v1479 = vpow.pop %v1478
        %v1480 = vsel %vm827, %v1477, 0.0
        %1481 = vadd.xlane.f32.xlu0 %v1480
        %v1482 = vpop.xlane.xlu0 %1481
        %v1483 = vsel %vm827, %v1479, 0.0
        %1484 = vadd.xlane.f32.xlu0 %v1483
        %v1485 = vpop.xlane.xlu0 %1484
        %v1486 = vrcp.pop %v1482
        %v1487 = vrcp.pop %v1485
        %v1488 = vmul.f32 %v1477, %v1486
        %v1489 = vmul.f32 %v1479, %v1487
        %v1490 = vpack.c.bf16 %v1489, %v1488
        %1492 = vrot.lane.b32.xlu0 %v1298, 96
        %v1493 = vpop.permute.xlu0 %1492
        %v1496 = vsel %vm827, %v1490, 0
        %1498 = vmatprep.subr.bf16.mxu0 0
        %1499 = vmatpush1.bf16.msra.mxu0 %v1493
        %1500 = vmatprep.subr.bf16.mxu0 0
        %1501 = vmatpush1.bf16.msra.mxu0 0
        %1502 = vmatprep.subr.bf16.mxu0 0
        %1503 = vmatpush1.bf16.msra.mxu0 0
        %1504 = vmatprep.subr.bf16.mxu0 0
        %1505 = vmatpush1.bf16.msra.mxu0 0
        %1506 = vmatprep.subr.bf16.mxu0 0
        %1507 = vmatpush1.bf16.msra.mxu0 0
        %1508 = vmatprep.subr.bf16.mxu0 0
        %1509 = vmatpush1.bf16.msra.mxu0 0
        %1510 = vmatprep.subr.bf16.mxu0 0
        %1511 = vmatpush1.bf16.msra.mxu0 0
        %1512 = vmatprep.subr.bf16.mxu0 0
        %1513 = vmatpush1.bf16.msra.mxu0 0
        %1514 = vmatprep.subr.bf16.mxu0 0
        %1515 = vmatpush1.bf16.msra.mxu0 0
        %1516 = vmatprep.subr.bf16.mxu0 0
        %1517 = vmatpush1.bf16.msra.mxu0 0
        %1518 = vmatprep.subr.bf16.mxu0 0
        %1519 = vmatpush1.bf16.msra.mxu0 0
        %1520 = vmatprep.subr.bf16.mxu0 0
        %1521 = vmatpush1.bf16.msra.mxu0 0
        %1522 = vmatprep.subr.bf16.mxu0 0
        %1523 = vmatpush1.bf16.msra.mxu0 0
        %1524 = vmatprep.subr.bf16.mxu0 0
        %1525 = vmatpush1.bf16.msra.mxu0 0
        %1526 = vmatprep.subr.bf16.mxu0 0
        %1527 = vmatpush1.bf16.msra.mxu0 0
        %1528 = vmatprep.subr.bf16.mxu0 0
        %1529 = vmatpush1.bf16.msra.mxu0 0
        %1530 = vmatprep.mubr.bf16.mxu0 0
        %1531 = vmatmul.mubr.bf16.gmra.mrb[0].mxu0 %v1496
        %v1532 = vpop.f32.mrb[0].mxu0
        %v1533 = vadd.f32 0.0, %v1532
        %v1534 = vpop.f32.mrb[0].mxu0
        %v1535 = vpop.f32.mrb[0].mxu0
        %v1536 = vadd.f32 0.0, %v1535
        %v1537 = vpop.f32.mrb[0].mxu0
        %1538 = vdwg.mxu0
        %1541 = vrot.lane.b32.xlu0 %v1533, 32
        %v1542 = vpop.permute.xlu0 %1541
        %1543 = vrot.lane.b32.xlu0 %v1536, 32
        %v1544 = vpop.permute.xlu0 %1543
        %1547 = vst.msk [vmem:[#allocation2 + $0x10] sm:$0xff] %vm1029, %v1542
        %1548 = vst.msk [vmem:[#allocation2 + $0x18] sm:$0xff] %vm1029, %v1544
        %1549 = vrot.lane.b32.xlu0 %v1296, 64
        %v1550 = vpop.permute.xlu0 %1549
        %1551 = vrot.lane.b32.xlu0 %v1297, 64
        %v1552 = vpop.permute.xlu0 %1551
        %v1554 = vsel %vm779, %v1550, 0
        %v1557 = vsel %vm779, %v1552, 0
        %1559 = vmatprep.subr.bf16.mxu0 0
        %1560 = vmatpush1.bf16.xpose.msra.mxu0 %v1557
        %1561 = vmatprep.subr.bf16.mxu0 0
        %1562 = vmatpush1.bf16.xpose.msra.mxu0 0
        %1563 = vmatprep.subr.bf16.mxu0 0
        %1564 = vmatpush1.bf16.xpose.msra.mxu0 0
        %1565 = vmatprep.subr.bf16.mxu0 0
        %1566 = vmatpush1.bf16.xpose.msra.mxu0 0
        %1567 = vmatprep.subr.bf16.mxu0 0
        %1568 = vmatpush1.bf16.xpose.msra.mxu0 0
        %1569 = vmatprep.subr.bf16.mxu0 0
        %1570 = vmatpush1.bf16.xpose.msra.mxu0 0
        %1571 = vmatprep.subr.bf16.mxu0 0
        %1572 = vmatpush1.bf16.xpose.msra.mxu0 0
        %1573 = vmatprep.subr.bf16.mxu0 0
        %1574 = vmatpush1.bf16.xpose.msra.mxu0 0
        %1575 = vmatprep.subr.bf16.mxu0 0
        %1576 = vmatpush1.bf16.xpose.msra.mxu0 0
        %1577 = vmatprep.subr.bf16.mxu0 0
        %1578 = vmatpush1.bf16.xpose.msra.mxu0 0
        %1579 = vmatprep.subr.bf16.mxu0 0
        %1580 = vmatpush1.bf16.xpose.msra.mxu0 0
        %1581 = vmatprep.subr.bf16.mxu0 0
        %1582 = vmatpush1.bf16.xpose.msra.mxu0 0
        %1583 = vmatprep.subr.bf16.mxu0 0
        %1584 = vmatpush1.bf16.xpose.msra.mxu0 0
        %1585 = vmatprep.subr.bf16.mxu0 0
        %1586 = vmatpush1.bf16.xpose.msra.mxu0 0
        %1587 = vmatprep.subr.bf16.mxu0 0
        %1588 = vmatpush1.bf16.xpose.msra.mxu0 0
        %1589 = vmatprep.subr.bf16.mxu0 0
        %1590 = vmatpush1.bf16.xpose.msra.mxu0 0
        %1591 = vmatprep.mubr.bf16.mxu0 0
        %1592 = vmatmul.mubr.bf16.gmra.mrb[0].mxu0 %v1554
        %v1593 = vpop.f32.mrb[0].mxu0
        %v1594 = vadd.f32 0.0, %v1593
        %v1595 = vpop.f32.mrb[0].mxu0
        %v1596 = vpop.f32.mrb[0].mxu0
        %v1597 = vadd.f32 0.0, %v1596
        %v1598 = vpop.f32.mrb[0].mxu0
        %1599 = vdwg.mxu0
        %v1600 = vsel %vm827, %v1594, -inf
        %1601 = vmax.xlane.f32.xlu0 %v1600
        %v1602 = vpop.xlane.xlu0 %1601
        %v1603 = vsel %vm827, %v1597, -inf
        %1604 = vmax.xlane.f32.xlu0 %v1603
        %v1605 = vpop.xlane.xlu0 %1604
        %v1606 = vsub.f32 %v1594, %v1602
        %v1607 = vsub.f32 %v1597, %v1605
        %v1608 = vmul.f32 %v1606, 1.442695
        %v1609 = vpow.pop %v1608
        %v1610 = vmul.f32 %v1607, 1.442695
        %v1611 = vpow.pop %v1610
        %v1612 = vsel %vm827, %v1609, 0.0
        %1613 = vadd.xlane.f32.xlu0 %v1612
        %v1614 = vpop.xlane.xlu0 %1613
        %v1615 = vsel %vm827, %v1611, 0.0
        %1616 = vadd.xlane.f32.xlu0 %v1615
        %v1617 = vpop.xlane.xlu0 %1616
        %v1618 = vrcp.pop %v1614
        %v1619 = vrcp.pop %v1617
        %v1620 = vmul.f32 %v1609, %v1618
        %v1621 = vmul.f32 %v1611, %v1619
        %v1622 = vpack.c.bf16 %v1621, %v1620
        %1623 = vrot.lane.b32.xlu0 %v1298, 64
        %v1624 = vpop.permute.xlu0 %1623
        %v1627 = vsel %vm827, %v1622, 0
        %1629 = vmatprep.subr.bf16.mxu0 0
        %1630 = vmatpush1.bf16.msra.mxu0 %v1624
        %1631 = vmatprep.subr.bf16.mxu0 0
        %1632 = vmatpush1.bf16.msra.mxu0 0
        %1633 = vmatprep.subr.bf16.mxu0 0
        %1634 = vmatpush1.bf16.msra.mxu0 0
        %1635 = vmatprep.subr.bf16.mxu0 0
        %1636 = vmatpush1.bf16.msra.mxu0 0
        %1637 = vmatprep.subr.bf16.mxu0 0
        %1638 = vmatpush1.bf16.msra.mxu0 0
        %1639 = vmatprep.subr.bf16.mxu0 0
        %1640 = vmatpush1.bf16.msra.mxu0 0
        %1641 = vmatprep.subr.bf16.mxu0 0
        %1642 = vmatpush1.bf16.msra.mxu0 0
        %1643 = vmatprep.subr.bf16.mxu0 0
        %1644 = vmatpush1.bf16.msra.mxu0 0
        %1645 = vmatprep.subr.bf16.mxu0 0
        %1646 = vmatpush1.bf16.msra.mxu0 0
        %1647 = vmatprep.subr.bf16.mxu0 0
        %1648 = vmatpush1.bf16.msra.mxu0 0
        %1649 = vmatprep.subr.bf16.mxu0 0
        %1650 = vmatpush1.bf16.msra.mxu0 0
        %1651 = vmatprep.subr.bf16.mxu0 0
        %1652 = vmatpush1.bf16.msra.mxu0 0
        %1653 = vmatprep.subr.bf16.mxu0 0
        %1654 = vmatpush1.bf16.msra.mxu0 0
        %1655 = vmatprep.subr.bf16.mxu0 0
        %1656 = vmatpush1.bf16.msra.mxu0 0
        %1657 = vmatprep.subr.bf16.mxu0 0
        %1658 = vmatpush1.bf16.msra.mxu0 0
        %1659 = vmatprep.subr.bf16.mxu0 0
        %1660 = vmatpush1.bf16.msra.mxu0 0
        %1661 = vmatprep.mubr.bf16.mxu0 0
        %1662 = vmatmul.mubr.bf16.gmra.mrb[0].mxu0 %v1627
        %v1663 = vpop.f32.mrb[0].mxu0
        %v1664 = vadd.f32 0.0, %v1663
        %v1665 = vpop.f32.mrb[0].mxu0
        %v1666 = vpop.f32.mrb[0].mxu0
        %v1667 = vadd.f32 0.0, %v1666
        %v1668 = vpop.f32.mrb[0].mxu0
        %1669 = vdwg.mxu0
        %1672 = vrot.lane.b32.xlu0 %v1664, 64
        %v1673 = vpop.permute.xlu0 %1672
        %1674 = vrot.lane.b32.xlu0 %v1667, 64
        %v1675 = vpop.permute.xlu0 %1674
        %1678 = vst.msk [vmem:[#allocation2 + $0x10] sm:$0xff] %vm1161, %v1673
        %1679 = vst.msk [vmem:[#allocation2 + $0x18] sm:$0xff] %vm1161, %v1675
        %1680 = vrot.lane.b32.xlu0 %v1296, 32
        %v1681 = vpop.permute.xlu0 %1680
        %1682 = vrot.lane.b32.xlu0 %v1297, 32
        %v1683 = vpop.permute.xlu0 %1682
        %v1685 = vsel %vm779, %v1681, 0
        %v1688 = vsel %vm779, %v1683, 0
        %1690 = vmatprep.subr.bf16.mxu0 0
        %1691 = vmatpush1.bf16.xpose.msra.mxu0 %v1688
        %1692 = vmatprep.subr.bf16.mxu0 0
        %1693 = vmatpush1.bf16.xpose.msra.mxu0 0
        %1694 = vmatprep.subr.bf16.mxu0 0
        %1695 = vmatpush1.bf16.xpose.msra.mxu0 0
        %1696 = vmatprep.subr.bf16.mxu0 0
        %1697 = vmatpush1.bf16.xpose.msra.mxu0 0
        %1698 = vmatprep.subr.bf16.mxu0 0
        %1699 = vmatpush1.bf16.xpose.msra.mxu0 0
        %1700 = vmatprep.subr.bf16.mxu0 0
        %1701 = vmatpush1.bf16.xpose.msra.mxu0 0
        %1702 = vmatprep.subr.bf16.mxu0 0
        %1703 = vmatpush1.bf16.xpose.msra.mxu0 0
        %1704 = vmatprep.subr.bf16.mxu0 0
        %1705 = vmatpush1.bf16.xpose.msra.mxu0 0
        %1706 = vmatprep.subr.bf16.mxu0 0
        %1707 = vmatpush1.bf16.xpose.msra.mxu0 0
        %1708 = vmatprep.subr.bf16.mxu0 0
        %1709 = vmatpush1.bf16.xpose.msra.mxu0 0
        %1710 = vmatprep.subr.bf16.mxu0 0
        %1711 = vmatpush1.bf16.xpose.msra.mxu0 0
        %1712 = vmatprep.subr.bf16.mxu0 0
        %1713 = vmatpush1.bf16.xpose.msra.mxu0 0
        %1714 = vmatprep.subr.bf16.mxu0 0
        %1715 = vmatpush1.bf16.xpose.msra.mxu0 0
        %1716 = vmatprep.subr.bf16.mxu0 0
        %1717 = vmatpush1.bf16.xpose.msra.mxu0 0
        %1718 = vmatprep.subr.bf16.mxu0 0
        %1719 = vmatpush1.bf16.xpose.msra.mxu0 0
        %1720 = vmatprep.subr.bf16.mxu0 0
        %1721 = vmatpush1.bf16.xpose.msra.mxu0 0
        %1722 = vmatprep.mubr.bf16.mxu0 0
        %1723 = vmatmul.mubr.bf16.gmra.mrb[0].mxu0 %v1685
        %v1724 = vpop.f32.mrb[0].mxu0
        %v1725 = vadd.f32 0.0, %v1724
        %v1726 = vpop.f32.mrb[0].mxu0
        %v1727 = vpop.f32.mrb[0].mxu0
        %v1728 = vadd.f32 0.0, %v1727
        %v1729 = vpop.f32.mrb[0].mxu0
        %1730 = vdwg.mxu0
        %v1731 = vsel %vm827, %v1725, -inf
        %1732 = vmax.xlane.f32.xlu0 %v1731
        %v1733 = vpop.xlane.xlu0 %1732
        %v1734 = vsel %vm827, %v1728, -inf
        %1735 = vmax.xlane.f32.xlu0 %v1734
        %v1736 = vpop.xlane.xlu0 %1735
        %v1737 = vsub.f32 %v1725, %v1733
        %v1738 = vsub.f32 %v1728, %v1736
        %v1739 = vmul.f32 %v1737, 1.442695
        %v1740 = vpow.pop %v1739
        %v1741 = vmul.f32 %v1738, 1.442695
        %v1742 = vpow.pop %v1741
        %v1743 = vsel %vm827, %v1740, 0.0
        %1744 = vadd.xlane.f32.xlu0 %v1743
        %v1745 = vpop.xlane.xlu0 %1744
        %v1746 = vsel %vm827, %v1742, 0.0
        %1747 = vadd.xlane.f32.xlu0 %v1746
        %v1748 = vpop.xlane.xlu0 %1747
        %v1749 = vrcp.pop %v1745
        %v1750 = vrcp.pop %v1748
        %v1751 = vmul.f32 %v1740, %v1749
        %v1752 = vmul.f32 %v1742, %v1750
        %v1753 = vpack.c.bf16 %v1752, %v1751
        %1754 = vrot.lane.b32.xlu0 %v1298, 32
        %v1755 = vpop.permute.xlu0 %1754
        %v1758 = vsel %vm827, %v1753, 0
        %1760 = vmatprep.subr.bf16.mxu0 0
        %1761 = vmatpush1.bf16.msra.mxu0 %v1755
        %1762 = vmatprep.subr.bf16.mxu0 0
        %1763 = vmatpush1.bf16.msra.mxu0 0
        %1764 = vmatprep.subr.bf16.mxu0 0
        %1765 = vmatpush1.bf16.msra.mxu0 0
        %1766 = vmatprep.subr.bf16.mxu0 0
        %1767 = vmatpush1.bf16.msra.mxu0 0
        %1768 = vmatprep.subr.bf16.mxu0 0
        %1769 = vmatpush1.bf16.msra.mxu0 0
        %1770 = vmatprep.subr.bf16.mxu0 0
        %1771 = vmatpush1.bf16.msra.mxu0 0
        %1772 = vmatprep.subr.bf16.mxu0 0
        %1773 = vmatpush1.bf16.msra.mxu0 0
        %1774 = vmatprep.subr.bf16.mxu0 0
        %1775 = vmatpush1.bf16.msra.mxu0 0
        %1776 = vmatprep.subr.bf16.mxu0 0
        %1777 = vmatpush1.bf16.msra.mxu0 0
        %1778 = vmatprep.subr.bf16.mxu0 0
        %1779 = vmatpush1.bf16.msra.mxu0 0
        %1780 = vmatprep.subr.bf16.mxu0 0
        %1781 = vmatpush1.bf16.msra.mxu0 0
        %1782 = vmatprep.subr.bf16.mxu0 0
        %1783 = vmatpush1.bf16.msra.mxu0 0
        %1784 = vmatprep.subr.bf16.mxu0 0
        %1785 = vmatpush1.bf16.msra.mxu0 0
        %1786 = vmatprep.subr.bf16.mxu0 0
        %1787 = vmatpush1.bf16.msra.mxu0 0
        %1788 = vmatprep.subr.bf16.mxu0 0
        %1789 = vmatpush1.bf16.msra.mxu0 0
        %1790 = vmatprep.subr.bf16.mxu0 0
        %1791 = vmatpush1.bf16.msra.mxu0 0
        %1792 = vmatprep.mubr.bf16.mxu0 0
        %1793 = vmatmul.mubr.bf16.gmra.mrb[0].mxu0 %v1758
        %v1794 = vpop.f32.mrb[0].mxu0
        %v1795 = vadd.f32 0.0, %v1794
        %v1796 = vpop.f32.mrb[0].mxu0
        %v1797 = vpop.f32.mrb[0].mxu0
        %v1798 = vadd.f32 0.0, %v1797
        %v1799 = vpop.f32.mrb[0].mxu0
        %1800 = vdwg.mxu0
        %1803 = vrot.lane.b32.xlu0 %v1795, 96
        %v1804 = vpop.permute.xlu0 %1803
        %1805 = vrot.lane.b32.xlu0 %v1798, 96
        %v1806 = vpop.permute.xlu0 %1805
        %1809 = vst.msk [vmem:[#allocation2 + $0x10] sm:$0xff] %vm1293, %v1804
        %1810 = vst.msk [vmem:[#allocation2 + $0x18] sm:$0xff] %vm1293, %v1806
        %v1811 = vpack.c.bf16 %v697, %v693
        %v1812 = vpack.c.bf16 %v699, %v695
        %v1813 = vpack.c.bf16 %v765, %v762
        %v1815 = vsel %vm779, %v1811, 0
        %v1818 = vsel %vm779, %v1812, 0
        %1820 = vmatprep.subr.bf16.mxu0 0
        %1821 = vmatpush1.bf16.xpose.msra.mxu0 %v1818
        %1822 = vmatprep.subr.bf16.mxu0 0
        %1823 = vmatpush1.bf16.xpose.msra.mxu0 0
        %1824 = vmatprep.subr.bf16.mxu0 0
        %1825 = vmatpush1.bf16.xpose.msra.mxu0 0
        %1826 = vmatprep.subr.bf16.mxu0 0
        %1827 = vmatpush1.bf16.xpose.msra.mxu0 0
        %1828 = vmatprep.subr.bf16.mxu0 0
        %1829 = vmatpush1.bf16.xpose.msra.mxu0 0
        %1830 = vmatprep.subr.bf16.mxu0 0
        %1831 = vmatpush1.bf16.xpose.msra.mxu0 0
        %1832 = vmatprep.subr.bf16.mxu0 0
        %1833 = vmatpush1.bf16.xpose.msra.mxu0 0
        %1834 = vmatprep.subr.bf16.mxu0 0
        %1835 = vmatpush1.bf16.xpose.msra.mxu0 0
        %1836 = vmatprep.subr.bf16.mxu0 0
        %1837 = vmatpush1.bf16.xpose.msra.mxu0 0
        %1838 = vmatprep.subr.bf16.mxu0 0
        %1839 = vmatpush1.bf16.xpose.msra.mxu0 0
        %1840 = vmatprep.subr.bf16.mxu0 0
        %1841 = vmatpush1.bf16.xpose.msra.mxu0 0
        %1842 = vmatprep.subr.bf16.mxu0 0
        %1843 = vmatpush1.bf16.xpose.msra.mxu0 0
        %1844 = vmatprep.subr.bf16.mxu0 0
        %1845 = vmatpush1.bf16.xpose.msra.mxu0 0
        %1846 = vmatprep.subr.bf16.mxu0 0
        %1847 = vmatpush1.bf16.xpose.msra.mxu0 0
        %1848 = vmatprep.subr.bf16.mxu0 0
        %1849 = vmatpush1.bf16.xpose.msra.mxu0 0
        %1850 = vmatprep.subr.bf16.mxu0 0
        %1851 = vmatpush1.bf16.xpose.msra.mxu0 0
        %1852 = vmatprep.mubr.bf16.mxu0 0
        %1853 = vmatmul.mubr.bf16.gmra.mrb[0].mxu0 %v1815
        %v1854 = vpop.f32.mrb[0].mxu0
        %v1855 = vadd.f32 0.0, %v1854
        %v1856 = vpop.f32.mrb[0].mxu0
        %v1857 = vpop.f32.mrb[0].mxu0
        %v1858 = vadd.f32 0.0, %v1857
        %v1859 = vpop.f32.mrb[0].mxu0
        %1860 = vdwg.mxu0
        %v1861 = vsel %vm827, %v1855, -inf
        %1862 = vmax.xlane.f32.xlu0 %v1861
        %v1863 = vpop.xlane.xlu0 %1862
        %v1864 = vsel %vm827, %v1858, -inf
        %1865 = vmax.xlane.f32.xlu0 %v1864
        %v1866 = vpop.xlane.xlu0 %1865
        %v1867 = vsub.f32 %v1855, %v1863
        %v1868 = vsub.f32 %v1858, %v1866
        %v1869 = vmul.f32 %v1867, 1.442695
        %v1870 = vpow.pop %v1869
        %v1871 = vmul.f32 %v1868, 1.442695
        %v1872 = vpow.pop %v1871
        %v1873 = vsel %vm827, %v1870, 0.0
        %1874 = vadd.xlane.f32.xlu0 %v1873
        %v1875 = vpop.xlane.xlu0 %1874
        %v1876 = vsel %vm827, %v1872, 0.0
        %1877 = vadd.xlane.f32.xlu0 %v1876
        %v1878 = vpop.xlane.xlu0 %1877
        %v1879 = vrcp.pop %v1875
        %v1880 = vrcp.pop %v1878
        %v1881 = vmul.f32 %v1870, %v1879
        %v1882 = vmul.f32 %v1872, %v1880
        %v1883 = vpack.c.bf16 %v1882, %v1881
        %v1885 = vsel %vm827, %v1883, 0
        %1887 = vmatprep.subr.bf16.mxu0 0
        %1888 = vmatpush1.bf16.msra.mxu0 %v1813
        %1889 = vmatprep.subr.bf16.mxu0 0
        %1890 = vmatpush1.bf16.msra.mxu0 0
        %1891 = vmatprep.subr.bf16.mxu0 0
        %1892 = vmatpush1.bf16.msra.mxu0 0
        %1893 = vmatprep.subr.bf16.mxu0 0
        %1894 = vmatpush1.bf16.msra.mxu0 0
        %1895 = vmatprep.subr.bf16.mxu0 0
        %1896 = vmatpush1.bf16.msra.mxu0 0
        %1897 = vmatprep.subr.bf16.mxu0 0
        %1898 = vmatpush1.bf16.msra.mxu0 0
        %1899 = vmatprep.subr.bf16.mxu0 0
        %1900 = vmatpush1.bf16.msra.mxu0 0
        %1901 = vmatprep.subr.bf16.mxu0 0
        %1902 = vmatpush1.bf16.msra.mxu0 0
        %1903 = vmatprep.subr.bf16.mxu0 0
        %1904 = vmatpush1.bf16.msra.mxu0 0
        %1905 = vmatprep.subr.bf16.mxu0 0
        %1906 = vmatpush1.bf16.msra.mxu0 0
        %1907 = vmatprep.subr.bf16.mxu0 0
        %1908 = vmatpush1.bf16.msra.mxu0 0
        %1909 = vmatprep.subr.bf16.mxu0 0
        %1910 = vmatpush1.bf16.msra.mxu0 0
        %1911 = vmatprep.subr.bf16.mxu0 0
        %1912 = vmatpush1.bf16.msra.mxu0 0
        %1913 = vmatprep.subr.bf16.mxu0 0
        %1914 = vmatpush1.bf16.msra.mxu0 0
        %1915 = vmatprep.subr.bf16.mxu0 0
        %1916 = vmatpush1.bf16.msra.mxu0 0
        %1917 = vmatprep.subr.bf16.mxu0 0
        %1918 = vmatpush1.bf16.msra.mxu0 0
        %1919 = vmatprep.mubr.bf16.mxu0 0
        %1920 = vmatmul.mubr.bf16.gmra.mrb[0].mxu0 %v1885
        %v1921 = vpop.f32.mrb[0].mxu0
        %v1922 = vadd.f32 0.0, %v1921
        %v1923 = vpop.f32.mrb[0].mxu0
        %v1924 = vpop.f32.mrb[0].mxu0
        %v1925 = vadd.f32 0.0, %v1924
        %v1926 = vpop.f32.mrb[0].mxu0
        %1927 = vdwg.mxu0
        %1928 = vst.msk [vmem:[#allocation2 + $0x20] sm:$0xff] %vm779, %v1922
        %1929 = vst.msk [vmem:[#allocation2 + $0x28] sm:$0xff] %vm779, %v1925
        %1931 = vrot.lane.b32.xlu0 %v1811, 96
        %v1932 = vpop.permute.xlu0 %1931
        %1934 = vrot.lane.b32.xlu0 %v1812, 96
        %v1935 = vpop.permute.xlu0 %1934
        %v1937 = vsel %vm779, %v1932, 0
        %v1940 = vsel %vm779, %v1935, 0
        %1942 = vmatprep.subr.bf16.mxu0 0
        %1943 = vmatpush1.bf16.xpose.msra.mxu0 %v1940
        %1944 = vmatprep.subr.bf16.mxu0 0
        %1945 = vmatpush1.bf16.xpose.msra.mxu0 0
        %1946 = vmatprep.subr.bf16.mxu0 0
        %1947 = vmatpush1.bf16.xpose.msra.mxu0 0
        %1948 = vmatprep.subr.bf16.mxu0 0
        %1949 = vmatpush1.bf16.xpose.msra.mxu0 0
        %1950 = vmatprep.subr.bf16.mxu0 0
        %1951 = vmatpush1.bf16.xpose.msra.mxu0 0
        %1952 = vmatprep.subr.bf16.mxu0 0
        %1953 = vmatpush1.bf16.xpose.msra.mxu0 0
        %1954 = vmatprep.subr.bf16.mxu0 0
        %1955 = vmatpush1.bf16.xpose.msra.mxu0 0
        %1956 = vmatprep.subr.bf16.mxu0 0
        %1957 = vmatpush1.bf16.xpose.msra.mxu0 0
        %1958 = vmatprep.subr.bf16.mxu0 0
        %1959 = vmatpush1.bf16.xpose.msra.mxu0 0
        %1960 = vmatprep.subr.bf16.mxu0 0
        %1961 = vmatpush1.bf16.xpose.msra.mxu0 0
        %1962 = vmatprep.subr.bf16.mxu0 0
        %1963 = vmatpush1.bf16.xpose.msra.mxu0 0
        %1964 = vmatprep.subr.bf16.mxu0 0
        %1965 = vmatpush1.bf16.xpose.msra.mxu0 0
        %1966 = vmatprep.subr.bf16.mxu0 0
        %1967 = vmatpush1.bf16.xpose.msra.mxu0 0
        %1968 = vmatprep.subr.bf16.mxu0 0
        %1969 = vmatpush1.bf16.xpose.msra.mxu0 0
        %1970 = vmatprep.subr.bf16.mxu0 0
        %1971 = vmatpush1.bf16.xpose.msra.mxu0 0
        %1972 = vmatprep.subr.bf16.mxu0 0
        %1973 = vmatpush1.bf16.xpose.msra.mxu0 0
        %1974 = vmatprep.mubr.bf16.mxu0 0
        %1975 = vmatmul.mubr.bf16.gmra.mrb[0].mxu0 %v1937
        %v1976 = vpop.f32.mrb[0].mxu0
        %v1977 = vadd.f32 0.0, %v1976
        %v1978 = vpop.f32.mrb[0].mxu0
        %v1979 = vpop.f32.mrb[0].mxu0
        %v1980 = vadd.f32 0.0, %v1979
        %v1981 = vpop.f32.mrb[0].mxu0
        %1982 = vdwg.mxu0
        %v1983 = vsel %vm827, %v1977, -inf
        %1984 = vmax.xlane.f32.xlu0 %v1983
        %v1985 = vpop.xlane.xlu0 %1984
        %v1986 = vsel %vm827, %v1980, -inf
        %1987 = vmax.xlane.f32.xlu0 %v1986
        %v1988 = vpop.xlane.xlu0 %1987
        %v1989 = vsub.f32 %v1977, %v1985
        %v1990 = vsub.f32 %v1980, %v1988
        %v1991 = vmul.f32 %v1989, 1.442695
        %v1992 = vpow.pop %v1991
        %v1993 = vmul.f32 %v1990, 1.442695
        %v1994 = vpow.pop %v1993
        %v1995 = vsel %vm827, %v1992, 0.0
        %1996 = vadd.xlane.f32.xlu0 %v1995
        %v1997 = vpop.xlane.xlu0 %1996
        %v1998 = vsel %vm827, %v1994, 0.0
        %1999 = vadd.xlane.f32.xlu0 %v1998
        %v2000 = vpop.xlane.xlu0 %1999
        %v2001 = vrcp.pop %v1997
        %v2002 = vrcp.pop %v2000
        %v2003 = vmul.f32 %v1992, %v2001
        %v2004 = vmul.f32 %v1994, %v2002
        %v2005 = vpack.c.bf16 %v2004, %v2003
        %2007 = vrot.lane.b32.xlu0 %v1813, 96
        %v2008 = vpop.permute.xlu0 %2007
        %v2011 = vsel %vm827, %v2005, 0
        %2013 = vmatprep.subr.bf16.mxu0 0
        %2014 = vmatpush1.bf16.msra.mxu0 %v2008
        %2015 = vmatprep.subr.bf16.mxu0 0
        %2016 = vmatpush1.bf16.msra.mxu0 0
        %2017 = vmatprep.subr.bf16.mxu0 0
        %2018 = vmatpush1.bf16.msra.mxu0 0
        %2019 = vmatprep.subr.bf16.mxu0 0
        %2020 = vmatpush1.bf16.msra.mxu0 0
        %2021 = vmatprep.subr.bf16.mxu0 0
        %2022 = vmatpush1.bf16.msra.mxu0 0
        %2023 = vmatprep.subr.bf16.mxu0 0
        %2024 = vmatpush1.bf16.msra.mxu0 0
        %2025 = vmatprep.subr.bf16.mxu0 0
        %2026 = vmatpush1.bf16.msra.mxu0 0
        %2027 = vmatprep.subr.bf16.mxu0 0
        %2028 = vmatpush1.bf16.msra.mxu0 0
        %2029 = vmatprep.subr.bf16.mxu0 0
        %2030 = vmatpush1.bf16.msra.mxu0 0
        %2031 = vmatprep.subr.bf16.mxu0 0
        %2032 = vmatpush1.bf16.msra.mxu0 0
        %2033 = vmatprep.subr.bf16.mxu0 0
        %2034 = vmatpush1.bf16.msra.mxu0 0
        %2035 = vmatprep.subr.bf16.mxu0 0
        %2036 = vmatpush1.bf16.msra.mxu0 0
        %2037 = vmatprep.subr.bf16.mxu0 0
        %2038 = vmatpush1.bf16.msra.mxu0 0
        %2039 = vmatprep.subr.bf16.mxu0 0
        %2040 = vmatpush1.bf16.msra.mxu0 0
        %2041 = vmatprep.subr.bf16.mxu0 0
        %2042 = vmatpush1.bf16.msra.mxu0 0
        %2043 = vmatprep.subr.bf16.mxu0 0
        %2044 = vmatpush1.bf16.msra.mxu0 0
        %2045 = vmatprep.mubr.bf16.mxu0 0
        %2046 = vmatmul.mubr.bf16.gmra.mrb[0].mxu0 %v2011
        %v2047 = vpop.f32.mrb[0].mxu0
        %v2048 = vadd.f32 0.0, %v2047
        %v2049 = vpop.f32.mrb[0].mxu0
        %v2050 = vpop.f32.mrb[0].mxu0
        %v2051 = vadd.f32 0.0, %v2050
        %v2052 = vpop.f32.mrb[0].mxu0
        %2053 = vdwg.mxu0
        %2056 = vrot.lane.b32.xlu0 %v2048, 32
        %v2057 = vpop.permute.xlu0 %2056
        %2058 = vrot.lane.b32.xlu0 %v2051, 32
        %v2059 = vpop.permute.xlu0 %2058
        %2062 = vst.msk [vmem:[#allocation2 + $0x20] sm:$0xff] %vm1029, %v2057
        %2063 = vst.msk [vmem:[#allocation2 + $0x28] sm:$0xff] %vm1029, %v2059
        %2064 = vrot.lane.b32.xlu0 %v1811, 64
        %v2065 = vpop.permute.xlu0 %2064
        %2066 = vrot.lane.b32.xlu0 %v1812, 64
        %v2067 = vpop.permute.xlu0 %2066
        %v2069 = vsel %vm779, %v2065, 0
        %v2072 = vsel %vm779, %v2067, 0
        %2074 = vmatprep.subr.bf16.mxu0 0
        %2075 = vmatpush1.bf16.xpose.msra.mxu0 %v2072
        %2076 = vmatprep.subr.bf16.mxu0 0
        %2077 = vmatpush1.bf16.xpose.msra.mxu0 0
        %2078 = vmatprep.subr.bf16.mxu0 0
        %2079 = vmatpush1.bf16.xpose.msra.mxu0 0
        %2080 = vmatprep.subr.bf16.mxu0 0
        %2081 = vmatpush1.bf16.xpose.msra.mxu0 0
        %2082 = vmatprep.subr.bf16.mxu0 0
        %2083 = vmatpush1.bf16.xpose.msra.mxu0 0
        %2084 = vmatprep.subr.bf16.mxu0 0
        %2085 = vmatpush1.bf16.xpose.msra.mxu0 0
        %2086 = vmatprep.subr.bf16.mxu0 0
        %2087 = vmatpush1.bf16.xpose.msra.mxu0 0
        %2088 = vmatprep.subr.bf16.mxu0 0
        %2089 = vmatpush1.bf16.xpose.msra.mxu0 0
        %2090 = vmatprep.subr.bf16.mxu0 0
        %2091 = vmatpush1.bf16.xpose.msra.mxu0 0
        %2092 = vmatprep.subr.bf16.mxu0 0
        %2093 = vmatpush1.bf16.xpose.msra.mxu0 0
        %2094 = vmatprep.subr.bf16.mxu0 0
        %2095 = vmatpush1.bf16.xpose.msra.mxu0 0
        %2096 = vmatprep.subr.bf16.mxu0 0
        %2097 = vmatpush1.bf16.xpose.msra.mxu0 0
        %2098 = vmatprep.subr.bf16.mxu0 0
        %2099 = vmatpush1.bf16.xpose.msra.mxu0 0
        %2100 = vmatprep.subr.bf16.mxu0 0
        %2101 = vmatpush1.bf16.xpose.msra.mxu0 0
        %2102 = vmatprep.subr.bf16.mxu0 0
        %2103 = vmatpush1.bf16.xpose.msra.mxu0 0
        %2104 = vmatprep.subr.bf16.mxu0 0
        %2105 = vmatpush1.bf16.xpose.msra.mxu0 0
        %2106 = vmatprep.mubr.bf16.mxu0 0
        %2107 = vmatmul.mubr.bf16.gmra.mrb[0].mxu0 %v2069
        %v2108 = vpop.f32.mrb[0].mxu0
        %v2109 = vadd.f32 0.0, %v2108
        %v2110 = vpop.f32.mrb[0].mxu0
        %v2111 = vpop.f32.mrb[0].mxu0
        %v2112 = vadd.f32 0.0, %v2111
        %v2113 = vpop.f32.mrb[0].mxu0
        %2114 = vdwg.mxu0
        %v2115 = vsel %vm827, %v2109, -inf
        %2116 = vmax.xlane.f32.xlu0 %v2115
        %v2117 = vpop.xlane.xlu0 %2116
        %v2118 = vsel %vm827, %v2112, -inf
        %2119 = vmax.xlane.f32.xlu0 %v2118
        %v2120 = vpop.xlane.xlu0 %2119
        %v2121 = vsub.f32 %v2109, %v2117
        %v2122 = vsub.f32 %v2112, %v2120
        %v2123 = vmul.f32 %v2121, 1.442695
        %v2124 = vpow.pop %v2123
        %v2125 = vmul.f32 %v2122, 1.442695
        %v2126 = vpow.pop %v2125
        %v2127 = vsel %vm827, %v2124, 0.0
        %2128 = vadd.xlane.f32.xlu0 %v2127
        %v2129 = vpop.xlane.xlu0 %2128
        %v2130 = vsel %vm827, %v2126, 0.0
        %2131 = vadd.xlane.f32.xlu0 %v2130
        %v2132 = vpop.xlane.xlu0 %2131
        %v2133 = vrcp.pop %v2129
        %v2134 = vrcp.pop %v2132
        %v2135 = vmul.f32 %v2124, %v2133
        %v2136 = vmul.f32 %v2126, %v2134
        %v2137 = vpack.c.bf16 %v2136, %v2135
        %2138 = vrot.lane.b32.xlu0 %v1813, 64
        %v2139 = vpop.permute.xlu0 %2138
        %v2142 = vsel %vm827, %v2137, 0
        %2144 = vmatprep.subr.bf16.mxu0 0
        %2145 = vmatpush1.bf16.msra.mxu0 %v2139
        %2146 = vmatprep.subr.bf16.mxu0 0
        %2147 = vmatpush1.bf16.msra.mxu0 0
        %2148 = vmatprep.subr.bf16.mxu0 0
        %2149 = vmatpush1.bf16.msra.mxu0 0
        %2150 = vmatprep.subr.bf16.mxu0 0
        %2151 = vmatpush1.bf16.msra.mxu0 0
        %2152 = vmatprep.subr.bf16.mxu0 0
        %2153 = vmatpush1.bf16.msra.mxu0 0
        %2154 = vmatprep.subr.bf16.mxu0 0
        %2155 = vmatpush1.bf16.msra.mxu0 0
        %2156 = vmatprep.subr.bf16.mxu0 0
        %2157 = vmatpush1.bf16.msra.mxu0 0
        %2158 = vmatprep.subr.bf16.mxu0 0
        %2159 = vmatpush1.bf16.msra.mxu0 0
        %2160 = vmatprep.subr.bf16.mxu0 0
        %2161 = vmatpush1.bf16.msra.mxu0 0
        %2162 = vmatprep.subr.bf16.mxu0 0
        %2163 = vmatpush1.bf16.msra.mxu0 0
        %2164 = vmatprep.subr.bf16.mxu0 0
        %2165 = vmatpush1.bf16.msra.mxu0 0
        %2166 = vmatprep.subr.bf16.mxu0 0
        %2167 = vmatpush1.bf16.msra.mxu0 0
        %2168 = vmatprep.subr.bf16.mxu0 0
        %2169 = vmatpush1.bf16.msra.mxu0 0
        %2170 = vmatprep.subr.bf16.mxu0 0
        %2171 = vmatpush1.bf16.msra.mxu0 0
        %2172 = vmatprep.subr.bf16.mxu0 0
        %2173 = vmatpush1.bf16.msra.mxu0 0
        %2174 = vmatprep.subr.bf16.mxu0 0
        %2175 = vmatpush1.bf16.msra.mxu0 0
        %2176 = vmatprep.mubr.bf16.mxu0 0
        %2177 = vmatmul.mubr.bf16.gmra.mrb[0].mxu0 %v2142
        %v2178 = vpop.f32.mrb[0].mxu0
        %v2179 = vadd.f32 0.0, %v2178
        %v2180 = vpop.f32.mrb[0].mxu0
        %v2181 = vpop.f32.mrb[0].mxu0
        %v2182 = vadd.f32 0.0, %v2181
        %v2183 = vpop.f32.mrb[0].mxu0
        %2184 = vdwg.mxu0
        %2187 = vrot.lane.b32.xlu0 %v2179, 64
        %v2188 = vpop.permute.xlu0 %2187
        %2189 = vrot.lane.b32.xlu0 %v2182, 64
        %v2190 = vpop.permute.xlu0 %2189
        %2193 = vst.msk [vmem:[#allocation2 + $0x20] sm:$0xff] %vm1161, %v2188
        %2194 = vst.msk [vmem:[#allocation2 + $0x28] sm:$0xff] %vm1161, %v2190
        %2195 = vrot.lane.b32.xlu0 %v1811, 32
        %v2196 = vpop.permute.xlu0 %2195
        %2197 = vrot.lane.b32.xlu0 %v1812, 32
        %v2198 = vpop.permute.xlu0 %2197
        %v2200 = vsel %vm779, %v2196, 0
        %v2203 = vsel %vm779, %v2198, 0
        %2205 = vmatprep.subr.bf16.mxu0 0
        %2206 = vmatpush1.bf16.xpose.msra.mxu0 %v2203
        %2207 = vmatprep.subr.bf16.mxu0 0
        %2208 = vmatpush1.bf16.xpose.msra.mxu0 0
        %2209 = vmatprep.subr.bf16.mxu0 0
        %2210 = vmatpush1.bf16.xpose.msra.mxu0 0
        %2211 = vmatprep.subr.bf16.mxu0 0
        %2212 = vmatpush1.bf16.xpose.msra.mxu0 0
        %2213 = vmatprep.subr.bf16.mxu0 0
        %2214 = vmatpush1.bf16.xpose.msra.mxu0 0
        %2215 = vmatprep.subr.bf16.mxu0 0
        %2216 = vmatpush1.bf16.xpose.msra.mxu0 0
        %2217 = vmatprep.subr.bf16.mxu0 0
        %2218 = vmatpush1.bf16.xpose.msra.mxu0 0
        %2219 = vmatprep.subr.bf16.mxu0 0
        %2220 = vmatpush1.bf16.xpose.msra.mxu0 0
        %2221 = vmatprep.subr.bf16.mxu0 0
        %2222 = vmatpush1.bf16.xpose.msra.mxu0 0
        %2223 = vmatprep.subr.bf16.mxu0 0
        %2224 = vmatpush1.bf16.xpose.msra.mxu0 0
        %2225 = vmatprep.subr.bf16.mxu0 0
        %2226 = vmatpush1.bf16.xpose.msra.mxu0 0
        %2227 = vmatprep.subr.bf16.mxu0 0
        %2228 = vmatpush1.bf16.xpose.msra.mxu0 0
        %2229 = vmatprep.subr.bf16.mxu0 0
        %2230 = vmatpush1.bf16.xpose.msra.mxu0 0
        %2231 = vmatprep.subr.bf16.mxu0 0
        %2232 = vmatpush1.bf16.xpose.msra.mxu0 0
        %2233 = vmatprep.subr.bf16.mxu0 0
        %2234 = vmatpush1.bf16.xpose.msra.mxu0 0
        %2235 = vmatprep.subr.bf16.mxu0 0
        %2236 = vmatpush1.bf16.xpose.msra.mxu0 0
        %2237 = vmatprep.mubr.bf16.mxu0 0
        %2238 = vmatmul.mubr.bf16.gmra.mrb[0].mxu0 %v2200
        %v2239 = vpop.f32.mrb[0].mxu0
        %v2240 = vadd.f32 0.0, %v2239
        %v2241 = vpop.f32.mrb[0].mxu0
        %v2242 = vpop.f32.mrb[0].mxu0
        %v2243 = vadd.f32 0.0, %v2242
        %v2244 = vpop.f32.mrb[0].mxu0
        %2245 = vdwg.mxu0
        %v2246 = vsel %vm827, %v2240, -inf
        %2247 = vmax.xlane.f32.xlu0 %v2246
        %v2248 = vpop.xlane.xlu0 %2247
        %v2249 = vsel %vm827, %v2243, -inf
        %2250 = vmax.xlane.f32.xlu0 %v2249
        %v2251 = vpop.xlane.xlu0 %2250
        %v2252 = vsub.f32 %v2240, %v2248
        %v2253 = vsub.f32 %v2243, %v2251
        %v2254 = vmul.f32 %v2252, 1.442695
        %v2255 = vpow.pop %v2254
        %v2256 = vmul.f32 %v2253, 1.442695
        %v2257 = vpow.pop %v2256
        %v2258 = vsel %vm827, %v2255, 0.0
        %2259 = vadd.xlane.f32.xlu0 %v2258
        %v2260 = vpop.xlane.xlu0 %2259
        %v2261 = vsel %vm827, %v2257, 0.0
        %2262 = vadd.xlane.f32.xlu0 %v2261
        %v2263 = vpop.xlane.xlu0 %2262
        %v2264 = vrcp.pop %v2260
        %v2265 = vrcp.pop %v2263
        %v2266 = vmul.f32 %v2255, %v2264
        %v2267 = vmul.f32 %v2257, %v2265
        %v2268 = vpack.c.bf16 %v2267, %v2266
        %2269 = vrot.lane.b32.xlu0 %v1813, 32
        %v2270 = vpop.permute.xlu0 %2269
        %v2273 = vsel %vm827, %v2268, 0
        %2275 = vmatprep.subr.bf16.mxu0 0
        %2276 = vmatpush1.bf16.msra.mxu0 %v2270
        %2277 = vmatprep.subr.bf16.mxu0 0
        %2278 = vmatpush1.bf16.msra.mxu0 0
        %2279 = vmatprep.subr.bf16.mxu0 0
        %2280 = vmatpush1.bf16.msra.mxu0 0
        %2281 = vmatprep.subr.bf16.mxu0 0
        %2282 = vmatpush1.bf16.msra.mxu0 0
        %2283 = vmatprep.subr.bf16.mxu0 0
        %2284 = vmatpush1.bf16.msra.mxu0 0
        %2285 = vmatprep.subr.bf16.mxu0 0
        %2286 = vmatpush1.bf16.msra.mxu0 0
        %2287 = vmatprep.subr.bf16.mxu0 0
        %2288 = vmatpush1.bf16.msra.mxu0 0
        %2289 = vmatprep.subr.bf16.mxu0 0
        %2290 = vmatpush1.bf16.msra.mxu0 0
        %2291 = vmatprep.subr.bf16.mxu0 0
        %2292 = vmatpush1.bf16.msra.mxu0 0
        %2293 = vmatprep.subr.bf16.mxu0 0
        %2294 = vmatpush1.bf16.msra.mxu0 0
        %2295 = vmatprep.subr.bf16.mxu0 0
        %2296 = vmatpush1.bf16.msra.mxu0 0
        %2297 = vmatprep.subr.bf16.mxu0 0
        %2298 = vmatpush1.bf16.msra.mxu0 0
        %2299 = vmatprep.subr.bf16.mxu0 0
        %2300 = vmatpush1.bf16.msra.mxu0 0
        %2301 = vmatprep.subr.bf16.mxu0 0
        %2302 = vmatpush1.bf16.msra.mxu0 0
        %2303 = vmatprep.subr.bf16.mxu0 0
        %2304 = vmatpush1.bf16.msra.mxu0 0
        %2305 = vmatprep.subr.bf16.mxu0 0
        %2306 = vmatpush1.bf16.msra.mxu0 0
        %2307 = vmatprep.mubr.bf16.mxu0 0
        %2308 = vmatmul.mubr.bf16.gmra.mrb[0].mxu0 %v2273
        %v2309 = vpop.f32.mrb[0].mxu0
        %v2310 = vadd.f32 0.0, %v2309
        %v2311 = vpop.f32.mrb[0].mxu0
        %v2312 = vpop.f32.mrb[0].mxu0
        %v2313 = vadd.f32 0.0, %v2312
        %v2314 = vpop.f32.mrb[0].mxu0
        %2315 = vdwg.mxu0
        %2318 = vrot.lane.b32.xlu0 %v2310, 96
        %v2319 = vpop.permute.xlu0 %2318
        %2320 = vrot.lane.b32.xlu0 %v2313, 96
        %v2321 = vpop.permute.xlu0 %2320
        %2324 = vst.msk [vmem:[#allocation2 + $0x20] sm:$0xff] %vm1293, %v2319
        %2325 = vst.msk [vmem:[#allocation2 + $0x28] sm:$0xff] %vm1293, %v2321
        %v2326 = vpack.c.bf16 %v707, %v703
        %v2327 = vpack.c.bf16 %v709, %v705
        %v2328 = vpack.c.bf16 %v773, %v770
        %v2330 = vsel %vm779, %v2326, 0
        %v2333 = vsel %vm779, %v2327, 0
        %2335 = vmatprep.subr.bf16.mxu0 0
        %2336 = vmatpush1.bf16.xpose.msra.mxu0 %v2333
        %2337 = vmatprep.subr.bf16.mxu0 0
        %2338 = vmatpush1.bf16.xpose.msra.mxu0 0
        %2339 = vmatprep.subr.bf16.mxu0 0
        %2340 = vmatpush1.bf16.xpose.msra.mxu0 0
        %2341 = vmatprep.subr.bf16.mxu0 0
        %2342 = vmatpush1.bf16.xpose.msra.mxu0 0
        %2343 = vmatprep.subr.bf16.mxu0 0
        %2344 = vmatpush1.bf16.xpose.msra.mxu0 0
        %2345 = vmatprep.subr.bf16.mxu0 0
        %2346 = vmatpush1.bf16.xpose.msra.mxu0 0
        %2347 = vmatprep.subr.bf16.mxu0 0
        %2348 = vmatpush1.bf16.xpose.msra.mxu0 0
        %2349 = vmatprep.subr.bf16.mxu0 0
        %2350 = vmatpush1.bf16.xpose.msra.mxu0 0
        %2351 = vmatprep.subr.bf16.mxu0 0
        %2352 = vmatpush1.bf16.xpose.msra.mxu0 0
        %2353 = vmatprep.subr.bf16.mxu0 0
        %2354 = vmatpush1.bf16.xpose.msra.mxu0 0
        %2355 = vmatprep.subr.bf16.mxu0 0
        %2356 = vmatpush1.bf16.xpose.msra.mxu0 0
        %2357 = vmatprep.subr.bf16.mxu0 0
        %2358 = vmatpush1.bf16.xpose.msra.mxu0 0
        %2359 = vmatprep.subr.bf16.mxu0 0
        %2360 = vmatpush1.bf16.xpose.msra.mxu0 0
        %2361 = vmatprep.subr.bf16.mxu0 0
        %2362 = vmatpush1.bf16.xpose.msra.mxu0 0
        %2363 = vmatprep.subr.bf16.mxu0 0
        %2364 = vmatpush1.bf16.xpose.msra.mxu0 0
        %2365 = vmatprep.subr.bf16.mxu0 0
        %2366 = vmatpush1.bf16.xpose.msra.mxu0 0
        %2367 = vmatprep.mubr.bf16.mxu0 0
        %2368 = vmatmul.mubr.bf16.gmra.mrb[0].mxu0 %v2330
        %v2369 = vpop.f32.mrb[0].mxu0
        %v2370 = vadd.f32 0.0, %v2369
        %v2371 = vpop.f32.mrb[0].mxu0
        %v2372 = vpop.f32.mrb[0].mxu0
        %v2373 = vadd.f32 0.0, %v2372
        %v2374 = vpop.f32.mrb[0].mxu0
        %2375 = vdwg.mxu0
        %v2376 = vsel %vm827, %v2370, -inf
        %2377 = vmax.xlane.f32.xlu0 %v2376
        %v2378 = vpop.xlane.xlu0 %2377
        %v2379 = vsel %vm827, %v2373, -inf
        %2380 = vmax.xlane.f32.xlu0 %v2379
        %v2381 = vpop.xlane.xlu0 %2380
        %v2382 = vsub.f32 %v2370, %v2378
        %v2383 = vsub.f32 %v2373, %v2381
        %v2384 = vmul.f32 %v2382, 1.442695
        %v2385 = vpow.pop %v2384
        %v2386 = vmul.f32 %v2383, 1.442695
        %v2387 = vpow.pop %v2386
        %v2388 = vsel %vm827, %v2385, 0.0
        %2389 = vadd.xlane.f32.xlu0 %v2388
        %v2390 = vpop.xlane.xlu0 %2389
        %v2391 = vsel %vm827, %v2387, 0.0
        %2392 = vadd.xlane.f32.xlu0 %v2391
        %v2393 = vpop.xlane.xlu0 %2392
        %v2394 = vrcp.pop %v2390
        %v2395 = vrcp.pop %v2393
        %v2396 = vmul.f32 %v2385, %v2394
        %v2397 = vmul.f32 %v2387, %v2395
        %v2398 = vpack.c.bf16 %v2397, %v2396
        %v2400 = vsel %vm827, %v2398, 0
        %2402 = vmatprep.subr.bf16.mxu0 0
        %2403 = vmatpush1.bf16.msra.mxu0 %v2328
        %2404 = vmatprep.subr.bf16.mxu0 0
        %2405 = vmatpush1.bf16.msra.mxu0 0
        %2406 = vmatprep.subr.bf16.mxu0 0
        %2407 = vmatpush1.bf16.msra.mxu0 0
        %2408 = vmatprep.subr.bf16.mxu0 0
        %2409 = vmatpush1.bf16.msra.mxu0 0
        %2410 = vmatprep.subr.bf16.mxu0 0
        %2411 = vmatpush1.bf16.msra.mxu0 0
        %2412 = vmatprep.subr.bf16.mxu0 0
        %2413 = vmatpush1.bf16.msra.mxu0 0
        %2414 = vmatprep.subr.bf16.mxu0 0
        %2415 = vmatpush1.bf16.msra.mxu0 0
        %2416 = vmatprep.subr.bf16.mxu0 0
        %2417 = vmatpush1.bf16.msra.mxu0 0
        %2418 = vmatprep.subr.bf16.mxu0 0
        %2419 = vmatpush1.bf16.msra.mxu0 0
        %2420 = vmatprep.subr.bf16.mxu0 0
        %2421 = vmatpush1.bf16.msra.mxu0 0
        %2422 = vmatprep.subr.bf16.mxu0 0
        %2423 = vmatpush1.bf16.msra.mxu0 0
        %2424 = vmatprep.subr.bf16.mxu0 0
        %2425 = vmatpush1.bf16.msra.mxu0 0
        %2426 = vmatprep.subr.bf16.mxu0 0
        %2427 = vmatpush1.bf16.msra.mxu0 0
        %2428 = vmatprep.subr.bf16.mxu0 0
        %2429 = vmatpush1.bf16.msra.mxu0 0
        %2430 = vmatprep.subr.bf16.mxu0 0
        %2431 = vmatpush1.bf16.msra.mxu0 0
        %2432 = vmatprep.subr.bf16.mxu0 0
        %2433 = vmatpush1.bf16.msra.mxu0 0
        %2434 = vmatprep.mubr.bf16.mxu0 0
        %2435 = vmatmul.mubr.bf16.gmra.mrb[0].mxu0 %v2400
        %v2436 = vpop.f32.mrb[0].mxu0
        %v2437 = vadd.f32 0.0, %v2436
        %v2438 = vpop.f32.mrb[0].mxu0
        %v2439 = vpop.f32.mrb[0].mxu0
        %v2440 = vadd.f32 0.0, %v2439
        %v2441 = vpop.f32.mrb[0].mxu0
        %2442 = vdwg.mxu0
        %2443 = vst.msk [vmem:[#allocation2 + $0x30] sm:$0xff] %vm779, %v2437
        %2444 = vst.msk [vmem:[#allocation2 + $0x38] sm:$0xff] %vm779, %v2440
        %2446 = vrot.lane.b32.xlu0 %v2326, 96
        %v2447 = vpop.permute.xlu0 %2446
        %2449 = vrot.lane.b32.xlu0 %v2327, 96
        %v2450 = vpop.permute.xlu0 %2449
        %v2452 = vsel %vm779, %v2447, 0
        %v2455 = vsel %vm779, %v2450, 0
        %2457 = vmatprep.subr.bf16.mxu0 0
        %2458 = vmatpush1.bf16.xpose.msra.mxu0 %v2455
        %2459 = vmatprep.subr.bf16.mxu0 0
        %2460 = vmatpush1.bf16.xpose.msra.mxu0 0
        %2461 = vmatprep.subr.bf16.mxu0 0
        %2462 = vmatpush1.bf16.xpose.msra.mxu0 0
        %2463 = vmatprep.subr.bf16.mxu0 0
        %2464 = vmatpush1.bf16.xpose.msra.mxu0 0
        %2465 = vmatprep.subr.bf16.mxu0 0
        %2466 = vmatpush1.bf16.xpose.msra.mxu0 0
        %2467 = vmatprep.subr.bf16.mxu0 0
        %2468 = vmatpush1.bf16.xpose.msra.mxu0 0
        %2469 = vmatprep.subr.bf16.mxu0 0
        %2470 = vmatpush1.bf16.xpose.msra.mxu0 0
        %2471 = vmatprep.subr.bf16.mxu0 0
        %2472 = vmatpush1.bf16.xpose.msra.mxu0 0
        %2473 = vmatprep.subr.bf16.mxu0 0
        %2474 = vmatpush1.bf16.xpose.msra.mxu0 0
        %2475 = vmatprep.subr.bf16.mxu0 0
        %2476 = vmatpush1.bf16.xpose.msra.mxu0 0
        %2477 = vmatprep.subr.bf16.mxu0 0
        %2478 = vmatpush1.bf16.xpose.msra.mxu0 0
        %2479 = vmatprep.subr.bf16.mxu0 0
        %2480 = vmatpush1.bf16.xpose.msra.mxu0 0
        %2481 = vmatprep.subr.bf16.mxu0 0
        %2482 = vmatpush1.bf16.xpose.msra.mxu0 0
        %2483 = vmatprep.subr.bf16.mxu0 0
        %2484 = vmatpush1.bf16.xpose.msra.mxu0 0
        %2485 = vmatprep.subr.bf16.mxu0 0
        %2486 = vmatpush1.bf16.xpose.msra.mxu0 0
        %2487 = vmatprep.subr.bf16.mxu0 0
        %2488 = vmatpush1.bf16.xpose.msra.mxu0 0
        %2489 = vmatprep.mubr.bf16.mxu0 0
        %2490 = vmatmul.mubr.bf16.gmra.mrb[0].mxu0 %v2452
        %v2491 = vpop.f32.mrb[0].mxu0
        %v2492 = vadd.f32 0.0, %v2491
        %v2493 = vpop.f32.mrb[0].mxu0
        %v2494 = vpop.f32.mrb[0].mxu0
        %v2495 = vadd.f32 0.0, %v2494
        %v2496 = vpop.f32.mrb[0].mxu0
        %2497 = vdwg.mxu0
        %v2498 = vsel %vm827, %v2492, -inf
        %2499 = vmax.xlane.f32.xlu0 %v2498
        %v2500 = vpop.xlane.xlu0 %2499
        %v2501 = vsel %vm827, %v2495, -inf
        %2502 = vmax.xlane.f32.xlu0 %v2501
        %v2503 = vpop.xlane.xlu0 %2502
        %v2504 = vsub.f32 %v2492, %v2500
        %v2505 = vsub.f32 %v2495, %v2503
        %v2506 = vmul.f32 %v2504, 1.442695
        %v2507 = vpow.pop %v2506
        %v2508 = vmul.f32 %v2505, 1.442695
        %v2509 = vpow.pop %v2508
        %v2510 = vsel %vm827, %v2507, 0.0
        %2511 = vadd.xlane.f32.xlu0 %v2510
        %v2512 = vpop.xlane.xlu0 %2511
        %v2513 = vsel %vm827, %v2509, 0.0
        %2514 = vadd.xlane.f32.xlu0 %v2513
        %v2515 = vpop.xlane.xlu0 %2514
        %v2516 = vrcp.pop %v2512
        %v2517 = vrcp.pop %v2515
        %v2518 = vmul.f32 %v2507, %v2516
        %v2519 = vmul.f32 %v2509, %v2517
        %v2520 = vpack.c.bf16 %v2519, %v2518
        %2522 = vrot.lane.b32.xlu0 %v2328, 96
        %v2523 = vpop.permute.xlu0 %2522
        %v2526 = vsel %vm827, %v2520, 0
        %2528 = vmatprep.subr.bf16.mxu0 0
        %2529 = vmatpush1.bf16.msra.mxu0 %v2523
        %2530 = vmatprep.subr.bf16.mxu0 0
        %2531 = vmatpush1.bf16.msra.mxu0 0
        %2532 = vmatprep.subr.bf16.mxu0 0
        %2533 = vmatpush1.bf16.msra.mxu0 0
        %2534 = vmatprep.subr.bf16.mxu0 0
        %2535 = vmatpush1.bf16.msra.mxu0 0
        %2536 = vmatprep.subr.bf16.mxu0 0
        %2537 = vmatpush1.bf16.msra.mxu0 0
        %2538 = vmatprep.subr.bf16.mxu0 0
        %2539 = vmatpush1.bf16.msra.mxu0 0
        %2540 = vmatprep.subr.bf16.mxu0 0
        %2541 = vmatpush1.bf16.msra.mxu0 0
        %2542 = vmatprep.subr.bf16.mxu0 0
        %2543 = vmatpush1.bf16.msra.mxu0 0
        %2544 = vmatprep.subr.bf16.mxu0 0
        %2545 = vmatpush1.bf16.msra.mxu0 0
        %2546 = vmatprep.subr.bf16.mxu0 0
        %2547 = vmatpush1.bf16.msra.mxu0 0
        %2548 = vmatprep.subr.bf16.mxu0 0
        %2549 = vmatpush1.bf16.msra.mxu0 0
        %2550 = vmatprep.subr.bf16.mxu0 0
        %2551 = vmatpush1.bf16.msra.mxu0 0
        %2552 = vmatprep.subr.bf16.mxu0 0
        %2553 = vmatpush1.bf16.msra.mxu0 0
        %2554 = vmatprep.subr.bf16.mxu0 0
        %2555 = vmatpush1.bf16.msra.mxu0 0
        %2556 = vmatprep.subr.bf16.mxu0 0
        %2557 = vmatpush1.bf16.msra.mxu0 0
        %2558 = vmatprep.subr.bf16.mxu0 0
        %2559 = vmatpush1.bf16.msra.mxu0 0
        %2560 = vmatprep.mubr.bf16.mxu0 0
        %2561 = vmatmul.mubr.bf16.gmra.mrb[0].mxu0 %v2526
        %v2562 = vpop.f32.mrb[0].mxu0
        %v2563 = vadd.f32 0.0, %v2562
        %v2564 = vpop.f32.mrb[0].mxu0
        %v2565 = vpop.f32.mrb[0].mxu0
        %v2566 = vadd.f32 0.0, %v2565
        %v2567 = vpop.f32.mrb[0].mxu0
        %2568 = vdwg.mxu0
        %2571 = vrot.lane.b32.xlu0 %v2563, 32
        %v2572 = vpop.permute.xlu0 %2571
        %2573 = vrot.lane.b32.xlu0 %v2566, 32
        %v2574 = vpop.permute.xlu0 %2573
        %2577 = vst.msk [vmem:[#allocation2 + $0x30] sm:$0xff] %vm1029, %v2572
        %2578 = vst.msk [vmem:[#allocation2 + $0x38] sm:$0xff] %vm1029, %v2574
        %2579 = vrot.lane.b32.xlu0 %v2326, 64
        %v2580 = vpop.permute.xlu0 %2579
        %2581 = vrot.lane.b32.xlu0 %v2327, 64
        %v2582 = vpop.permute.xlu0 %2581
        %v2584 = vsel %vm779, %v2580, 0
        %v2587 = vsel %vm779, %v2582, 0
        %2589 = vmatprep.subr.bf16.mxu0 0
        %2590 = vmatpush1.bf16.xpose.msra.mxu0 %v2587
        %2591 = vmatprep.subr.bf16.mxu0 0
        %2592 = vmatpush1.bf16.xpose.msra.mxu0 0
        %2593 = vmatprep.subr.bf16.mxu0 0
        %2594 = vmatpush1.bf16.xpose.msra.mxu0 0
        %2595 = vmatprep.subr.bf16.mxu0 0
        %2596 = vmatpush1.bf16.xpose.msra.mxu0 0
        %2597 = vmatprep.subr.bf16.mxu0 0
        %2598 = vmatpush1.bf16.xpose.msra.mxu0 0
        %2599 = vmatprep.subr.bf16.mxu0 0
        %2600 = vmatpush1.bf16.xpose.msra.mxu0 0
        %2601 = vmatprep.subr.bf16.mxu0 0
        %2602 = vmatpush1.bf16.xpose.msra.mxu0 0
        %2603 = vmatprep.subr.bf16.mxu0 0
        %2604 = vmatpush1.bf16.xpose.msra.mxu0 0
        %2605 = vmatprep.subr.bf16.mxu0 0
        %2606 = vmatpush1.bf16.xpose.msra.mxu0 0
        %2607 = vmatprep.subr.bf16.mxu0 0
        %2608 = vmatpush1.bf16.xpose.msra.mxu0 0
        %2609 = vmatprep.subr.bf16.mxu0 0
        %2610 = vmatpush1.bf16.xpose.msra.mxu0 0
        %2611 = vmatprep.subr.bf16.mxu0 0
        %2612 = vmatpush1.bf16.xpose.msra.mxu0 0
        %2613 = vmatprep.subr.bf16.mxu0 0
        %2614 = vmatpush1.bf16.xpose.msra.mxu0 0
        %2615 = vmatprep.subr.bf16.mxu0 0
        %2616 = vmatpush1.bf16.xpose.msra.mxu0 0
        %2617 = vmatprep.subr.bf16.mxu0 0
        %2618 = vmatpush1.bf16.xpose.msra.mxu0 0
        %2619 = vmatprep.subr.bf16.mxu0 0
        %2620 = vmatpush1.bf16.xpose.msra.mxu0 0
        %2621 = vmatprep.mubr.bf16.mxu0 0
        %2622 = vmatmul.mubr.bf16.gmra.mrb[0].mxu0 %v2584
        %v2623 = vpop.f32.mrb[0].mxu0
        %v2624 = vadd.f32 0.0, %v2623
        %v2625 = vpop.f32.mrb[0].mxu0
        %v2626 = vpop.f32.mrb[0].mxu0
        %v2627 = vadd.f32 0.0, %v2626
        %v2628 = vpop.f32.mrb[0].mxu0
        %2629 = vdwg.mxu0
        %v2630 = vsel %vm827, %v2624, -inf
        %2631 = vmax.xlane.f32.xlu0 %v2630
        %v2632 = vpop.xlane.xlu0 %2631
        %v2633 = vsel %vm827, %v2627, -inf
        %2634 = vmax.xlane.f32.xlu0 %v2633
        %v2635 = vpop.xlane.xlu0 %2634
        %v2636 = vsub.f32 %v2624, %v2632
        %v2637 = vsub.f32 %v2627, %v2635
        %v2638 = vmul.f32 %v2636, 1.442695
        %v2639 = vpow.pop %v2638
        %v2640 = vmul.f32 %v2637, 1.442695
        %v2641 = vpow.pop %v2640
        %v2642 = vsel %vm827, %v2639, 0.0
        %2643 = vadd.xlane.f32.xlu0 %v2642
        %v2644 = vpop.xlane.xlu0 %2643
        %v2645 = vsel %vm827, %v2641, 0.0
        %2646 = vadd.xlane.f32.xlu0 %v2645
        %v2647 = vpop.xlane.xlu0 %2646
        %v2648 = vrcp.pop %v2644
        %v2649 = vrcp.pop %v2647
        %v2650 = vmul.f32 %v2639, %v2648
        %v2651 = vmul.f32 %v2641, %v2649
        %v2652 = vpack.c.bf16 %v2651, %v2650
        %2653 = vrot.lane.b32.xlu0 %v2328, 64
        %v2654 = vpop.permute.xlu0 %2653
        %v2657 = vsel %vm827, %v2652, 0
        %2659 = vmatprep.subr.bf16.mxu0 0
        %2660 = vmatpush1.bf16.msra.mxu0 %v2654
        %2661 = vmatprep.subr.bf16.mxu0 0
        %2662 = vmatpush1.bf16.msra.mxu0 0
        %2663 = vmatprep.subr.bf16.mxu0 0
        %2664 = vmatpush1.bf16.msra.mxu0 0
        %2665 = vmatprep.subr.bf16.mxu0 0
        %2666 = vmatpush1.bf16.msra.mxu0 0
        %2667 = vmatprep.subr.bf16.mxu0 0
        %2668 = vmatpush1.bf16.msra.mxu0 0
        %2669 = vmatprep.subr.bf16.mxu0 0
        %2670 = vmatpush1.bf16.msra.mxu0 0
        %2671 = vmatprep.subr.bf16.mxu0 0
        %2672 = vmatpush1.bf16.msra.mxu0 0
        %2673 = vmatprep.subr.bf16.mxu0 0
        %2674 = vmatpush1.bf16.msra.mxu0 0
        %2675 = vmatprep.subr.bf16.mxu0 0
        %2676 = vmatpush1.bf16.msra.mxu0 0
        %2677 = vmatprep.subr.bf16.mxu0 0
        %2678 = vmatpush1.bf16.msra.mxu0 0
        %2679 = vmatprep.subr.bf16.mxu0 0
        %2680 = vmatpush1.bf16.msra.mxu0 0
        %2681 = vmatprep.subr.bf16.mxu0 0
        %2682 = vmatpush1.bf16.msra.mxu0 0
        %2683 = vmatprep.subr.bf16.mxu0 0
        %2684 = vmatpush1.bf16.msra.mxu0 0
        %2685 = vmatprep.subr.bf16.mxu0 0
        %2686 = vmatpush1.bf16.msra.mxu0 0
        %2687 = vmatprep.subr.bf16.mxu0 0
        %2688 = vmatpush1.bf16.msra.mxu0 0
        %2689 = vmatprep.subr.bf16.mxu0 0
        %2690 = vmatpush1.bf16.msra.mxu0 0
        %2691 = vmatprep.mubr.bf16.mxu0 0
        %2692 = vmatmul.mubr.bf16.gmra.mrb[0].mxu0 %v2657
        %v2693 = vpop.f32.mrb[0].mxu0
        %v2694 = vadd.f32 0.0, %v2693
        %v2695 = vpop.f32.mrb[0].mxu0
        %v2696 = vpop.f32.mrb[0].mxu0
        %v2697 = vadd.f32 0.0, %v2696
        %v2698 = vpop.f32.mrb[0].mxu0
        %2699 = vdwg.mxu0
        %2702 = vrot.lane.b32.xlu0 %v2694, 64
        %v2703 = vpop.permute.xlu0 %2702
        %2704 = vrot.lane.b32.xlu0 %v2697, 64
        %v2705 = vpop.permute.xlu0 %2704
        %2708 = vst.msk [vmem:[#allocation2 + $0x30] sm:$0xff] %vm1161, %v2703
        %2709 = vst.msk [vmem:[#allocation2 + $0x38] sm:$0xff] %vm1161, %v2705
        %2710 = vrot.lane.b32.xlu0 %v2326, 32
        %v2711 = vpop.permute.xlu0 %2710
        %2712 = vrot.lane.b32.xlu0 %v2327, 32
        %v2713 = vpop.permute.xlu0 %2712
        %v2715 = vsel %vm779, %v2711, 0
        %v2718 = vsel %vm779, %v2713, 0
        %2720 = vmatprep.subr.bf16.mxu0 0
        %2721 = vmatpush1.bf16.xpose.msra.mxu0 %v2718
        %2722 = vmatprep.subr.bf16.mxu0 0
        %2723 = vmatpush1.bf16.xpose.msra.mxu0 0
        %2724 = vmatprep.subr.bf16.mxu0 0
        %2725 = vmatpush1.bf16.xpose.msra.mxu0 0
        %2726 = vmatprep.subr.bf16.mxu0 0
        %2727 = vmatpush1.bf16.xpose.msra.mxu0 0
        %2728 = vmatprep.subr.bf16.mxu0 0
        %2729 = vmatpush1.bf16.xpose.msra.mxu0 0
        %2730 = vmatprep.subr.bf16.mxu0 0
        %2731 = vmatpush1.bf16.xpose.msra.mxu0 0
        %2732 = vmatprep.subr.bf16.mxu0 0
        %2733 = vmatpush1.bf16.xpose.msra.mxu0 0
        %2734 = vmatprep.subr.bf16.mxu0 0
        %2735 = vmatpush1.bf16.xpose.msra.mxu0 0
        %2736 = vmatprep.subr.bf16.mxu0 0
        %2737 = vmatpush1.bf16.xpose.msra.mxu0 0
        %2738 = vmatprep.subr.bf16.mxu0 0
        %2739 = vmatpush1.bf16.xpose.msra.mxu0 0
        %2740 = vmatprep.subr.bf16.mxu0 0
        %2741 = vmatpush1.bf16.xpose.msra.mxu0 0
        %2742 = vmatprep.subr.bf16.mxu0 0
        %2743 = vmatpush1.bf16.xpose.msra.mxu0 0
        %2744 = vmatprep.subr.bf16.mxu0 0
        %2745 = vmatpush1.bf16.xpose.msra.mxu0 0
        %2746 = vmatprep.subr.bf16.mxu0 0
        %2747 = vmatpush1.bf16.xpose.msra.mxu0 0
        %2748 = vmatprep.subr.bf16.mxu0 0
        %2749 = vmatpush1.bf16.xpose.msra.mxu0 0
        %2750 = vmatprep.subr.bf16.mxu0 0
        %2751 = vmatpush1.bf16.xpose.msra.mxu0 0
        %2752 = vmatprep.mubr.bf16.mxu0 0
        %2753 = vmatmul.mubr.bf16.gmra.mrb[0].mxu0 %v2715
        %v2754 = vpop.f32.mrb[0].mxu0
        %v2755 = vadd.f32 0.0, %v2754
        %v2756 = vpop.f32.mrb[0].mxu0
        %v2757 = vpop.f32.mrb[0].mxu0
        %v2758 = vadd.f32 0.0, %v2757
        %v2759 = vpop.f32.mrb[0].mxu0
        %2760 = vdwg.mxu0
        %v2761 = vsel %vm827, %v2755, -inf
        %2762 = vmax.xlane.f32.xlu0 %v2761
        %v2763 = vpop.xlane.xlu0 %2762
        %v2764 = vsel %vm827, %v2758, -inf
        %2765 = vmax.xlane.f32.xlu0 %v2764
        %v2766 = vpop.xlane.xlu0 %2765
        %v2767 = vsub.f32 %v2755, %v2763
        %v2768 = vsub.f32 %v2758, %v2766
        %v2769 = vmul.f32 %v2767, 1.442695
        %v2770 = vpow.pop %v2769
        %v2771 = vmul.f32 %v2768, 1.442695
        %v2772 = vpow.pop %v2771
        %v2773 = vsel %vm827, %v2770, 0.0
        %2774 = vadd.xlane.f32.xlu0 %v2773
        %v2775 = vpop.xlane.xlu0 %2774
        %v2776 = vsel %vm827, %v2772, 0.0
        %2777 = vadd.xlane.f32.xlu0 %v2776
        %v2778 = vpop.xlane.xlu0 %2777
        %v2779 = vrcp.pop %v2775
        %v2780 = vrcp.pop %v2778
        %v2781 = vmul.f32 %v2770, %v2779
        %v2782 = vmul.f32 %v2772, %v2780
        %v2783 = vpack.c.bf16 %v2782, %v2781
        %2784 = vrot.lane.b32.xlu0 %v2328, 32
        %v2785 = vpop.permute.xlu0 %2784
        %v2788 = vsel %vm827, %v2783, 0
        %2790 = vmatprep.subr.bf16.mxu0 0
        %2791 = vmatpush1.bf16.msra.mxu0 %v2785
        %2792 = vmatprep.subr.bf16.mxu0 0
        %2793 = vmatpush1.bf16.msra.mxu0 0
        %2794 = vmatprep.subr.bf16.mxu0 0
        %2795 = vmatpush1.bf16.msra.mxu0 0
        %2796 = vmatprep.subr.bf16.mxu0 0
        %2797 = vmatpush1.bf16.msra.mxu0 0
        %2798 = vmatprep.subr.bf16.mxu0 0
        %2799 = vmatpush1.bf16.msra.mxu0 0
        %2800 = vmatprep.subr.bf16.mxu0 0
        %2801 = vmatpush1.bf16.msra.mxu0 0
        %2802 = vmatprep.subr.bf16.mxu0 0
        %2803 = vmatpush1.bf16.msra.mxu0 0
        %2804 = vmatprep.subr.bf16.mxu0 0
        %2805 = vmatpush1.bf16.msra.mxu0 0
        %2806 = vmatprep.subr.bf16.mxu0 0
        %2807 = vmatpush1.bf16.msra.mxu0 0
        %2808 = vmatprep.subr.bf16.mxu0 0
        %2809 = vmatpush1.bf16.msra.mxu0 0
        %2810 = vmatprep.subr.bf16.mxu0 0
        %2811 = vmatpush1.bf16.msra.mxu0 0
        %2812 = vmatprep.subr.bf16.mxu0 0
        %2813 = vmatpush1.bf16.msra.mxu0 0
        %2814 = vmatprep.subr.bf16.mxu0 0
        %2815 = vmatpush1.bf16.msra.mxu0 0
        %2816 = vmatprep.subr.bf16.mxu0 0
        %2817 = vmatpush1.bf16.msra.mxu0 0
        %2818 = vmatprep.subr.bf16.mxu0 0
        %2819 = vmatpush1.bf16.msra.mxu0 0
        %2820 = vmatprep.subr.bf16.mxu0 0
        %2821 = vmatpush1.bf16.msra.mxu0 0
        %2822 = vmatprep.mubr.bf16.mxu0 0
        %2823 = vmatmul.mubr.bf16.gmra.mrb[0].mxu0 %v2788
        %v2824 = vpop.f32.mrb[0].mxu0
        %v2825 = vadd.f32 0.0, %v2824
        %v2826 = vpop.f32.mrb[0].mxu0
        %v2827 = vpop.f32.mrb[0].mxu0
        %v2828 = vadd.f32 0.0, %v2827
        %v2829 = vpop.f32.mrb[0].mxu0
        %2830 = vdwg.mxu0
        %2833 = vrot.lane.b32.xlu0 %v2825, 96
        %v2834 = vpop.permute.xlu0 %2833
        %2835 = vrot.lane.b32.xlu0 %v2828, 96
        %v2836 = vpop.permute.xlu0 %2835
        %2839 = vst.msk [vmem:[#allocation2 + $0x30] sm:$0xff] %vm1293, %v2834
        %2840 = vst.msk [vmem:[#allocation2 + $0x38] sm:$0xff] %vm1293, %v2836
        %v2841 = vld [vmem:[#allocation2] sm:$0xff]
        %v2842 = vld [vmem:[#allocation2 + $0x8] sm:$0xff]
        %v2843 = vld [vmem:[#allocation2 + $0x10] sm:$0xff]
        %v2844 = vld [vmem:[#allocation2 + $0x18] sm:$0xff]
        %v2845 = vld [vmem:[#allocation2 + $0x20] sm:$0xff]
        %v2846 = vld [vmem:[#allocation2 + $0x28] sm:$0xff]
        %v2847 = vld [vmem:[#allocation2 + $0x30] sm:$0xff]
        %v2848 = vld [vmem:[#allocation2 + $0x38] sm:$0xff]
        %v2849 = vpack.c.bf16 %v2842, %v2841
        %v2850 = vpack.c.bf16 %v2844, %v2843
        %v2851 = vpack.c.bf16 %v2846, %v2845
        %v2852 = vpack.c.bf16 %v2848, %v2847
        %v2853 = vld [vmem:[#allocation8] sm:$0xf]
        %v2854 = vld [vmem:[#allocation8 + $0x4] sm:$0xf]
        %v2855 = vld [vmem:[#allocation8 + $0x8] sm:$0xf]
        %v2856 = vld [vmem:[#allocation8 + $0xc] sm:$0xf]
        %v2857 = vld [vmem:[#allocation8 + $0x10] sm:$0xf]
        %v2858 = vld [vmem:[#allocation8 + $0x14] sm:$0xf]
        %v2859 = vld [vmem:[#allocation8 + $0x18] sm:$0xf]
        %v2860 = vld [vmem:[#allocation8 + $0x1c] sm:$0xf]
        %v2861 = vld [vmem:[#allocation8 + $0x20] sm:$0xf]
        %v2862 = vld [vmem:[#allocation8 + $0x24] sm:$0xf]
        %v2863 = vld [vmem:[#allocation8 + $0x28] sm:$0xf]
        %v2864 = vld [vmem:[#allocation8 + $0x2c] sm:$0xf]
        %v2865 = vld [vmem:[#allocation8 + $0x30] sm:$0xf]
        %v2866 = vld [vmem:[#allocation8 + $0x34] sm:$0xf]
        %v2867 = vld [vmem:[#allocation8 + $0x38] sm:$0xf]
        %v2868 = vld [vmem:[#allocation8 + $0x3c] sm:$0xf]
        %v2869 = vld [vmem:[%s6] sm:$0x1]
        %v2871 = vlaneseq
        %v2872 = vshrl.u32 %v2871, 7
        %v2873 = vsub.s32 0, %v2872
        %v2874 = vrot.slane %v2869, %v2873
        %v2892 = vunpack.c.l.b16 %v2853
        %v2893 = vunpack.c.l.b16 %v2854
        %v2894 = vunpack.c.l.b16 %v2855
        %v2895 = vunpack.c.l.b16 %v2856
        %v2896 = vunpack.c.l.b16 %v2857
        %v2897 = vunpack.c.l.b16 %v2858
        %v2898 = vunpack.c.l.b16 %v2859
        %v2899 = vunpack.c.l.b16 %v2860
        %v2900 = vunpack.c.l.b16 %v2861
        %v2901 = vunpack.c.l.b16 %v2862
        %v2902 = vunpack.c.l.b16 %v2863
        %v2903 = vunpack.c.l.b16 %v2864
        %v2904 = vunpack.c.l.b16 %v2865
        %v2905 = vunpack.c.l.b16 %v2866
        %v2906 = vunpack.c.l.b16 %v2867
        %v2907 = vunpack.c.l.b16 %v2868
        %v2908 = vpack.c.b16 %v2893, %v2892
        %v2909 = vpack.c.b16 %v2895, %v2894
        %v2910 = vpack.c.b16 %v2897, %v2896
        %v2911 = vpack.c.b16 %v2899, %v2898
        %v2912 = vpack.c.b16 %v2901, %v2900
        %v2913 = vpack.c.b16 %v2903, %v2902
        %v2914 = vpack.c.b16 %v2905, %v2904
        %v2915 = vpack.c.b16 %v2907, %v2906
        %2924 = vmatprep.subr.bf16.mxu0 0
        %2925 = vmatpush1.bf16.msra.mxu0 %v2908
        %2926 = vmatprep.subr.bf16.mxu0 0
        %2927 = vmatpush1.bf16.msra.mxu0 %v2909
        %2928 = vmatprep.subr.bf16.mxu0 0
        %2929 = vmatpush1.bf16.msra.mxu0 %v2910
        %2930 = vmatprep.subr.bf16.mxu0 0
        %2931 = vmatpush1.bf16.msra.mxu0 %v2911
        %2932 = vmatprep.subr.bf16.mxu0 0
        %2933 = vmatpush1.bf16.msra.mxu0 %v2912
        %2934 = vmatprep.subr.bf16.mxu0 0
        %2935 = vmatpush1.bf16.msra.mxu0 %v2913
        %2936 = vmatprep.subr.bf16.mxu0 0
        %2937 = vmatpush1.bf16.msra.mxu0 %v2914
        %2938 = vmatprep.subr.bf16.mxu0 0
        %2939 = vmatpush1.bf16.msra.mxu0 %v2915
        %2940 = vmatprep.subr.bf16.mxu0 0
        %2941 = vmatpush1.bf16.msra.mxu0 0
        %2942 = vmatprep.subr.bf16.mxu0 0
        %2943 = vmatpush1.bf16.msra.mxu0 0
        %2944 = vmatprep.subr.bf16.mxu0 0
        %2945 = vmatpush1.bf16.msra.mxu0 0
        %2946 = vmatprep.subr.bf16.mxu0 0
        %2947 = vmatpush1.bf16.msra.mxu0 0
        %2948 = vmatprep.subr.bf16.mxu0 0
        %2949 = vmatpush1.bf16.msra.mxu0 0
        %2950 = vmatprep.subr.bf16.mxu0 0
        %2951 = vmatpush1.bf16.msra.mxu0 0
        %2952 = vmatprep.subr.bf16.mxu0 0
        %2953 = vmatpush1.bf16.msra.mxu0 0
        %2954 = vmatprep.subr.bf16.mxu0 0
        %2955 = vmatpush1.bf16.msra.mxu0 0
        %2956 = vmatprep.mubr.bf16.mxu0 0
        %2957 = vmatmul.mubr.bf16.gmra.mrb[0].mxu0 %v2849
        %v2958 = vpop.f32.mrb[0].mxu0
        %v2959 = vadd.f32 %v2874, %v2958
        %v2960 = vpop.f32.mrb[0].mxu0
        %v2961 = vpop.f32.mrb[0].mxu0
        %v2962 = vadd.f32 %v2874, %v2961
        %v2963 = vpop.f32.mrb[0].mxu0
        %2964 = vmatprep.mubr.bf16.mxu0 0
        %2965 = vmatmul.mubr.bf16.gmra.mrb[0].mxu0 %v2850
        %v2966 = vpop.f32.mrb[0].mxu0
        %v2967 = vadd.f32 %v2874, %v2966
        %v2968 = vpop.f32.mrb[0].mxu0
        %v2969 = vpop.f32.mrb[0].mxu0
        %v2970 = vadd.f32 %v2874, %v2969
        %v2971 = vpop.f32.mrb[0].mxu0
        %2972 = vmatprep.mubr.bf16.mxu0 0
        %2973 = vmatmul.mubr.bf16.gmra.mrb[0].mxu0 %v2851
        %v2974 = vpop.f32.mrb[0].mxu0
        %v2975 = vadd.f32 %v2874, %v2974
        %v2976 = vpop.f32.mrb[0].mxu0
        %v2977 = vpop.f32.mrb[0].mxu0
        %v2978 = vadd.f32 %v2874, %v2977
        %v2979 = vpop.f32.mrb[0].mxu0
        %2980 = vmatprep.mubr.bf16.mxu0 0
        %2981 = vmatmul.mubr.bf16.gmra.mrb[0].mxu0 %v2852
        %v2982 = vpop.f32.mrb[0].mxu0
        %v2983 = vadd.f32 %v2874, %v2982
        %v2984 = vpop.f32.mrb[0].mxu0
        %v2985 = vpop.f32.mrb[0].mxu0
        %v2986 = vadd.f32 %v2874, %v2985
        %v2987 = vpop.f32.mrb[0].mxu0
        %2988 = vdwg.mxu0
        %2989 = vst [vmem:[%s326] sm:$0xff] %v2959
        %2990 = vst [vmem:[%s326 + $0x8] sm:$0xff] %v2962
        %2991 = vst [vmem:[%s326 + $0x10] sm:$0xff] %v2967
        %2992 = vst [vmem:[%s326 + $0x18] sm:$0xff] %v2970
        %2993 = vst [vmem:[%s326 + $0x20] sm:$0xff] %v2975
        %2994 = vst [vmem:[%s326 + $0x28] sm:$0xff] %v2978
        %2995 = vst [vmem:[%s326 + $0x30] sm:$0xff] %v2983
        %2996 = vst [vmem:[%s326 + $0x38] sm:$0xff] %v2986
        %s2997 = sand.u32 %s185, 1
        %s2998 = scalar_lea.sflag [#allocation5], %s2997
        %s2999 = sand.u32 %s185, 1
        %s3000 = smul.addr %s2999, 64
        %s3001 = scalar_lea.vmem [#allocation9], %s3000
        // Predicated region
        $region61: #{tpu_custom_call.1} parent=47 // pred_check
          %p3002 = pneg %p195
        $region62: #{tpu_custom_call.1} parent=47 // pred_check_branch
          %3004 = sbr.rel (%p3002) target = $region64
        $region63: #{tpu_custom_call.1} parent=47 // pred_region
          %s3005 = smul.u32 4, %s25
          %s3007 = ssub.s32 1024, 1024
          %3008 = vsyncadd %s2998, %s3007
          %s3009 = smul.addr %s3005, 2
          %s3010 = smul.addr %s3009, 128
          %s3011 = scalar_lea.hbm %s7, %s3010
          %s3012 = sshll.u32 %s3001, 4
          %s3013 = int_to_ptr.vmem [resolvable:$true] %s3012
          %3018 = dma.vmem_to_hbm [thread:$0]  %s3013, 1024, %s3011, %s2998, 128, 128, 8
        $region64: #{tpu_custom_call.1} parent=47 // pred_fallthru
          _
      $region48: #{tpu_custom_call.1} parent=5 // pred_fallthru
        _
      %p3019 = scmp.le.s32.totalorder 2, %s20
      // Predicated region
      $region65: #{tpu_custom_call.1} parent=5 // pred_check
        %p3020 = pneg %p3019
      $region66: #{tpu_custom_call.1} parent=5 // pred_check_branch
        %3022 = sbr.rel (%p3020) target = $region68
      $region67: #{tpu_custom_call.1} parent=5 // pred_region
        %s3023 = ssub.s32 %s20, 2
        // Predicated region
        $region69: #{tpu_custom_call.1} parent=67 // pred_check
          %p3024 = pneg %p201
        $region70: #{tpu_custom_call.1} parent=67 // pred_check_branch
          %3026 = sbr.rel (%p3024) target = $region72
        $region71: #{tpu_custom_call.1} parent=67 // pred_region
          %s3027 = sand.u32 %s186, 1
          %s3028 = scalar_lea.sflag [#allocation5], %s3027
          %s3029 = sand.u32 %s186, 1
          %s3030 = smul.addr %s3029, 64
          %s3031 = scalar_lea.vmem [#allocation9], %s3030
          %3032 = dma.done %s3028, 1024
        $region72: #{tpu_custom_call.1} parent=67 // pred_fallthru
          _
      $region68: #{tpu_custom_call.1} parent=5 // pred_fallthru
        _
    $region6: #{tpu_custom_call.1} parent=1 // loop_footer
      %s24 = sadd.s32 1, %s20
    $region7: #{tpu_custom_call.1} parent=1 // loop_footer_branch
      %19 = sbr.rel target = $region3
    $region8: #{tpu_custom_call.1} parent=1 // loop_exit
      _
    %3033 = vsyncpa [#allocation4], 1
    %s3034 = scalar_lea.sflag [#allocation4], 1
    %3035 = vsyncpa %s3034, 1
    %3036 = vsyncpa [#allocation7], 1
    %3037 = vsyncpa [#allocation5], 1
    %s3038 = scalar_lea.sflag [#allocation5], 1
    %3039 = vsyncpa %s3038, 1

</llo_original>
